<compile_context>
chip_gen: v7x
topology: tpu7x:2x2x1
jax: 0.10.0
libtpu: 0.0.40
codegen_flags: <defaults>
</compile_context>

<pallas_src>
import functools

import jax
import jax.numpy as jnp
import numpy as np
from jax.experimental import pallas as pl
from jax.experimental.pallas import tpu as pltpu

_VMEM_LIMIT = 32 * 1024 * 1024  # v7x-safe scoped-VMEM budget (64 MiB physical)


def _compiler_params(n_axes):
    return pltpu.CompilerParams(
        dimension_semantics=("parallel",) * n_axes,
        vmem_limit_bytes=_VMEM_LIMIT)


# ----------------------------- K0: 2x2 max-pool ------------------------------
def _maxpool_kernel(x_ref, o_ref):
    # x_ref: (tm, 2, Wp, 2, C) pre-split NHWC view;  o_ref: (tm, Wp, C)
    a = x_ref[:, 0, :, 0, :]
    b = x_ref[:, 0, :, 1, :]
    c = x_ref[:, 1, :, 0, :]
    d = x_ref[:, 1, :, 1, :]
    o_ref[...] = jnp.maximum(jnp.maximum(a, b), jnp.maximum(c, d))


def _maxpool2x2(x_nhwc):
    N, H, W, C = x_nhwc.shape
    assert H % 2 == 0 and W % 2 == 0, "MaxPool2d(2) path assumes even H, W"
    Hp, Wp = H // 2, W // 2
    M = N * Hp
    # Wrapper-side view so the kernel needs no reshapes / strided slices.
    x5 = x_nhwc.reshape(M, 2, Wp, 2, C)
    tm = M if M <= 256 else 256
    out = pl.pallas_call(
        _maxpool_kernel,
        grid=(pl.cdiv(M, tm),),
        in_specs=[pl.BlockSpec((tm, 2, Wp, 2, C), lambda i: (i, 0, 0, 0, 0))],
        out_specs=pl.BlockSpec((tm, Wp, C), lambda i: (i, 0, 0)),
        out_shape=jax.ShapeDtypeStruct((M, Wp, C), x_nhwc.dtype),
        compiler_params=_compiler_params(1),
    )(x5)
    return out.reshape(N, Hp, Wp, C)


# -------- K1/K2: (optional fused BN+ReLU) -> pad -> conv3x3 -> partial stats --
def _conv_stage_kernel(x_ref, scale_ref, shift_ref, w_ref, y_ref, stats_ref,
                       pad_ref, *, Hs, Ws, Cin, Cout, apply_input_bn_relu):
    """One image per grid step.

    x_ref    : (1, Hs, Ws, Cin)   stage input (raw previous conv output for stage 2)
    scale_ref: (1, Cin)           folded BN scale of the previous stage (stage 2 only)
    shift_ref: (1, Cin)           folded BN shift of the previous stage (stage 2 only)
    w_ref    : (3, 3, Cin, Cout)  conv weight (HWIO)
    y_ref    : (1, Hs*Ws, Cout)   raw conv output (pre-BN) for this image
    stats_ref: (1, 2, Cout)       per-image [sum, sum_of_squares] of the conv output
    pad_ref  : (Hs+2, Ws+2, Cin)  VMEM scratch, zero-padded stage input
    """
    x = x_ref[0]
    if apply_input_bn_relu:
        # Previous stage's BN (batch stats folded into scale/shift) + ReLU,
        # fused here so the normalized activation never hits HBM.
        x = jnp.maximum(x * scale_ref[...] + shift_ref[...], 0.0)

    # SAME padding done in-kernel: zero the scratch, write the interior.
    pad_ref[...] = jnp.zeros_like(pad_ref)
    pad_ref[1:Hs + 1, 1:Ws + 1, :] = x.astype(pad_ref.dtype)

    # 3x3 conv as 9 shifted-tap matmuls with f32 accumulation.  The per-tap
    # windows are small per-image VMEM tiles (not full-array copies).  With
    # tiny Cin the MXU is K-bound either way; for large Cin a single K=9*Cin
    # im2col matmul is the next step.
    acc = jnp.zeros((Hs * Ws, Cout), jnp.float32)
    for dy in range(3):
        for dx in range(3):
            patch = pad_ref[dy:dy + Hs, dx:dx + Ws, :].reshape(Hs * Ws, Cin)
            acc = acc + jnp.dot(patch, w_ref[dy, dx],
                                preferred_element_type=jnp.float32)

    y_ref[0] = acc.astype(y_ref.dtype)
    # Per-image partial BatchNorm statistics; finalized outside the grid.
    stats_ref[0, 0:1, :] = jnp.sum(acc, axis=0, keepdims=True)
    stats_ref[0, 1:2, :] = jnp.sum(acc * acc, axis=0, keepdims=True)


def _conv_stage(x_nhwc, w_hwio, scale_in, shift_in, *, apply_input_bn_relu,
                out_dtype=jnp.float32):
    N, Hs, Ws, Cin = x_nhwc.shape
    Cout = w_hwio.shape[-1]
    kernel = functools.partial(
        _conv_stage_kernel, Hs=Hs, Ws=Ws, Cin=Cin, Cout=Cout,
        apply_input_bn_relu=apply_input_bn_relu)
    y, stats = pl.pallas_call(
        kernel,
        grid=(N,),
        in_specs=[
            pl.BlockSpec((1, Hs, Ws, Cin), lambda i: (i, 0, 0, 0)),
            pl.BlockSpec((1, Cin), lambda i: (0, 0)),
            pl.BlockSpec((1, Cin), lambda i: (0, 0)),
            pl.BlockSpec((3, 3, Cin, Cout), lambda i: (0, 0, 0, 0)),
        ],
        out_specs=(
            pl.BlockSpec((1, Hs * Ws, Cout), lambda i: (i, 0, 0)),
            pl.BlockSpec((1, 2, Cout), lambda i: (i, 0, 0)),
        ),
        out_shape=(
            jax.ShapeDtypeStruct((N, Hs * Ws, Cout), out_dtype),
            jax.ShapeDtypeStruct((N, 2, Cout), jnp.float32),
        ),
        scratch_shapes=[pltpu.VMEM((Hs + 2, Ws + 2, Cin), x_nhwc.dtype)],
        compiler_params=_compiler_params(1),
    )(x_nhwc, scale_in, shift_in, w_hwio)
    return y, stats


def _bn_fold(stats, gamma, beta, count, eps=1e-5):
    """Fold batch statistics (from per-image partial sums) into scale/shift."""
    s = jnp.sum(stats[:, 0, :], axis=0)
    ss = jnp.sum(stats[:, 1, :], axis=0)
    mean = s / count
    var = jnp.maximum(ss / count - mean * mean, 0.0)   # biased (training-mode) var
    scale = gamma * jax.lax.rsqrt(var + eps)
    shift = beta - mean * scale
    return (scale.reshape(1, -1).astype(jnp.float32),
            shift.reshape(1, -1).astype(jnp.float32))


# ------------------------------ K3: BN + ReLU --------------------------------
def _bn_relu_kernel(y_ref, scale_ref, shift_ref, o_ref):
    o_ref[...] = jnp.maximum(
        y_ref[...] * scale_ref[...] + shift_ref[...], 0.0).astype(o_ref.dtype)


def _bn_relu(y, scale, shift, Wp, Cout):
    # y: (N, Hp*Wp, Cout).  Operate on a lane-dense (N*Hp, Wp*Cout) view so the
    # elementwise / store path uses wide rows instead of Cout-lane masked stores.
    N, P, _ = y.shape
    Hp = P // Wp
    M, L = N * Hp, Wp * Cout
    y2 = y.reshape(M, L)
    scale_t = jnp.tile(scale.reshape(1, Cout), (1, Wp))
    shift_t = jnp.tile(shift.reshape(1, Cout), (1, Wp))
    tm = M if M <= 512 else 512
    out = pl.pallas_call(
        _bn_relu_kernel,
        grid=(pl.cdiv(M, tm),),
        in_specs=[pl.BlockSpec((tm, L), lambda i: (i, 0)),
                  pl.BlockSpec((1, L), lambda i: (0, 0)),
                  pl.BlockSpec((1, L), lambda i: (0, 0))],
        out_specs=pl.BlockSpec((tm, L), lambda i: (i, 0)),
        out_shape=jax.ShapeDtypeStruct((M, L), jnp.float32),
        compiler_params=_compiler_params(1),
    )(y2, scale_t, shift_t)
    return out.reshape(N, Hp, Wp, Cout)


# -------------------------------- DownScale ----------------------------------
def downscale(x_nchw, params, *, compute_dtype=jnp.float32):
    """DownScale forward: maxpool(2) then (conv3x3 -> BN -> ReLU) twice.

    x_nchw: (N, Cin, H, W) -> (N, Cout, H//2, W//2).
    compute_dtype: dtype of conv inputs/weights and the inter-stage activation
    (jnp.bfloat16 recommended on v6e/v7x; BN stats / MXU accum stay f32).
    """
    N, Cin, H, W = x_nchw.shape
    Cmid = params["w1"].shape[-1]
    Cout = params["w2"].shape[-1]
    Hp, Wp = H // 2, W // 2
    count = N * Hp * Wp

    # NCHW -> NHWC (lane-dense on channels).  NHWC callers can skip this.
    x = jnp.transpose(x_nchw, (0, 2, 3, 1))

    pooled = _maxpool2x2(x).astype(compute_dtype)             # (N, Hp, Wp, Cin)
    w1 = params["w1"].astype(compute_dtype)
    w2 = params["w2"].astype(compute_dtype)

    # Stage 1: conv1 + per-image partial BN stats (two-pass BN, pass A).
    dummy = jnp.zeros((1, Cin), jnp.float32)
    y1, stats1 = _conv_stage(pooled, w1, dummy, dummy,
                             apply_input_bn_relu=False, out_dtype=compute_dtype)
    scale1, shift1 = _bn_fold(stats1, params["gamma1"], params["beta1"], count)

    # Stage 2: BN1+ReLU fused in-kernel with conv2 + its partial BN stats.
    y2, stats2 = _conv_stage(y1.reshape(N, Hp, Wp, Cmid), w2, scale1, shift1,
                             apply_input_bn_relu=True, out_dtype=compute_dtype)
    scale2, shift2 = _bn_fold(stats2, params["gamma2"], params["beta2"], count)

    # Final BN2 + ReLU (lane-dense elementwise epilogue).
    out = _bn_relu(y2, scale2, shift2, Wp, Cout)              # (N, Hp, Wp, Cout)
    return jnp.transpose(out, (0, 3, 1, 2))                   # NHWC -> NCHW


def init_params(key, in_channels, out_channels, mid_channels=None):
    if not mid_channels:
        mid_channels = out_channels
    k1, k2 = jax.random.split(key)

    def conv_init(k, cin, cout):
        fan_in = cin * 3 * 3
        bound = float(np.sqrt(1.0 / fan_in))
        return jax.random.uniform(k, (3, 3, cin, cout), jnp.float32,
                                  minval=-bound, maxval=bound)

    return {
        "w1": conv_init(k1, in_channels, mid_channels),
        "gamma1": jnp.ones((mid_channels,), jnp.float32),
        "beta1": jnp.zeros((mid_channels,), jnp.float32),
        "w2": conv_init(k2, mid_channels, out_channels),
        "gamma2": jnp.ones((out_channels,), jnp.float32),
        "beta2": jnp.zeros((out_channels,), jnp.float32),
    }


# ----------------- pure-JAX reference (correctness check only) ----------------
def _ref_stage(x_nhwc, w_hwio, gamma, beta, eps=1e-5):
    y = jax.lax.conv_general_dilated(
        x_nhwc, w_hwio, window_strides=(1, 1), padding="SAME",
        dimension_numbers=("NHWC", "HWIO", "NHWC"))
    mean = jnp.mean(y, axis=(0, 1, 2), keepdims=True)
    var = jnp.mean((y - mean) ** 2, axis=(0, 1, 2), keepdims=True)
    return jnp.maximum((y - mean) * jax.lax.rsqrt(var + eps) * gamma + beta, 0.0)


def downscale_ref(x_nchw, params):
    x = jnp.transpose(x_nchw, (0, 2, 3, 1))
    N, H, W, C = x.shape
    x = x.reshape(N, H // 2, 2, W // 2, 2, C).max(axis=(2, 4))
    x = _ref_stage(x, params["w1"], params["gamma1"], params["beta1"])
    x = _ref_stage(x, params["w2"], params["gamma2"], params["beta2"])
    return jnp.transpose(x, (0, 3, 1, 2))


if __name__ == "__main__":
    key = jax.random.PRNGKey(0)
    kx, kp = jax.random.split(key)

    N, Cin, H, W = 2, 4, 16, 16
    Cout = 8
    x = jax.random.normal(kx, (N, Cin, H, W), jnp.float32)
    params = init_params(kp, Cin, Cout)

    out = jax.block_until_ready(jax.jit(downscale)(x, params))
    ref = jax.block_until_ready(downscale_ref(x, params))

    assert out.shape == (N, Cout, H // 2, W // 2), out.shape
    np.testing.assert_allclose(np.asarray(out), np.asarray(ref),
                               rtol=1e-3, atol=1e-3)
    print("KERNEL_OK")
</pallas_src>

<mosaic_0001>
module attributes {stable_mosaic.version = 11 : i64} {
  func.func @_maxpool_kernel(%arg0: i32, %arg1: memref<16x2x8x2x4xf32, #tpu.memory_space<vmem>>, %arg2: memref<16x8x4xf32, #tpu.memory_space<vmem>>) attributes {dimension_semantics = [#tpu.dimension_semantics<parallel>], iteration_bounds = array<i64: 1>, scalar_prefetch = 0 : i64, scratch_operands = 0 : i64, tpu.core_type = #tpu.core_type<tc>, window_params = [{transform_indices = @transform_0, window_bounds = array<i64: 16, 2, 8, 2, 4>}, {transform_indices = @transform_1, window_bounds = array<i64: 16, 8, 4>}]} {
    %c0 = arith.constant 0 : index
    %c0_0 = arith.constant 0 : index
    %c0_1 = arith.constant 0 : index
    %c0_2 = arith.constant 0 : index
    %c0_3 = arith.constant 0 : index
    %0 = vector.load %arg1[%c0, %c0_0, %c0_1, %c0_2, %c0_3] : memref<16x2x8x2x4xf32, #tpu.memory_space<vmem>>, vector<16x1x8x1x4xf32>
    %1 = vector.shape_cast %0 : vector<16x1x8x1x4xf32> to vector<16x8x4xf32>
    %c0_4 = arith.constant 0 : index
    %c0_5 = arith.constant 0 : index
    %c0_6 = arith.constant 0 : index
    %c1 = arith.constant 1 : index
    %c0_7 = arith.constant 0 : index
    %2 = vector.load %arg1[%c0_4, %c0_5, %c0_6, %c1, %c0_7] : memref<16x2x8x2x4xf32, #tpu.memory_space<vmem>>, vector<16x1x8x1x4xf32>
    %3 = vector.shape_cast %2 : vector<16x1x8x1x4xf32> to vector<16x8x4xf32>
    %c0_8 = arith.constant 0 : index
    %c1_9 = arith.constant 1 : index
    %c0_10 = arith.constant 0 : index
    %c0_11 = arith.constant 0 : index
    %c0_12 = arith.constant 0 : index
    %4 = vector.load %arg1[%c0_8, %c1_9, %c0_10, %c0_11, %c0_12] : memref<16x2x8x2x4xf32, #tpu.memory_space<vmem>>, vector<16x1x8x1x4xf32>
    %5 = vector.shape_cast %4 : vector<16x1x8x1x4xf32> to vector<16x8x4xf32>
    %c0_13 = arith.constant 0 : index
    %c1_14 = arith.constant 1 : index
    %c0_15 = arith.constant 0 : index
    %c1_16 = arith.constant 1 : index
    %c0_17 = arith.constant 0 : index
    %6 = vector.load %arg1[%c0_13, %c1_14, %c0_15, %c1_16, %c0_17] : memref<16x2x8x2x4xf32, #tpu.memory_space<vmem>>, vector<16x1x8x1x4xf32>
    %7 = vector.shape_cast %6 : vector<16x1x8x1x4xf32> to vector<16x8x4xf32>
    %8 = arith.maximumf %1, %3 : vector<16x8x4xf32>
    %9 = arith.maximumf %5, %7 : vector<16x8x4xf32>
    %10 = arith.maximumf %8, %9 : vector<16x8x4xf32>
    %c0_18 = arith.constant 0 : index
    %c0_19 = arith.constant 0 : index
    %c0_20 = arith.constant 0 : index
    %11 = vector.load %arg2[%c0_18, %c0_19, %c0_20] : memref<16x8x4xf32, #tpu.memory_space<vmem>>, vector<16x8x4xf32>
    tpu.vector_store %arg2[%c0_18, %c0_19, %c0_20], %10 {strides = array<i32>} : memref<16x8x4xf32, #tpu.memory_space<vmem>>, vector<16x8x4xf32>,
    return
  }
  func.func @transform_0(%arg0: i32) -> (i32, i32, i32, i32, i32) {
    %c0_i32 = arith.constant 0 : i32
    %c0_i32_0 = arith.constant 0 : i32
    %c0_i32_1 = arith.constant 0 : i32
    %c0_i32_2 = arith.constant 0 : i32
    %c0_i32_3 = arith.constant 0 : i32
    return %arg0, %c0_i32, %c0_i32_0, %c0_i32_1, %c0_i32_2 : i32, i32, i32, i32, i32
  }
  func.func @transform_1(%arg0: i32) -> (i32, i32, i32) {
    %c0_i32 = arith.constant 0 : i32
    %c0_i32_0 = arith.constant 0 : i32
    %c0_i32_1 = arith.constant 0 : i32
    return %arg0, %c0_i32, %c0_i32_0 : i32, i32, i32
  }
}

module attributes {stable_mosaic.version = 11 : i64} {
  func.func @_conv_stage_kernel(%arg0: i32, %arg1: memref<1x8x8x4xf32, #tpu.memory_space<vmem>>, %arg2: memref<1x4xf32, #tpu.memory_space<vmem>>, %arg3: memref<1x4xf32, #tpu.memory_space<vmem>>, %arg4: memref<3x3x4x8xf32, #tpu.memory_space<vmem>>, %arg5: memref<1x64x8xf32, #tpu.memory_space<vmem>>, %arg6: memref<1x2x8xf32, #tpu.memory_space<vmem>>, %arg7: memref<10x10x4xf32, #tpu.memory_space<vmem>>) attributes {dimension_semantics = [#tpu.dimension_semantics<parallel>], iteration_bounds = array<i64: 2>, scalar_prefetch = 0 : i64, scratch_operands = 1 : i64, tpu.core_type = #tpu.core_type<tc>, window_params = [{transform_indices = @transform_0, window_bounds = array<i64: 1, 8, 8, 4>}, {pipeline_mode = #tpu.pipeline_mode<synchronous>, transform_indices = @transform_1, window_bounds = array<i64: 1, 4>}, {pipeline_mode = #tpu.pipeline_mode<synchronous>, transform_indices = @transform_2, window_bounds = array<i64: 1, 4>}, {pipeline_mode = #tpu.pipeline_mode<synchronous>, transform_indices = @transform_3, window_bounds = array<i64: 3, 3, 4, 8>}, {transform_indices = @transform_4, window_bounds = array<i64: 1, 64, 8>}, {transform_indices = @transform_5, window_bounds = array<i64: 1, 2, 8>}]} {
    %c0 = arith.constant 0 : index
    %c0_0 = arith.constant 0 : index
    %c0_1 = arith.constant 0 : index
    %c0_2 = arith.constant 0 : index
    %0 = vector.load %arg1[%c0, %c0_0, %c0_1, %c0_2] : memref<1x8x8x4xf32, #tpu.memory_space<vmem>>, vector<1x8x8x4xf32>
    %1 = vector.shape_cast %0 : vector<1x8x8x4xf32> to vector<8x8x4xf32>
    %cst = arith.constant 0.000000e+00 : f32
    %2 = vector.broadcast %cst : f32 to vector<10x10x4xf32>
    %c0_3 = arith.constant 0 : index
    %c0_4 = arith.constant 0 : index
    %c0_5 = arith.constant 0 : index
    %3 = vector.load %arg7[%c0_3, %c0_4, %c0_5] : memref<10x10x4xf32, #tpu.memory_space<vmem>>, vector<10x10x4xf32>
    tpu.vector_store %arg7[%c0_3, %c0_4, %c0_5], %2 {strides = array<i32>} : memref<10x10x4xf32, #tpu.memory_space<vmem>>, vector<10x10x4xf32>,
    %c1 = arith.constant 1 : index
    %c1_6 = arith.constant 1 : index
    %c0_7 = arith.constant 0 : index
    %4 = vector.load %arg7[%c1, %c1_6, %c0_7] : memref<10x10x4xf32, #tpu.memory_space<vmem>>, vector<8x8x4xf32>
    tpu.vector_store %arg7[%c1, %c1_6, %c0_7], %1 {strides = array<i32>} : memref<10x10x4xf32, #tpu.memory_space<vmem>>, vector<8x8x4xf32>,
    %cst_8 = arith.constant 0.000000e+00 : f32
    %5 = vector.broadcast %cst_8 : f32 to vector<64x8xf32>
    %c0_9 = arith.constant 0 : index
    %c0_10 = arith.constant 0 : index
    %c0_11 = arith.constant 0 : index
    %6 = vector.load %arg7[%c0_9, %c0_10, %c0_11] : memref<10x10x4xf32, #tpu.memory_space<vmem>>, vector<8x8x4xf32>
    %7 = vector.shape_cast %6 : vector<8x8x4xf32> to vector<64x4xf32>
    %c0_12 = arith.constant 0 : index
    %c0_13 = arith.constant 0 : index
    %c0_14 = arith.constant 0 : index
    %c0_15 = arith.constant 0 : index
    %8 = vector.load %arg4[%c0_12, %c0_13, %c0_14, %c0_15] : memref<3x3x4x8xf32, #tpu.memory_space<vmem>>, vector<1x1x4x8xf32>
    %9 = vector.shape_cast %8 : vector<1x1x4x8xf32> to vector<4x8xf32>
    %cst_16 = arith.constant dense<0.000000e+00> : vector<64x8xf32>
    %10 = tpu.matmul %7, %9, %cst_16 {dimension_numbers = #tpu.dot_dimension_numbers<[1], [0], [0], [1], [0, 0, 1, 1], [], []>} : vector<64x4xf32>, vector<4x8xf32>, vector<64x8xf32> -> vector<64x8xf32>
    %11 = arith.addf %5, %10 : vector<64x8xf32>
    %c0_17 = arith.constant 0 : index
    %c1_18 = arith.constant 1 : index
    %c0_19 = arith.constant 0 : index
    %12 = vector.load %arg7[%c0_17, %c1_18, %c0_19] : memref<10x10x4xf32, #tpu.memory_space<vmem>>, vector<8x8x4xf32>
    %13 = vector.shape_cast %12 : vector<8x8x4xf32> to vector<64x4xf32>
    %c0_20 = arith.constant 0 : index
    %c1_21 = arith.constant 1 : index
    %c0_22 = arith.constant 0 : index
    %c0_23 = arith.constant 0 : index
    %14 = vector.load %arg4[%c0_20, %c1_21, %c0_22, %c0_23] : memref<3x3x4x8xf32, #tpu.memory_space<vmem>>, vector<1x1x4x8xf32>
    %15 = vector.shape_cast %14 : vector<1x1x4x8xf32> to vector<4x8xf32>
    %cst_24 = arith.constant dense<0.000000e+00> : vector<64x8xf32>
    %16 = tpu.matmul %13, %15, %cst_24 {dimension_numbers = #tpu.dot_dimension_numbers<[1], [0], [0], [1], [0, 0, 1, 1], [], []>} : vector<64x4xf32>, vector<4x8xf32>, vector<64x8xf32> -> vector<64x8xf32>
    %17 = arith.addf %11, %16 : vector<64x8xf32>
    %c0_25 = arith.constant 0 : index
    %c2 = arith.constant 2 : index
    %c0_26 = arith.constant 0 : index
    %18 = vector.load %arg7[%c0_25, %c2, %c0_26] : memref<10x10x4xf32, #tpu.memory_space<vmem>>, vector<8x8x4xf32>
    %19 = vector.shape_cast %18 : vector<8x8x4xf32> to vector<64x4xf32>
    %c0_27 = arith.constant 0 : index
    %c2_28 = arith.constant 2 : index
    %c0_29 = arith.constant 0 : index
    %c0_30 = arith.constant 0 : index
    %20 = vector.load %arg4[%c0_27, %c2_28, %c0_29, %c0_30] : memref<3x3x4x8xf32, #tpu.memory_space<vmem>>, vector<1x1x4x8xf32>
    %21 = vector.shape_cast %20 : vector<1x1x4x8xf32> to vector<4x8xf32>
    %cst_31 = arith.constant dense<0.000000e+00> : vector<64x8xf32>
    %22 = tpu.matmul %19, %21, %cst_31 {dimension_numbers = #tpu.dot_dimension_numbers<[1], [0], [0], [1], [0, 0, 1, 1], [], []>} : vector<64x4xf32>, vector<4x8xf32>, vector<64x8xf32> -> vector<64x8xf32>
    %23 = arith.addf %17, %22 : vector<64x8xf32>
    %c1_32 = arith.constant 1 : index
    %c0_33 = arith.constant 0 : index
    %c0_34 = arith.constant 0 : index
    %24 = vector.load %arg7[%c1_32, %c0_33, %c0_34] : memref<10x10x4xf32, #tpu.memory_space<vmem>>, vector<8x8x4xf32>
    %25 = vector.shape_cast %24 : vector<8x8x4xf32> to vector<64x4xf32>
    %c1_35 = arith.constant 1 : index
    %c0_36 = arith.constant 0 : index
    %c0_37 = arith.constant 0 : index
    %c0_38 = arith.constant 0 : index
    %26 = vector.load %arg4[%c1_35, %c0_36, %c0_37, %c0_38] : memref<3x3x4x8xf32, #tpu.memory_space<vmem>>, vector<1x1x4x8xf32>
    %27 = vector.shape_cast %26 : vector<1x1x4x8xf32> to vector<4x8xf32>
    %cst_39 = arith.constant dense<0.000000e+00> : vector<64x8xf32>
    %28 = tpu.matmul %25, %27, %cst_39 {dimension_numbers = #tpu.dot_dimension_numbers<[1], [0], [0], [1], [0, 0, 1, 1], [], []>} : vector<64x4xf32>, vector<4x8xf32>, vector<64x8xf32> -> vector<64x8xf32>
    %29 = arith.addf %23, %28 : vector<64x8xf32>
    %c1_40 = arith.constant 1 : index
    %c1_41 = arith.constant 1 : index
    %c0_42 = arith.constant 0 : index
    %30 = vector.load %arg7[%c1_40, %c1_41, %c0_42] : memref<10x10x4xf32, #tpu.memory_space<vmem>>, vector<8x8x4xf32>
    %31 = vector.shape_cast %30 : vector<8x8x4xf32> to vector<64x4xf32>
    %c1_43 = arith.constant 1 : index
    %c1_44 = arith.constant 1 : index
    %c0_45 = arith.constant 0 : index
    %c0_46 = arith.constant 0 : index
    %32 = vector.load %arg4[%c1_43, %c1_44, %c0_45, %c0_46] : memref<3x3x4x8xf32, #tpu.memory_space<vmem>>, vector<1x1x4x8xf32>
    %33 = vector.shape_cast %32 : vector<1x1x4x8xf32> to vector<4x8xf32>
    %cst_47 = arith.constant dense<0.000000e+00> : vector<64x8xf32>
    %34 = tpu.matmul %31, %33, %cst_47 {dimension_numbers = #tpu.dot_dimension_numbers<[1], [0], [0], [1], [0, 0, 1, 1], [], []>} : vector<64x4xf32>, vector<4x8xf32>, vector<64x8xf32> -> vector<64x8xf32>
    %35 = arith.addf %29, %34 : vector<64x8xf32>
    %c1_48 = arith.constant 1 : index
    %c2_49 = arith.constant 2 : index
    %c0_50 = arith.constant 0 : index
    %36 = vector.load %arg7[%c1_48, %c2_49, %c0_50] : memref<10x10x4xf32, #tpu.memory_space<vmem>>, vector<8x8x4xf32>
    %37 = vector.shape_cast %36 : vector<8x8x4xf32> to vector<64x4xf32>
    %c1_51 = arith.constant 1 : index
    %c2_52 = arith.constant 2 : index
    %c0_53 = arith.constant 0 : index
    %c0_54 = arith.constant 0 : index
    %38 = vector.load %arg4[%c1_51, %c2_52, %c0_53, %c0_54] : memref<3x3x4x8xf32, #tpu.memory_space<vmem>>, vector<1x1x4x8xf32>
    %39 = vector.shape_cast %38 : vector<1x1x4x8xf32> to vector<4x8xf32>
    %cst_55 = arith.constant dense<0.000000e+00> : vector<64x8xf32>
    %40 = tpu.matmul %37, %39, %cst_55 {dimension_numbers = #tpu.dot_dimension_numbers<[1], [0], [0], [1], [0, 0, 1, 1], [], []>} : vector<64x4xf32>, vector<4x8xf32>, vector<64x8xf32> -> vector<64x8xf32>
    %41 = arith.addf %35, %40 : vector<64x8xf32>
    %c2_56 = arith.constant 2 : index
    %c0_57 = arith.constant 0 : index
    %c0_58 = arith.constant 0 : index
    %42 = vector.load %arg7[%c2_56, %c0_57, %c0_58] : memref<10x10x4xf32, #tpu.memory_space<vmem>>, vector<8x8x4xf32>
    %43 = vector.shape_cast %42 : vector<8x8x4xf32> to vector<64x4xf32>
    %c2_59 = arith.constant 2 : index
    %c0_60 = arith.constant 0 : index
    %c0_61 = arith.constant 0 : index
    %c0_62 = arith.constant 0 : index
    %44 = vector.load %arg4[%c2_59, %c0_60, %c0_61, %c0_62] : memref<3x3x4x8xf32, #tpu.memory_space<vmem>>, vector<1x1x4x8xf32>
    %45 = vector.shape_cast %44 : vector<1x1x4x8xf32> to vector<4x8xf32>
    %cst_63 = arith.constant dense<0.000000e+00> : vector<64x8xf32>
    %46 = tpu.matmul %43, %45, %cst_63 {dimension_numbers = #tpu.dot_dimension_numbers<[1], [0], [0], [1], [0, 0, 1, 1], [], []>} : vector<64x4xf32>, vector<4x8xf32>, vector<64x8xf32> -> vector<64x8xf32>
    %47 = arith.addf %41, %46 : vector<64x8xf32>
    %c2_64 = arith.constant 2 : index
    %c1_65 = arith.constant 1 : index
    %c0_66 = arith.constant 0 : index
    %48 = vector.load %arg7[%c2_64, %c1_65, %c0_66] : memref<10x10x4xf32, #tpu.memory_space<vmem>>, vector<8x8x4xf32>
    %49 = vector.shape_cast %48 : vector<8x8x4xf32> to vector<64x4xf32>
    %c2_67 = arith.constant 2 : index
    %c1_68 = arith.constant 1 : index
    %c0_69 = arith.constant 0 : index
    %c0_70 = arith.constant 0 : index
    %50 = vector.load %arg4[%c2_67, %c1_68, %c0_69, %c0_70] : memref<3x3x4x8xf32, #tpu.memory_space<vmem>>, vector<1x1x4x8xf32>
    %51 = vector.shape_cast %50 : vector<1x1x4x8xf32> to vector<4x8xf32>
    %cst_71 = arith.constant dense<0.000000e+00> : vector<64x8xf32>
    %52 = tpu.matmul %49, %51, %cst_71 {dimension_numbers = #tpu.dot_dimension_numbers<[1], [0], [0], [1], [0, 0, 1, 1], [], []>} : vector<64x4xf32>, vector<4x8xf32>, vector<64x8xf32> -> vector<64x8xf32>
    %53 = arith.addf %47, %52 : vector<64x8xf32>
    %c2_72 = arith.constant 2 : index
    %c2_73 = arith.constant 2 : index
    %c0_74 = arith.constant 0 : index
    %54 = vector.load %arg7[%c2_72, %c2_73, %c0_74] : memref<10x10x4xf32, #tpu.memory_space<vmem>>, vector<8x8x4xf32>
    %55 = vector.shape_cast %54 : vector<8x8x4xf32> to vector<64x4xf32>
    %c2_75 = arith.constant 2 : index
    %c2_76 = arith.constant 2 : index
    %c0_77 = arith.constant 0 : index
    %c0_78 = arith.constant 0 : index
    %56 = vector.load %arg4[%c2_75, %c2_76, %c0_77, %c0_78] : memref<3x3x4x8xf32, #tpu.memory_space<vmem>>, vector<1x1x4x8xf32>
    %57 = vector.shape_cast %56 : vector<1x1x4x8xf32> to vector<4x8xf32>
    %cst_79 = arith.constant dense<0.000000e+00> : vector<64x8xf32>
    %58 = tpu.matmul %55, %57, %cst_79 {dimension_numbers = #tpu.dot_dimension_numbers<[1], [0], [0], [1], [0, 0, 1, 1], [], []>} : vector<64x4xf32>, vector<4x8xf32>, vector<64x8xf32> -> vector<64x8xf32>
    %59 = arith.addf %53, %58 : vector<64x8xf32>
    %c0_80 = arith.constant 0 : index
    %c0_81 = arith.constant 0 : index
    %c0_82 = arith.constant 0 : index
    %60 = vector.load %arg5[%c0_80, %c0_81, %c0_82] : memref<1x64x8xf32, #tpu.memory_space<vmem>>, vector<1x64x8xf32>
    %61 = vector.shape_cast %60 : vector<1x64x8xf32> to vector<64x8xf32>
    %62 = vector.shape_cast %59 : vector<64x8xf32> to vector<1x64x8xf32>
    tpu.vector_store %arg5[%c0_80, %c0_81, %c0_82], %62 {strides = array<i32>} : memref<1x64x8xf32, #tpu.memory_space<vmem>>, vector<1x64x8xf32>,
    %cst_83 = arith.constant dense<0.000000e+00> : vector<8xf32>
    %63 = vector.multi_reduction <add>, %59, %cst_83 [0] : vector<64x8xf32> to vector<8xf32>
    %64 = vector.shape_cast %63 : vector<8xf32> to vector<1x8xf32>
    %c0_84 = arith.constant 0 : index
    %c0_85 = arith.constant 0 : index
    %c0_86 = arith.constant 0 : index
    %65 = vector.load %arg6[%c0_84, %c0_85, %c0_86] : memref<1x2x8xf32, #tpu.memory_space<vmem>>, vector<1x1x8xf32>
    %66 = vector.shape_cast %65 : vector<1x1x8xf32> to vector<1x8xf32>
    %67 = vector.shape_cast %64 : vector<1x8xf32> to vector<1x1x8xf32>
    tpu.vector_store %arg6[%c0_84, %c0_85, %c0_86], %67 {strides = array<i32>} : memref<1x2x8xf32, #tpu.memory_space<vmem>>, vector<1x1x8xf32>,
    %68 = arith.mulf %59, %59 : vector<64x8xf32>
    %cst_87 = arith.constant dense<0.000000e+00> : vector<8xf32>
    %69 = vector.multi_reduction <add>, %68, %cst_87 [0] : vector<64x8xf32> to vector<8xf32>
    %70 = vector.shape_cast %69 : vector<8xf32> to vector<1x8xf32>
    %c0_88 = arith.constant 0 : index
    %c1_89 = arith.constant 1 : index
    %c0_90 = arith.constant 0 : index
    %71 = vector.load %arg6[%c0_88, %c1_89, %c0_90] : memref<1x2x8xf32, #tpu.memory_space<vmem>>, vector<1x1x8xf32>
    %72 = vector.shape_cast %71 : vector<1x1x8xf32> to vector<1x8xf32>
    %73 = vector.shape_cast %70 : vector<1x8xf32> to vector<1x1x8xf32>
    tpu.vector_store %arg6[%c0_88, %c1_89, %c0_90], %73 {strides = array<i32>} : memref<1x2x8xf32, #tpu.memory_space<vmem>>, vector<1x1x8xf32>,
    return
  }
  func.func @transform_0(%arg0: i32) -> (i32, i32, i32, i32) {
    %c0_i32 = arith.constant 0 : i32
    %c0_i32_0 = arith.constant 0 : i32
    %c0_i32_1 = arith.constant 0 : i32
    %c0_i32_2 = arith.constant 0 : i32
    return %arg0, %c0_i32, %c0_i32_0, %c0_i32_1 : i32, i32, i32, i32
  }
  func.func @transform_1(%arg0: i32) -> (i32, i32) {
    %c0_i32 = arith.constant 0 : i32
    %c0_i32_0 = arith.constant 0 : i32
    %c0_i32_1 = arith.constant 0 : i32
    return %c0_i32, %c0_i32_0 : i32, i32
  }
  func.func @transform_2(%arg0: i32) -> (i32, i32) {
    %c0_i32 = arith.constant 0 : i32
    %c0_i32_0 = arith.constant 0 : i32
    %c0_i32_1 = arith.constant 0 : i32
    return %c0_i32, %c0_i32_0 : i32, i32
  }
  func.func @transform_3(%arg0: i32) -> (i32, i32, i32, i32) {
    %c0_i32 = arith.constant 0 : i32
    %c0_i32_0 = arith.constant 0 : i32
    %c0_i32_1 = arith.constant 0 : i32
    %c0_i32_2 = arith.constant 0 : i32
    %c0_i32_3 = arith.constant 0 : i32
    return %c0_i32, %c0_i32_0, %c0_i32_1, %c0_i32_2 : i32, i32, i32, i32
  }
  func.func @transform_4(%arg0: i32) -> (i32, i32, i32) {
    %c0_i32 = arith.constant 0 : i32
    %c0_i32_0 = arith.constant 0 : i32
    %c0_i32_1 = arith.constant 0 : i32
    return %arg0, %c0_i32, %c0_i32_0 : i32, i32, i32
  }
  func.func @transform_5(%arg0: i32) -> (i32, i32, i32) {
    %c0_i32 = arith.constant 0 : i32
    %c0_i32_0 = arith.constant 0 : i32
    %c0_i32_1 = arith.constant 0 : i32
    return %arg0, %c0_i32, %c0_i32_0 : i32, i32, i32
  }
}

module attributes {stable_mosaic.version = 11 : i64} {
  func.func @_conv_stage_kernel(%arg0: i32, %arg1: memref<1x8x8x8xf32, #tpu.memory_space<vmem>>, %arg2: memref<1x8xf32, #tpu.memory_space<vmem>>, %arg3: memref<1x8xf32, #tpu.memory_space<vmem>>, %arg4: memref<3x3x8x8xf32, #tpu.memory_space<vmem>>, %arg5: memref<1x64x8xf32, #tpu.memory_space<vmem>>, %arg6: memref<1x2x8xf32, #tpu.memory_space<vmem>>, %arg7: memref<10x10x8xf32, #tpu.memory_space<vmem>>) attributes {dimension_semantics = [#tpu.dimension_semantics<parallel>], iteration_bounds = array<i64: 2>, scalar_prefetch = 0 : i64, scratch_operands = 1 : i64, tpu.core_type = #tpu.core_type<tc>, window_params = [{transform_indices = @transform_0, window_bounds = array<i64: 1, 8, 8, 8>}, {pipeline_mode = #tpu.pipeline_mode<synchronous>, transform_indices = @transform_1, window_bounds = array<i64: 1, 8>}, {pipeline_mode = #tpu.pipeline_mode<synchronous>, transform_indices = @transform_2, window_bounds = array<i64: 1, 8>}, {pipeline_mode = #tpu.pipeline_mode<synchronous>, transform_indices = @transform_3, window_bounds = array<i64: 3, 3, 8, 8>}, {transform_indices = @transform_4, window_bounds = array<i64: 1, 64, 8>}, {transform_indices = @transform_5, window_bounds = array<i64: 1, 2, 8>}]} {
    %c0 = arith.constant 0 : index
    %c0_0 = arith.constant 0 : index
    %c0_1 = arith.constant 0 : index
    %c0_2 = arith.constant 0 : index
    %0 = vector.load %arg1[%c0, %c0_0, %c0_1, %c0_2] : memref<1x8x8x8xf32, #tpu.memory_space<vmem>>, vector<1x8x8x8xf32>
    %1 = vector.shape_cast %0 : vector<1x8x8x8xf32> to vector<8x8x8xf32>
    %c0_3 = arith.constant 0 : index
    %c0_4 = arith.constant 0 : index
    %2 = vector.load %arg2[%c0_3, %c0_4] : memref<1x8xf32, #tpu.memory_space<vmem>>, vector<1x8xf32>
    %3 = vector.shape_cast %2 : vector<1x8xf32> to vector<1x1x8xf32>
    %4 = vector.broadcast %3 : vector<1x1x8xf32> to vector<8x8x8xf32>
    %5 = arith.mulf %1, %4 : vector<8x8x8xf32>
    %c0_5 = arith.constant 0 : index
    %c0_6 = arith.constant 0 : index
    %6 = vector.load %arg3[%c0_5, %c0_6] : memref<1x8xf32, #tpu.memory_space<vmem>>, vector<1x8xf32>
    %7 = vector.shape_cast %6 : vector<1x8xf32> to vector<1x1x8xf32>
    %8 = vector.broadcast %7 : vector<1x1x8xf32> to vector<8x8x8xf32>
    %9 = arith.addf %5, %8 : vector<8x8x8xf32>
    %cst = arith.constant 0.000000e+00 : f32
    %10 = vector.broadcast %cst : f32 to vector<8x8x8xf32>
    %11 = arith.maximumf %9, %10 : vector<8x8x8xf32>
    %cst_7 = arith.constant 0.000000e+00 : f32
    %12 = vector.broadcast %cst_7 : f32 to vector<10x10x8xf32>
    %c0_8 = arith.constant 0 : index
    %c0_9 = arith.constant 0 : index
    %c0_10 = arith.constant 0 : index
    %13 = vector.load %arg7[%c0_8, %c0_9, %c0_10] : memref<10x10x8xf32, #tpu.memory_space<vmem>>, vector<10x10x8xf32>
    tpu.vector_store %arg7[%c0_8, %c0_9, %c0_10], %12 {strides = array<i32>} : memref<10x10x8xf32, #tpu.memory_space<vmem>>, vector<10x10x8xf32>,
    %c1 = arith.constant 1 : index
    %c1_11 = arith.constant 1 : index
    %c0_12 = arith.constant 0 : index
    %14 = vector.load %arg7[%c1, %c1_11, %c0_12] : memref<10x10x8xf32, #tpu.memory_space<vmem>>, vector<8x8x8xf32>
    tpu.vector_store %arg7[%c1, %c1_11, %c0_12], %11 {strides = array<i32>} : memref<10x10x8xf32, #tpu.memory_space<vmem>>, vector<8x8x8xf32>,
    %cst_13 = arith.constant 0.000000e+00 : f32
    %15 = vector.broadcast %cst_13 : f32 to vector<64x8xf32>
    %c0_14 = arith.constant 0 : index
    %c0_15 = arith.constant 0 : index
    %c0_16 = arith.constant 0 : index
    %16 = vector.load %arg7[%c0_14, %c0_15, %c0_16] : memref<10x10x8xf32, #tpu.memory_space<vmem>>, vector<8x8x8xf32>
    %17 = vector.shape_cast %16 : vector<8x8x8xf32> to vector<64x8xf32>
    %c0_17 = arith.constant 0 : index
    %c0_18 = arith.constant 0 : index
    %c0_19 = arith.constant 0 : index
    %c0_20 = arith.constant 0 : index
    %18 = vector.load %arg4[%c0_17, %c0_18, %c0_19, %c0_20] : memref<3x3x8x8xf32, #tpu.memory_space<vmem>>, vector<1x1x8x8xf32>
    %19 = vector.shape_cast %18 : vector<1x1x8x8xf32> to vector<8x8xf32>
    %cst_21 = arith.constant dense<0.000000e+00> : vector<64x8xf32>
    %20 = tpu.matmul %17, %19, %cst_21 {dimension_numbers = #tpu.dot_dimension_numbers<[1], [0], [0], [1], [0, 0, 1, 1], [], []>} : vector<64x8xf32>, vector<8x8xf32>, vector<64x8xf32> -> vector<64x8xf32>
    %21 = arith.addf %15, %20 : vector<64x8xf32>
    %c0_22 = arith.constant 0 : index
    %c1_23 = arith.constant 1 : index
    %c0_24 = arith.constant 0 : index
    %22 = vector.load %arg7[%c0_22, %c1_23, %c0_24] : memref<10x10x8xf32, #tpu.memory_space<vmem>>, vector<8x8x8xf32>
    %23 = vector.shape_cast %22 : vector<8x8x8xf32> to vector<64x8xf32>
    %c0_25 = arith.constant 0 : index
    %c1_26 = arith.constant 1 : index
    %c0_27 = arith.constant 0 : index
    %c0_28 = arith.constant 0 : index
    %24 = vector.load %arg4[%c0_25, %c1_26, %c0_27, %c0_28] : memref<3x3x8x8xf32, #tpu.memory_space<vmem>>, vector<1x1x8x8xf32>
    %25 = vector.shape_cast %24 : vector<1x1x8x8xf32> to vector<8x8xf32>
    %cst_29 = arith.constant dense<0.000000e+00> : vector<64x8xf32>
    %26 = tpu.matmul %23, %25, %cst_29 {dimension_numbers = #tpu.dot_dimension_numbers<[1], [0], [0], [1], [0, 0, 1, 1], [], []>} : vector<64x8xf32>, vector<8x8xf32>, vector<64x8xf32> -> vector<64x8xf32>
    %27 = arith.addf %21, %26 : vector<64x8xf32>
    %c0_30 = arith.constant 0 : index
    %c2 = arith.constant 2 : index
    %c0_31 = arith.constant 0 : index
    %28 = vector.load %arg7[%c0_30, %c2, %c0_31] : memref<10x10x8xf32, #tpu.memory_space<vmem>>, vector<8x8x8xf32>
    %29 = vector.shape_cast %28 : vector<8x8x8xf32> to vector<64x8xf32>
    %c0_32 = arith.constant 0 : index
    %c2_33 = arith.constant 2 : index
    %c0_34 = arith.constant 0 : index
    %c0_35 = arith.constant 0 : index
    %30 = vector.load %arg4[%c0_32, %c2_33, %c0_34, %c0_35] : memref<3x3x8x8xf32, #tpu.memory_space<vmem>>, vector<1x1x8x8xf32>
    %31 = vector.shape_cast %30 : vector<1x1x8x8xf32> to vector<8x8xf32>
    %cst_36 = arith.constant dense<0.000000e+00> : vector<64x8xf32>
    %32 = tpu.matmul %29, %31, %cst_36 {dimension_numbers = #tpu.dot_dimension_numbers<[1], [0], [0], [1], [0, 0, 1, 1], [], []>} : vector<64x8xf32>, vector<8x8xf32>, vector<64x8xf32> -> vector<64x8xf32>
    %33 = arith.addf %27, %32 : vector<64x8xf32>
    %c1_37 = arith.constant 1 : index
    %c0_38 = arith.constant 0 : index
    %c0_39 = arith.constant 0 : index
    %34 = vector.load %arg7[%c1_37, %c0_38, %c0_39] : memref<10x10x8xf32, #tpu.memory_space<vmem>>, vector<8x8x8xf32>
    %35 = vector.shape_cast %34 : vector<8x8x8xf32> to vector<64x8xf32>
    %c1_40 = arith.constant 1 : index
    %c0_41 = arith.constant 0 : index
    %c0_42 = arith.constant 0 : index
    %c0_43 = arith.constant 0 : index
    %36 = vector.load %arg4[%c1_40, %c0_41, %c0_42, %c0_43] : memref<3x3x8x8xf32, #tpu.memory_space<vmem>>, vector<1x1x8x8xf32>
    %37 = vector.shape_cast %36 : vector<1x1x8x8xf32> to vector<8x8xf32>
    %cst_44 = arith.constant dense<0.000000e+00> : vector<64x8xf32>
    %38 = tpu.matmul %35, %37, %cst_44 {dimension_numbers = #tpu.dot_dimension_numbers<[1], [0], [0], [1], [0, 0, 1, 1], [], []>} : vector<64x8xf32>, vector<8x8xf32>, vector<64x8xf32> -> vector<64x8xf32>
    %39 = arith.addf %33, %38 : vector<64x8xf32>
    %c1_45 = arith.constant 1 : index
    %c1_46 = arith.constant 1 : index
    %c0_47 = arith.constant 0 : index
    %40 = vector.load %arg7[%c1_45, %c1_46, %c0_47] : memref<10x10x8xf32, #tpu.memory_space<vmem>>, vector<8x8x8xf32>
    %41 = vector.shape_cast %40 : vector<8x8x8xf32> to vector<64x8xf32>
    %c1_48 = arith.constant 1 : index
    %c1_49 = arith.constant 1 : index
    %c0_50 = arith.constant 0 : index
    %c0_51 = arith.constant 0 : index
    %42 = vector.load %arg4[%c1_48, %c1_49, %c0_50, %c0_51] : memref<3x3x8x8xf32, #tpu.memory_space<vmem>>, vector<1x1x8x8xf32>
    %43 = vector.shape_cast %42 : vector<1x1x8x8xf32> to vector<8x8xf32>
    %cst_52 = arith.constant dense<0.000000e+00> : vector<64x8xf32>
    %44 = tpu.matmul %41, %43, %cst_52 {dimension_numbers = #tpu.dot_dimension_numbers<[1], [0], [0], [1], [0, 0, 1, 1], [], []>} : vector<64x8xf32>, vector<8x8xf32>, vector<64x8xf32> -> vector<64x8xf32>
    %45 = arith.addf %39, %44 : vector<64x8xf32>
    %c1_53 = arith.constant 1 : index
    %c2_54 = arith.constant 2 : index
    %c0_55 = arith.constant 0 : index
    %46 = vector.load %arg7[%c1_53, %c2_54, %c0_55] : memref<10x10x8xf32, #tpu.memory_space<vmem>>, vector<8x8x8xf32>
    %47 = vector.shape_cast %46 : vector<8x8x8xf32> to vector<64x8xf32>
    %c1_56 = arith.constant 1 : index
    %c2_57 = arith.constant 2 : index
    %c0_58 = arith.constant 0 : index
    %c0_59 = arith.constant 0 : index
    %48 = vector.load %arg4[%c1_56, %c2_57, %c0_58, %c0_59] : memref<3x3x8x8xf32, #tpu.memory_space<vmem>>, vector<1x1x8x8xf32>
    %49 = vector.shape_cast %48 : vector<1x1x8x8xf32> to vector<8x8xf32>
    %cst_60 = arith.constant dense<0.000000e+00> : vector<64x8xf32>
    %50 = tpu.matmul %47, %49, %cst_60 {dimension_numbers = #tpu.dot_dimension_numbers<[1], [0], [0], [1], [0, 0, 1, 1], [], []>} : vector<64x8xf32>, vector<8x8xf32>, vector<64x8xf32> -> vector<64x8xf32>
    %51 = arith.addf %45, %50 : vector<64x8xf32>
    %c2_61 = arith.constant 2 : index
    %c0_62 = arith.constant 0 : index
    %c0_63 = arith.constant 0 : index
    %52 = vector.load %arg7[%c2_61, %c0_62, %c0_63] : memref<10x10x8xf32, #tpu.memory_space<vmem>>, vector<8x8x8xf32>
    %53 = vector.shape_cast %52 : vector<8x8x8xf32> to vector<64x8xf32>
    %c2_64 = arith.constant 2 : index
    %c0_65 = arith.constant 0 : index
    %c0_66 = arith.constant 0 : index
    %c0_67 = arith.constant 0 : index
    %54 = vector.load %arg4[%c2_64, %c0_65, %c0_66, %c0_67] : memref<3x3x8x8xf32, #tpu.memory_space<vmem>>, vector<1x1x8x8xf32>
    %55 = vector.shape_cast %54 : vector<1x1x8x8xf32> to vector<8x8xf32>
    %cst_68 = arith.constant dense<0.000000e+00> : vector<64x8xf32>
    %56 = tpu.matmul %53, %55, %cst_68 {dimension_numbers = #tpu.dot_dimension_numbers<[1], [0], [0], [1], [0, 0, 1, 1], [], []>} : vector<64x8xf32>, vector<8x8xf32>, vector<64x8xf32> -> vector<64x8xf32>
    %57 = arith.addf %51, %56 : vector<64x8xf32>
    %c2_69 = arith.constant 2 : index
    %c1_70 = arith.constant 1 : index
    %c0_71 = arith.constant 0 : index
    %58 = vector.load %arg7[%c2_69, %c1_70, %c0_71] : memref<10x10x8xf32, #tpu.memory_space<vmem>>, vector<8x8x8xf32>
    %59 = vector.shape_cast %58 : vector<8x8x8xf32> to vector<64x8xf32>
    %c2_72 = arith.constant 2 : index
    %c1_73 = arith.constant 1 : index
    %c0_74 = arith.constant 0 : index
    %c0_75 = arith.constant 0 : index
    %60 = vector.load %arg4[%c2_72, %c1_73, %c0_74, %c0_75] : memref<3x3x8x8xf32, #tpu.memory_space<vmem>>, vector<1x1x8x8xf32>
    %61 = vector.shape_cast %60 : vector<1x1x8x8xf32> to vector<8x8xf32>
    %cst_76 = arith.constant dense<0.000000e+00> : vector<64x8xf32>
    %62 = tpu.matmul %59, %61, %cst_76 {dimension_numbers = #tpu.dot_dimension_numbers<[1], [0], [0], [1], [0, 0, 1, 1], [], []>} : vector<64x8xf32>, vector<8x8xf32>, vector<64x8xf32> -> vector<64x8xf32>
    %63 = arith.addf %57, %62 : vector<64x8xf32>
    %c2_77 = arith.constant 2 : index
    %c2_78 = arith.constant 2 : index
    %c0_79 = arith.constant 0 : index
    %64 = vector.load %arg7[%c2_77, %c2_78, %c0_79] : memref<10x10x8xf32, #tpu.memory_space<vmem>>, vector<8x8x8xf32>
    %65 = vector.shape_cast %64 : vector<8x8x8xf32> to vector<64x8xf32>
    %c2_80 = arith.constant 2 : index
    %c2_81 = arith.constant 2 : index
    %c0_82 = arith.constant 0 : index
    %c0_83 = arith.constant 0 : index
    %66 = vector.load %arg4[%c2_80, %c2_81, %c0_82, %c0_83] : memref<3x3x8x8xf32, #tpu.memory_space<vmem>>, vector<1x1x8x8xf32>
    %67 = vector.shape_cast %66 : vector<1x1x8x8xf32> to vector<8x8xf32>
    %cst_84 = arith.constant dense<0.000000e+00> : vector<64x8xf32>
    %68 = tpu.matmul %65, %67, %cst_84 {dimension_numbers = #tpu.dot_dimension_numbers<[1], [0], [0], [1], [0, 0, 1, 1], [], []>} : vector<64x8xf32>, vector<8x8xf32>, vector<64x8xf32> -> vector<64x8xf32>
    %69 = arith.addf %63, %68 : vector<64x8xf32>
    %c0_85 = arith.constant 0 : index
    %c0_86 = arith.constant 0 : index
    %c0_87 = arith.constant 0 : index
    %70 = vector.load %arg5[%c0_85, %c0_86, %c0_87] : memref<1x64x8xf32, #tpu.memory_space<vmem>>, vector<1x64x8xf32>
    %71 = vector.shape_cast %70 : vector<1x64x8xf32> to vector<64x8xf32>
    %72 = vector.shape_cast %69 : vector<64x8xf32> to vector<1x64x8xf32>
    tpu.vector_store %arg5[%c0_85, %c0_86, %c0_87], %72 {strides = array<i32>} : memref<1x64x8xf32, #tpu.memory_space<vmem>>, vector<1x64x8xf32>,
    %cst_88 = arith.constant dense<0.000000e+00> : vector<8xf32>
    %73 = vector.multi_reduction <add>, %69, %cst_88 [0] : vector<64x8xf32> to vector<8xf32>
    %74 = vector.shape_cast %73 : vector<8xf32> to vector<1x8xf32>
    %c0_89 = arith.constant 0 : index
    %c0_90 = arith.constant 0 : index
    %c0_91 = arith.constant 0 : index
    %75 = vector.load %arg6[%c0_89, %c0_90, %c0_91] : memref<1x2x8xf32, #tpu.memory_space<vmem>>, vector<1x1x8xf32>
    %76 = vector.shape_cast %75 : vector<1x1x8xf32> to vector<1x8xf32>
    %77 = vector.shape_cast %74 : vector<1x8xf32> to vector<1x1x8xf32>
    tpu.vector_store %arg6[%c0_89, %c0_90, %c0_91], %77 {strides = array<i32>} : memref<1x2x8xf32, #tpu.memory_space<vmem>>, vector<1x1x8xf32>,
    %78 = arith.mulf %69, %69 : vector<64x8xf32>
    %cst_92 = arith.constant dense<0.000000e+00> : vector<8xf32>
    %79 = vector.multi_reduction <add>, %78, %cst_92 [0] : vector<64x8xf32> to vector<8xf32>
    %80 = vector.shape_cast %79 : vector<8xf32> to vector<1x8xf32>
    %c0_93 = arith.constant 0 : index
    %c1_94 = arith.constant 1 : index
    %c0_95 = arith.constant 0 : index
    %81 = vector.load %arg6[%c0_93, %c1_94, %c0_95] : memref<1x2x8xf32, #tpu.memory_space<vmem>>, vector<1x1x8xf32>
    %82 = vector.shape_cast %81 : vector<1x1x8xf32> to vector<1x8xf32>
    %83 = vector.shape_cast %80 : vector<1x8xf32> to vector<1x1x8xf32>
    tpu.vector_store %arg6[%c0_93, %c1_94, %c0_95], %83 {strides = array<i32>} : memref<1x2x8xf32, #tpu.memory_space<vmem>>, vector<1x1x8xf32>,
    return
  }
  func.func @transform_0(%arg0: i32) -> (i32, i32, i32, i32) {
    %c0_i32 = arith.constant 0 : i32
    %c0_i32_0 = arith.constant 0 : i32
    %c0_i32_1 = arith.constant 0 : i32
    %c0_i32_2 = arith.constant 0 : i32
    return %arg0, %c0_i32, %c0_i32_0, %c0_i32_1 : i32, i32, i32, i32
  }
  func.func @transform_1(%arg0: i32) -> (i32, i32) {
    %c0_i32 = arith.constant 0 : i32
    %c0_i32_0 = arith.constant 0 : i32
    %c0_i32_1 = arith.constant 0 : i32
    return %c0_i32, %c0_i32_0 : i32, i32
  }
  func.func @transform_2(%arg0: i32) -> (i32, i32) {
    %c0_i32 = arith.constant 0 : i32
    %c0_i32_0 = arith.constant 0 : i32
    %c0_i32_1 = arith.constant 0 : i32
    return %c0_i32, %c0_i32_0 : i32, i32
  }
  func.func @transform_3(%arg0: i32) -> (i32, i32, i32, i32) {
    %c0_i32 = arith.constant 0 : i32
    %c0_i32_0 = arith.constant 0 : i32
    %c0_i32_1 = arith.constant 0 : i32
    %c0_i32_2 = arith.constant 0 : i32
    %c0_i32_3 = arith.constant 0 : i32
    return %c0_i32, %c0_i32_0, %c0_i32_1, %c0_i32_2 : i32, i32, i32, i32
  }
  func.func @transform_4(%arg0: i32) -> (i32, i32, i32) {
    %c0_i32 = arith.constant 0 : i32
    %c0_i32_0 = arith.constant 0 : i32
    %c0_i32_1 = arith.constant 0 : i32
    return %arg0, %c0_i32, %c0_i32_0 : i32, i32, i32
  }
  func.func @transform_5(%arg0: i32) -> (i32, i32, i32) {
    %c0_i32 = arith.constant 0 : i32
    %c0_i32_0 = arith.constant 0 : i32
    %c0_i32_1 = arith.constant 0 : i32
    return %arg0, %c0_i32, %c0_i32_0 : i32, i32, i32
  }
}

module attributes {stable_mosaic.version = 11 : i64} {
  func.func @_bn_relu_kernel(%arg0: i32, %arg1: memref<16x64xf32, #tpu.memory_space<vmem>>, %arg2: memref<1x64xf32, #tpu.memory_space<vmem>>, %arg3: memref<1x64xf32, #tpu.memory_space<vmem>>, %arg4: memref<16x64xf32, #tpu.memory_space<vmem>>) attributes {dimension_semantics = [#tpu.dimension_semantics<parallel>], iteration_bounds = array<i64: 1>, scalar_prefetch = 0 : i64, scratch_operands = 0 : i64, tpu.core_type = #tpu.core_type<tc>, window_params = [{transform_indices = @transform_0, window_bounds = array<i64: 16, 64>}, {pipeline_mode = #tpu.pipeline_mode<synchronous>, transform_indices = @transform_1, window_bounds = array<i64: 1, 64>}, {pipeline_mode = #tpu.pipeline_mode<synchronous>, transform_indices = @transform_2, window_bounds = array<i64: 1, 64>}, {transform_indices = @transform_3, window_bounds = array<i64: 16, 64>}]} {
    %c0 = arith.constant 0 : index
    %c0_0 = arith.constant 0 : index
    %0 = vector.load %arg1[%c0, %c0_0] : memref<16x64xf32, #tpu.memory_space<vmem>>, vector<16x64xf32>
    %c0_1 = arith.constant 0 : index
    %c0_2 = arith.constant 0 : index
    %1 = vector.load %arg2[%c0_1, %c0_2] : memref<1x64xf32, #tpu.memory_space<vmem>>, vector<1x64xf32>
    %2 = vector.broadcast %1 : vector<1x64xf32> to vector<16x64xf32>
    %3 = arith.mulf %0, %2 : vector<16x64xf32>
    %c0_3 = arith.constant 0 : index
    %c0_4 = arith.constant 0 : index
    %4 = vector.load %arg3[%c0_3, %c0_4] : memref<1x64xf32, #tpu.memory_space<vmem>>, vector<1x64xf32>
    %5 = vector.broadcast %4 : vector<1x64xf32> to vector<16x64xf32>
    %6 = arith.addf %3, %5 : vector<16x64xf32>
    %cst = arith.constant 0.000000e+00 : f32
    %7 = vector.broadcast %cst : f32 to vector<16x64xf32>
    %8 = arith.maximumf %6, %7 : vector<16x64xf32>
    %c0_5 = arith.constant 0 : index
    %c0_6 = arith.constant 0 : index
    %9 = vector.load %arg4[%c0_5, %c0_6] : memref<16x64xf32, #tpu.memory_space<vmem>>, vector<16x64xf32>
    tpu.vector_store %arg4[%c0_5, %c0_6], %8 {strides = array<i32>} : memref<16x64xf32, #tpu.memory_space<vmem>>, vector<16x64xf32>,
    return
  }
  func.func @transform_0(%arg0: i32) -> (i32, i32) {
    %c0_i32 = arith.constant 0 : i32
    %c0_i32_0 = arith.constant 0 : i32
    return %arg0, %c0_i32 : i32, i32
  }
  func.func @transform_1(%arg0: i32) -> (i32, i32) {
    %c0_i32 = arith.constant 0 : i32
    %c0_i32_0 = arith.constant 0 : i32
    %c0_i32_1 = arith.constant 0 : i32
    return %c0_i32, %c0_i32_0 : i32, i32
  }
  func.func @transform_2(%arg0: i32) -> (i32, i32) {
    %c0_i32 = arith.constant 0 : i32
    %c0_i32_0 = arith.constant 0 : i32
    %c0_i32_1 = arith.constant 0 : i32
    return %c0_i32, %c0_i32_0 : i32, i32
  }
  func.func @transform_3(%arg0: i32) -> (i32, i32) {
    %c0_i32 = arith.constant 0 : i32
    %c0_i32_0 = arith.constant 0 : i32
    return %arg0, %c0_i32 : i32, i32
  }
}

</mosaic_0001>

<llo_original>
// kernel: downscale.7
$region0: #{downscale.7}
  #allocation0 [shape = 'u32[]', space=smem, size = 0x4, offset = 0x4, fixed_abs, tag = 'smem constant byte address 0x4 - core index']
  #allocation1 [shape = 'u32[144,128]{1,0:T(1,128)}', space=vmem, size = 0x12000, scoped, tag = 'internal scratch']
  %s0 = inlined_call_operand.vmem [shape: f32[16,64], index: 0, kind: input, shape index: {}]
  %s1 = inlined_call_operand.vmem [shape: f32[1,64], index: 1, kind: input, shape index: {}]
  %s2 = inlined_call_operand.vmem [shape: f32[1,64], index: 2, kind: input, shape index: {}]
  %s3 = inlined_call_operand.vmem [shape: f32[16,64], index: 3, kind: output, shape index: {}]
  %s4 = sld [smem:[#allocation0]]
  $region22: #{downscale.7} parent=0
    _
  %s6 = ssub.s32 1, %s4
  %s7 = scalar_select 0, %s6, %s4
  // Predicated region
  $region2: #{downscale.7} parent=0 // pred_check
    _
  $region3: #{downscale.7} parent=0 // pred_check_branch
    %9 = sbr.rel (0) target = $region5
  $region4: #{downscale.7} parent=0 // pred_region
    _
  $region5: #{downscale.7} parent=0 // pred_fallthru
    _
  // Predicated region
  $region6: #{downscale.7} parent=0 // pred_check
    _
  $region7: #{downscale.7} parent=0 // pred_check_branch
    %11 = sbr.rel (0) target = $region9
  $region8: #{downscale.7} parent=0 // pred_region
    _
  $region9: #{downscale.7} parent=0 // pred_fallthru
    _
  // Predicated region
  $region10: #{downscale.7} parent=0 // pred_check
    _
  $region11: #{downscale.7} parent=0 // pred_check_branch
    %13 = sbr.rel (0) target = $region13
  $region12: #{downscale.7} parent=0 // pred_region
    _
  $region13: #{downscale.7} parent=0 // pred_fallthru
    _
  %v14 = vld [vmem:[%s0] sm:$0xff]
  %v15 = vld [vmem:[%s0 + $0x8] sm:$0xff]
  %v16 = vld [vmem:[%s1] sm:$0x1]
  %v18 = vlaneseq
  %v19 = vshrl.u32 %v18, 7
  %v20 = vsub.s32 0, %v19
  %v21 = vrot.slane %v16, %v20
  %v23 = vmul.f32 %v14, %v21
  %v24 = vmul.f32 %v15, %v21
  %v25 = vld [vmem:[%s2] sm:$0x1]
  %v27 = vlaneseq
  %v28 = vshrl.u32 %v27, 7
  %v29 = vsub.s32 0, %v28
  %v30 = vrot.slane %v25, %v29
  %v32 = vadd.f32 %v23, %v30
  %v33 = vadd.f32 %v24, %v30
  %v34 = vmax.f32 %v32, 0.0
  %v35 = vmax.f32 %v33, 0.0
  %vm36 = vcmask 523264
  %37 = vst.msk [vmem:[%s3] sm:$0xff] %vm36, %v34
  %38 = vst.msk [vmem:[%s3 + $0x8] sm:$0xff] %vm36, %v35
  // Predicated region
  $region14: #{downscale.7} parent=0 // pred_check
    _
  $region15: #{downscale.7} parent=0 // pred_check_branch
    %40 = sbr.rel (0) target = $region17
  $region16: #{downscale.7} parent=0 // pred_region
    _
  $region17: #{downscale.7} parent=0 // pred_fallthru
    _
  // Predicated region
  $region18: #{downscale.7} parent=0 // pred_check
    _
  $region19: #{downscale.7} parent=0 // pred_check_branch
    %42 = sbr.rel (0) target = $region21
  $region20: #{downscale.7} parent=0 // pred_region
    _
  $region21: #{downscale.7} parent=0 // pred_fallthru
    _

// kernel: downscale.5
$region0: #{downscale.5}
  #allocation0 [shape = 'u32[]', space=smem, size = 0x4, offset = 0x4, fixed_abs, tag = 'smem constant byte address 0x4 - core index']
  #allocation1 [shape = 'u32[144,128]{1,0:T(1,128)}', space=vmem, size = 0x12000, scoped, tag = 'internal scratch']
  #allocation2 [shape = 'f32[10,10,4]{2,1,0:T(8,128)}', space=vmem, size = 0x14000, scoped, tag = 'scratch operand']
  %s0 = inlined_call_operand.vmem [shape: f32[2,8,8,4], index: 0, kind: input, shape index: {}]
  %s1 = inlined_call_operand.vmem [shape: f32[1,4], index: 1, kind: input, shape index: {}, may-alias: {1,2}]
  %s2 = inlined_call_operand.vmem [shape: f32[1,4], index: 2, kind: input, shape index: {}, may-alias: {1,2}]
  %s3 = inlined_call_operand.vmem [shape: f32[3,3,4,8], index: 3, kind: input, shape index: {}]
  %s4 = inlined_call_operand.vmem [shape: f32[2,64,8], index: 4, kind: output, shape index: {0}]
  %s5 = inlined_call_operand.vmem [shape: f32[2,2,8], index: 5, kind: output, shape index: {1}]
  %6 = xla_tuple %s4, %s5
  %s7 = sld [smem:[#allocation0]]
  $region57: #{downscale.5} parent=0
    _
  %s9 = ssub.s32 1, %s7
  %s10 = scalar_select 0, %s9, %s7
  loop: start=0, step=1, limit=4
  $region2: #{downscale.5} parent=0 // loop_pre_header
    _
  $region3: #{downscale.5} parent=0 // loop_header
    %s12 = sphi 0, %s16
    %p13 = scmp.ge.s32.totalorder %s12, 4
    %s22 = sphi 0, %s24
    %s25 = sphi 0, %s22
    %s26 = sphi 0, %s25
    %s42 = sphi 0, %s26
    %s46 = sphi 0, %s46
    %s48 = sphi 0, %s46
    %s49 = sphi 0, %s48
    %s63 = sphi 0, %s49
    %s67 = sphi 0, %s67
    %s69 = sphi 0, %s67
    %s70 = sphi 0, %s69
    %s84 = sphi 0, %s70
    %s88 = sphi 0, %s88
    %s90 = sphi 0, %s88
    %s91 = sphi 0, %s90
    %s105 = sphi 0, %s91
    %s111 = sphi 0, %s113
    %s114 = sphi 0, %s111
    %s115 = sphi 0, %s114
    %s131 = sphi 0, %s115
    %s137 = sphi 0, %s139
    %s140 = sphi 0, %s137
    %s141 = sphi 0, %s140
    %s157 = sphi 0, %s141
  $region4: #{downscale.5} parent=0 // loop_header_branch
    %15 = sbr.rel (%p13) target = $region8
  $region5: #{downscale.5} parent=0 // loop_body
    %s17 = ssub.s32 %s12, 1
    %s18 = ssub.s32 %s12, 2
    %s19 = sadd.s32 %s12, 1
    %s20 = ssub.s32 %s12, %s19
    %p21 = scmp.eq.s32.totalorder %s20, 0
    %s23 = sadd.s32 %s22, 1
    %s24 = scalar_select %p21, %s22, %s23
    %p27 = pneg %p21
    %p28 = scmp.eq.s32.totalorder %s12, 1
    %p29 = por %p27, %p28
    %p30 = scmp.ne.s32.totalorder %s22, %s25
    %p31 = scmp.eq.s32.totalorder %s12, 0
    %p32 = por %p30, %p31
    %p33 = scmp.ne.s32.totalorder %s22, %s25
    %p34 = scmp.eq.s32.totalorder %s17, 1
    %p35 = por %p33, %p34
    %p36 = scmp.ne.s32.totalorder %s25, %s26
    %p37 = scmp.eq.s32.totalorder %s17, 0
    %p38 = por %p36, %p37
    %p39 = scmp.ne.s32.totalorder %s25, %s26
    %p40 = scmp.eq.s32.totalorder %s18, 1
    %p41 = por %p39, %p40
    %p43 = scmp.ne.s32.totalorder %s26, %s42
    %p44 = scmp.eq.s32.totalorder %s18, 0
    %p45 = por %p43, %p44
    %s47 = sadd.s32 %s46, 1
    %p50 = scmp.eq.s32.totalorder %s12, 1
    %p51 = scmp.ne.s32.totalorder %s46, %s48
    %p52 = scmp.eq.s32.totalorder %s12, 0
    %p53 = por %p51, %p52
    %p54 = scmp.ne.s32.totalorder %s46, %s48
    %p55 = scmp.eq.s32.totalorder %s17, 1
    %p56 = por %p54, %p55
    %p57 = scmp.ne.s32.totalorder %s48, %s49
    %p58 = scmp.eq.s32.totalorder %s17, 0
    %p59 = por %p57, %p58
    %p60 = scmp.ne.s32.totalorder %s48, %s49
    %p61 = scmp.eq.s32.totalorder %s18, 1
    %p62 = por %p60, %p61
    %p64 = scmp.ne.s32.totalorder %s49, %s63
    %p65 = scmp.eq.s32.totalorder %s18, 0
    %p66 = por %p64, %p65
    %s68 = sadd.s32 %s67, 1
    %p71 = scmp.eq.s32.totalorder %s12, 1
    %p72 = scmp.ne.s32.totalorder %s67, %s69
    %p73 = scmp.eq.s32.totalorder %s12, 0
    %p74 = por %p72, %p73
    %p75 = scmp.ne.s32.totalorder %s67, %s69
    %p76 = scmp.eq.s32.totalorder %s17, 1
    %p77 = por %p75, %p76
    %p78 = scmp.ne.s32.totalorder %s69, %s70
    %p79 = scmp.eq.s32.totalorder %s17, 0
    %p80 = por %p78, %p79
    %p81 = scmp.ne.s32.totalorder %s69, %s70
    %p82 = scmp.eq.s32.totalorder %s18, 1
    %p83 = por %p81, %p82
    %p85 = scmp.ne.s32.totalorder %s70, %s84
    %p86 = scmp.eq.s32.totalorder %s18, 0
    %p87 = por %p85, %p86
    %s89 = sadd.s32 %s88, 1
    %p92 = scmp.eq.s32.totalorder %s12, 1
    %p93 = scmp.ne.s32.totalorder %s88, %s90
    %p94 = scmp.eq.s32.totalorder %s12, 0
    %p95 = por %p93, %p94
    %p96 = scmp.ne.s32.totalorder %s88, %s90
    %p97 = scmp.eq.s32.totalorder %s17, 1
    %p98 = por %p96, %p97
    %p99 = scmp.ne.s32.totalorder %s90, %s91
    %p100 = scmp.eq.s32.totalorder %s17, 0
    %p101 = por %p99, %p100
    %p102 = scmp.ne.s32.totalorder %s90, %s91
    %p103 = scmp.eq.s32.totalorder %s18, 1
    %p104 = por %p102, %p103
    %p106 = scmp.ne.s32.totalorder %s91, %s105
    %p107 = scmp.eq.s32.totalorder %s18, 0
    %p108 = por %p106, %p107
    %s109 = ssub.s32 %s12, %s19
    %p110 = scmp.eq.s32.totalorder %s109, 0
    %s112 = sadd.s32 %s111, 1
    %s113 = scalar_select %p110, %s111, %s112
    %p116 = pneg %p110
    %p117 = scmp.eq.s32.totalorder %s12, 1
    %p118 = por %p116, %p117
    %p119 = scmp.ne.s32.totalorder %s111, %s114
    %p120 = scmp.eq.s32.totalorder %s12, 0
    %p121 = por %p119, %p120
    %p122 = scmp.ne.s32.totalorder %s111, %s114
    %p123 = scmp.eq.s32.totalorder %s17, 1
    %p124 = por %p122, %p123
    %p125 = scmp.ne.s32.totalorder %s114, %s115
    %p126 = scmp.eq.s32.totalorder %s17, 0
    %p127 = por %p125, %p126
    %p128 = scmp.ne.s32.totalorder %s114, %s115
    %p129 = scmp.eq.s32.totalorder %s18, 1
    %p130 = por %p128, %p129
    %p132 = scmp.ne.s32.totalorder %s115, %s131
    %p133 = scmp.eq.s32.totalorder %s18, 0
    %p134 = por %p132, %p133
    %s135 = ssub.s32 %s12, %s19
    %p136 = scmp.eq.s32.totalorder %s135, 0
    %s138 = sadd.s32 %s137, 1
    %s139 = scalar_select %p136, %s137, %s138
    %p142 = pneg %p136
    %p143 = scmp.eq.s32.totalorder %s12, 1
    %p144 = por %p142, %p143
    %p145 = scmp.ne.s32.totalorder %s137, %s140
    %p146 = scmp.eq.s32.totalorder %s12, 0
    %p147 = por %p145, %p146
    %p148 = scmp.ne.s32.totalorder %s137, %s140
    %p149 = scmp.eq.s32.totalorder %s17, 1
    %p150 = por %p148, %p149
    %p151 = scmp.ne.s32.totalorder %s140, %s141
    %p152 = scmp.eq.s32.totalorder %s17, 0
    %p153 = por %p151, %p152
    %p154 = scmp.ne.s32.totalorder %s140, %s141
    %p155 = scmp.eq.s32.totalorder %s18, 1
    %p156 = por %p154, %p155
    %p158 = scmp.ne.s32.totalorder %s141, %s157
    %p159 = scmp.eq.s32.totalorder %s18, 0
    %p160 = por %p158, %p159
    %p161 = scmp.le.s32.totalorder 1, %s12
    %p162 = scmp.lt.s32.totalorder %s12, 3
    %p163 = pnand %p161, %p162
    %p164 = pneg %p163
    // Predicated region
    $region9: #{downscale.5} parent=5 // pred_check
      _
    $region10: #{downscale.5} parent=5 // pred_check_branch
      %166 = sbr.rel (%p163) target = $region12
    $region11: #{downscale.5} parent=5 // pred_region
      %s167 = ssub.s32 %s12, 1
      // Predicated region
      $region13: #{downscale.5} parent=11 // pred_check
        %p168 = pneg %p59
      $region14: #{downscale.5} parent=11 // pred_check_branch
        %170 = sbr.rel (%p168) target = $region16
      $region15: #{downscale.5} parent=11 // pred_region
        _
      $region16: #{downscale.5} parent=11 // pred_fallthru
        _
      // Predicated region
      $region17: #{downscale.5} parent=11 // pred_check
        %p171 = pneg %p80
      $region18: #{downscale.5} parent=11 // pred_check_branch
        %173 = sbr.rel (%p171) target = $region20
      $region19: #{downscale.5} parent=11 // pred_region
        _
      $region20: #{downscale.5} parent=11 // pred_fallthru
        _
      // Predicated region
      $region21: #{downscale.5} parent=11 // pred_check
        %p174 = pneg %p101
      $region22: #{downscale.5} parent=11 // pred_check_branch
        %176 = sbr.rel (%p174) target = $region24
      $region23: #{downscale.5} parent=11 // pred_region
        _
      $region24: #{downscale.5} parent=11 // pred_fallthru
        _
    $region12: #{downscale.5} parent=5 // pred_fallthru
      _
    %p177 = scmp.lt.s32.totalorder %s12, 2
    // Predicated region
    $region25: #{downscale.5} parent=5 // pred_check
      %p178 = pneg %p177
    $region26: #{downscale.5} parent=5 // pred_check_branch
      %180 = sbr.rel (%p178) target = $region28
    $region27: #{downscale.5} parent=5 // pred_region
      // Predicated region
      $region29: #{downscale.5} parent=27 // pred_check
        %p181 = pneg %p32
      $region30: #{downscale.5} parent=27 // pred_check_branch
        %183 = sbr.rel (%p181) target = $region32
      $region31: #{downscale.5} parent=27 // pred_region
        %p184 = scmp.lt.s32.totalorder %s12, 1
        %s185 = scalar_select %p184, %s12, 1
        %s186 = smul.addr %s185, 8
        %s187 = smul.addr %s186, 8
        %s188 = scalar_lea.vmem %s0, %s187
      $region32: #{downscale.5} parent=27 // pred_fallthru
        _
    $region28: #{downscale.5} parent=5 // pred_fallthru
      _
    %p189 = scmp.le.s32.totalorder 1, %s12
    %p190 = scmp.lt.s32.totalorder %s12, 3
    %p191 = pnand %p189, %p190
    %p192 = pneg %p191
    // Predicated region
    $region33: #{downscale.5} parent=5 // pred_check
      _
    $region34: #{downscale.5} parent=5 // pred_check_branch
      %194 = sbr.rel (%p191) target = $region36
    $region35: #{downscale.5} parent=5 // pred_region
      %s195 = ssub.s32 %s12, 1
      %p196 = scmp.lt.s32.totalorder %s17, 1
      %s197 = scalar_select %p196, %s17, 1
      %s198 = smul.addr %s197, 8
      %s199 = smul.addr %s198, 8
      %s200 = scalar_lea.vmem %s0, %s199
      %p201 = pneg %p38
      %p202 = pneg %p35
      %p203 = pneg %p59
      %p204 = pneg %p56
      %p205 = pneg %p80
      %p206 = pneg %p77
      %p207 = pneg %p101
      %p208 = pneg %p98
      %p209 = pneg %p127
      %p210 = pneg %p124
      %p211 = scmp.lt.s32.totalorder %s17, 1
      %s212 = scalar_select %p211, %s17, 1
      %s213 = smul.addr %s212, 8
      %s214 = smul.addr %s213, 8
      %s215 = scalar_lea.vmem %s4, %s214
      %p216 = pneg %p153
      %p217 = pneg %p150
      %p218 = scmp.lt.s32.totalorder %s17, 1
      %s219 = scalar_select %p218, %s17, 1
      %s220 = smul.addr %s219, 2
      %s221 = scalar_lea.vmem %s5, %s220
      %p222 = scmp.lt.s32.totalorder %s17, 1
      %s223 = scalar_select %p222, %s17, 1
      %s224 = smul.addr %s223, 8
      %s225 = smul.addr %s224, 8
      %s226 = scalar_lea.vmem %s0, %s225
      %p227 = scmp.lt.s32.totalorder %s17, 1
      %s228 = scalar_select %p227, %s17, 1
      %s229 = smul.addr %s228, 8
      %s230 = smul.addr %s229, 8
      %s231 = scalar_lea.vmem %s4, %s230
      %p232 = scmp.lt.s32.totalorder %s17, 1
      %s233 = scalar_select %p232, %s17, 1
      %s234 = smul.addr %s233, 2
      %s235 = scalar_lea.vmem %s5, %s234
      %v236 = vld [vmem:[%s226] sm:$0xff]
      %v237 = vld [vmem:[%s226 + $0x8] sm:$0xff]
      %v238 = vld [vmem:[%s226 + $0x10] sm:$0xff]
      %v239 = vld [vmem:[%s226 + $0x18] sm:$0xff]
      %v240 = vld [vmem:[%s226 + $0x20] sm:$0xff]
      %v241 = vld [vmem:[%s226 + $0x28] sm:$0xff]
      %v242 = vld [vmem:[%s226 + $0x30] sm:$0xff]
      %v243 = vld [vmem:[%s226 + $0x38] sm:$0xff]
      %vm244 = vcmask 31744
      %245 = vst.msk [vmem:[#allocation2] sm:$0xff] %vm244, 0.0
      %vm246 = vcmask 25600
      %247 = vst.msk [vmem:[#allocation2 + $0x8] sm:$0x3] %vm246, 0.0
      %248 = vst.msk [vmem:[#allocation2 + $0x10] sm:$0xff] %vm244, 0.0
      %249 = vst.msk [vmem:[#allocation2 + $0x18] sm:$0x3] %vm246, 0.0
      %250 = vst.msk [vmem:[#allocation2 + $0x20] sm:$0xff] %vm244, 0.0
      %251 = vst.msk [vmem:[#allocation2 + $0x28] sm:$0x3] %vm246, 0.0
      %252 = vst.msk [vmem:[#allocation2 + $0x30] sm:$0xff] %vm244, 0.0
      %253 = vst.msk [vmem:[#allocation2 + $0x38] sm:$0x3] %vm246, 0.0
      %254 = vst.msk [vmem:[#allocation2 + $0x40] sm:$0xff] %vm244, 0.0
      %255 = vst.msk [vmem:[#allocation2 + $0x48] sm:$0x3] %vm246, 0.0
      %256 = vst.msk [vmem:[#allocation2 + $0x50] sm:$0xff] %vm244, 0.0
      %257 = vst.msk [vmem:[#allocation2 + $0x58] sm:$0x3] %vm246, 0.0
      %258 = vst.msk [vmem:[#allocation2 + $0x60] sm:$0xff] %vm244, 0.0
      %259 = vst.msk [vmem:[#allocation2 + $0x68] sm:$0x3] %vm246, 0.0
      %260 = vst.msk [vmem:[#allocation2 + $0x70] sm:$0xff] %vm244, 0.0
      %261 = vst.msk [vmem:[#allocation2 + $0x78] sm:$0x3] %vm246, 0.0
      %262 = vst.msk [vmem:[#allocation2 + $0x80] sm:$0xff] %vm244, 0.0
      %263 = vst.msk [vmem:[#allocation2 + $0x88] sm:$0x3] %vm246, 0.0
      %264 = vst.msk [vmem:[#allocation2 + $0x90] sm:$0xff] %vm244, 0.0
      %265 = vst.msk [vmem:[#allocation2 + $0x98] sm:$0x3] %vm246, 0.0
      %s266 = scalar_lea.vmem [#allocation2], 16
      %267 = vst.msk [vmem:[%s266 + $0x1] sm:$0xff] %vm244, %v236
      %268 = vst.msk [vmem:[%s266 + $0x11] sm:$0xff] %vm244, %v237
      %269 = vst.msk [vmem:[%s266 + $0x21] sm:$0xff] %vm244, %v238
      %270 = vst.msk [vmem:[%s266 + $0x31] sm:$0xff] %vm244, %v239
      %271 = vst.msk [vmem:[%s266 + $0x41] sm:$0xff] %vm244, %v240
      %272 = vst.msk [vmem:[%s266 + $0x51] sm:$0xff] %vm244, %v241
      %273 = vst.msk [vmem:[%s266 + $0x61] sm:$0xff] %vm244, %v242
      %274 = vst.msk [vmem:[%s266 + $0x71] sm:$0xff] %vm244, %v243
      %v275 = vld [vmem:[#allocation2] sm:$0xff]
      %v276 = vld [vmem:[#allocation2 + $0x10] sm:$0xff]
      %v277 = vld [vmem:[#allocation2 + $0x20] sm:$0xff]
      %v278 = vld [vmem:[#allocation2 + $0x30] sm:$0xff]
      %v279 = vld [vmem:[#allocation2 + $0x40] sm:$0xff]
      %v280 = vld [vmem:[#allocation2 + $0x50] sm:$0xff]
      %v281 = vld [vmem:[#allocation2 + $0x60] sm:$0xff]
      %v282 = vld [vmem:[#allocation2 + $0x70] sm:$0xff]
      %v283 = vld [vmem:[%s3] sm:$0xf]
      %v284 = vld [vmem:[#allocation2 + $0x1] sm:$0xff]
      %v285 = vld [vmem:[#allocation2 + $0x11] sm:$0xff]
      %v286 = vld [vmem:[#allocation2 + $0x21] sm:$0xff]
      %v287 = vld [vmem:[#allocation2 + $0x31] sm:$0xff]
      %v288 = vld [vmem:[#allocation2 + $0x41] sm:$0xff]
      %v289 = vld [vmem:[#allocation2 + $0x51] sm:$0xff]
      %v290 = vld [vmem:[#allocation2 + $0x61] sm:$0xff]
      %v291 = vld [vmem:[#allocation2 + $0x71] sm:$0xff]
      %s292 = scalar_lea.vmem %s3, 4
      %v293 = vld [vmem:[%s292] sm:$0xf]
      %v295 = vsel %vm244, %v284, 0
      %v298 = vsel %vm244, %v285, 0
      %v301 = vsel %vm244, %v286, 0
      %v304 = vsel %vm244, %v287, 0
      %v307 = vsel %vm244, %v288, 0
      %v310 = vsel %vm244, %v289, 0
      %v313 = vsel %vm244, %v290, 0
      %v316 = vsel %vm244, %v291, 0
      %vm318 = vcmask 1043456
      %v320 = vsel %vm318, %v293, 0
      %322 = vmatprep.subr.mxu0 0.0
      %323 = vmatpush1.msra.mxu0 %v320
      %324 = vmatprep.subr.mxu0 0.0
      %325 = vmatpush1.msra.mxu0 0.0
      %326 = vmatprep.subr.mxu0 0.0
      %327 = vmatpush1.msra.mxu0 0.0
      %328 = vmatprep.subr.mxu0 0.0
      %329 = vmatpush1.msra.mxu0 0.0
      %330 = vmatprep.subr.mxu0 0.0
      %331 = vmatpush1.msra.mxu0 0.0
      %332 = vmatprep.subr.mxu0 0.0
      %333 = vmatpush1.msra.mxu0 0.0
      %334 = vmatprep.subr.mxu0 0.0
      %335 = vmatpush1.msra.mxu0 0.0
      %336 = vmatprep.subr.mxu0 0.0
      %337 = vmatpush1.msra.mxu0 0.0
      %338 = vmatprep.subr.mxu0 0.0
      %339 = vmatpush1.msra.mxu0 0.0
      %340 = vmatprep.subr.mxu0 0.0
      %341 = vmatpush1.msra.mxu0 0.0
      %342 = vmatprep.subr.mxu0 0.0
      %343 = vmatpush1.msra.mxu0 0.0
      %344 = vmatprep.subr.mxu0 0.0
      %345 = vmatpush1.msra.mxu0 0.0
      %346 = vmatprep.subr.mxu0 0.0
      %347 = vmatpush1.msra.mxu0 0.0
      %348 = vmatprep.subr.mxu0 0.0
      %349 = vmatpush1.msra.mxu0 0.0
      %350 = vmatprep.subr.mxu0 0.0
      %351 = vmatpush1.msra.mxu0 0.0
      %352 = vmatprep.subr.mxu0 0.0
      %353 = vmatpush1.msra.mxu0 0.0
      %354 = vmatprep.subr.mxu0 0.0
      %355 = vmatpush1.msra.mxu0 0.0
      %356 = vmatprep.subr.mxu0 0.0
      %357 = vmatpush1.msra.mxu0 0.0
      %358 = vmatprep.subr.mxu0 0.0
      %359 = vmatpush1.msra.mxu0 0.0
      %360 = vmatprep.subr.mxu0 0.0
      %361 = vmatpush1.msra.mxu0 0.0
      %362 = vmatprep.subr.mxu0 0.0
      %363 = vmatpush1.msra.mxu0 0.0
      %364 = vmatprep.subr.mxu0 0.0
      %365 = vmatpush1.msra.mxu0 0.0
      %366 = vmatprep.subr.mxu0 0.0
      %367 = vmatpush1.msra.mxu0 0.0
      %368 = vmatprep.subr.mxu0 0.0
      %369 = vmatpush1.msra.mxu0 0.0
      %370 = vmatprep.subr.mxu0 0.0
      %371 = vmatpush1.msra.mxu0 0.0
      %372 = vmatprep.subr.mxu0 0.0
      %373 = vmatpush1.msra.mxu0 0.0
      %374 = vmatprep.subr.mxu0 0.0
      %375 = vmatpush1.msra.mxu0 0.0
      %376 = vmatprep.subr.mxu0 0.0
      %377 = vmatpush1.msra.mxu0 0.0
      %378 = vmatprep.subr.mxu0 0.0
      %379 = vmatpush1.msra.mxu0 0.0
      %380 = vmatprep.subr.mxu0 0.0
      %381 = vmatpush1.msra.mxu0 0.0
      %382 = vmatprep.subr.mxu0 0.0
      %383 = vmatpush1.msra.mxu0 0.0
      %384 = vmatprep.subr.mxu0 0.0
      %385 = vmatpush1.msra.mxu0 0.0
      %386 = vmatprep.mubr.f32.mxu0 0.0
      %387 = vmatmul.mubr.f32.gmra.mrb[0].mxu0 %v295
      %v388 = vpop.f32.mrb[0].mxu0
      %v389 = vadd.f32 0.0, %v388
      %v390 = vpop.f32.mrb[0].mxu0
      %391 = vmatprep.mubr.f32.mxu0 0.0
      %392 = vmatmul.mubr.f32.gmra.mrb[0].mxu0 %v298
      %v393 = vpop.f32.mrb[0].mxu0
      %v394 = vadd.f32 0.0, %v393
      %v395 = vpop.f32.mrb[0].mxu0
      %396 = vmatprep.mubr.f32.mxu0 0.0
      %397 = vmatmul.mubr.f32.gmra.mrb[0].mxu0 %v301
      %v398 = vpop.f32.mrb[0].mxu0
      %v399 = vadd.f32 0.0, %v398
      %v400 = vpop.f32.mrb[0].mxu0
      %401 = vmatprep.mubr.f32.mxu0 0.0
      %402 = vmatmul.mubr.f32.gmra.mrb[0].mxu0 %v304
      %v403 = vpop.f32.mrb[0].mxu0
      %v404 = vadd.f32 0.0, %v403
      %v405 = vpop.f32.mrb[0].mxu0
      %406 = vmatprep.mubr.f32.mxu0 0.0
      %407 = vmatmul.mubr.f32.gmra.mrb[0].mxu0 %v307
      %v408 = vpop.f32.mrb[0].mxu0
      %v409 = vadd.f32 0.0, %v408
      %v410 = vpop.f32.mrb[0].mxu0
      %411 = vmatprep.mubr.f32.mxu0 0.0
      %412 = vmatmul.mubr.f32.gmra.mrb[0].mxu0 %v310
      %v413 = vpop.f32.mrb[0].mxu0
      %v414 = vadd.f32 0.0, %v413
      %v415 = vpop.f32.mrb[0].mxu0
      %416 = vmatprep.mubr.f32.mxu0 0.0
      %417 = vmatmul.mubr.f32.gmra.mrb[0].mxu0 %v313
      %v418 = vpop.f32.mrb[0].mxu0
      %v419 = vadd.f32 0.0, %v418
      %v420 = vpop.f32.mrb[0].mxu0
      %421 = vmatprep.mubr.f32.mxu0 0.0
      %422 = vmatmul.mubr.f32.gmra.mrb[0].mxu0 %v316
      %v423 = vpop.f32.mrb[0].mxu0
      %v424 = vadd.f32 0.0, %v423
      %v425 = vpop.f32.mrb[0].mxu0
      %426 = vdwg.mxu0
      %v428 = vsel %vm244, %v275, 0
      %v431 = vsel %vm244, %v276, 0
      %v434 = vsel %vm244, %v277, 0
      %v437 = vsel %vm244, %v278, 0
      %v440 = vsel %vm244, %v279, 0
      %v443 = vsel %vm244, %v280, 0
      %v446 = vsel %vm244, %v281, 0
      %v449 = vsel %vm244, %v282, 0
      %v452 = vsel %vm318, %v283, 0
      %454 = vmatprep.subr.mxu0 0.0
      %455 = vmatpush1.msra.mxu0 %v452
      %456 = vmatprep.subr.mxu0 0.0
      %457 = vmatpush1.msra.mxu0 0.0
      %458 = vmatprep.subr.mxu0 0.0
      %459 = vmatpush1.msra.mxu0 0.0
      %460 = vmatprep.subr.mxu0 0.0
      %461 = vmatpush1.msra.mxu0 0.0
      %462 = vmatprep.subr.mxu0 0.0
      %463 = vmatpush1.msra.mxu0 0.0
      %464 = vmatprep.subr.mxu0 0.0
      %465 = vmatpush1.msra.mxu0 0.0
      %466 = vmatprep.subr.mxu0 0.0
      %467 = vmatpush1.msra.mxu0 0.0
      %468 = vmatprep.subr.mxu0 0.0
      %469 = vmatpush1.msra.mxu0 0.0
      %470 = vmatprep.subr.mxu0 0.0
      %471 = vmatpush1.msra.mxu0 0.0
      %472 = vmatprep.subr.mxu0 0.0
      %473 = vmatpush1.msra.mxu0 0.0
      %474 = vmatprep.subr.mxu0 0.0
      %475 = vmatpush1.msra.mxu0 0.0
      %476 = vmatprep.subr.mxu0 0.0
      %477 = vmatpush1.msra.mxu0 0.0
      %478 = vmatprep.subr.mxu0 0.0
      %479 = vmatpush1.msra.mxu0 0.0
      %480 = vmatprep.subr.mxu0 0.0
      %481 = vmatpush1.msra.mxu0 0.0
      %482 = vmatprep.subr.mxu0 0.0
      %483 = vmatpush1.msra.mxu0 0.0
      %484 = vmatprep.subr.mxu0 0.0
      %485 = vmatpush1.msra.mxu0 0.0
      %486 = vmatprep.subr.mxu0 0.0
      %487 = vmatpush1.msra.mxu0 0.0
      %488 = vmatprep.subr.mxu0 0.0
      %489 = vmatpush1.msra.mxu0 0.0
      %490 = vmatprep.subr.mxu0 0.0
      %491 = vmatpush1.msra.mxu0 0.0
      %492 = vmatprep.subr.mxu0 0.0
      %493 = vmatpush1.msra.mxu0 0.0
      %494 = vmatprep.subr.mxu0 0.0
      %495 = vmatpush1.msra.mxu0 0.0
      %496 = vmatprep.subr.mxu0 0.0
      %497 = vmatpush1.msra.mxu0 0.0
      %498 = vmatprep.subr.mxu0 0.0
      %499 = vmatpush1.msra.mxu0 0.0
      %500 = vmatprep.subr.mxu0 0.0
      %501 = vmatpush1.msra.mxu0 0.0
      %502 = vmatprep.subr.mxu0 0.0
      %503 = vmatpush1.msra.mxu0 0.0
      %504 = vmatprep.subr.mxu0 0.0
      %505 = vmatpush1.msra.mxu0 0.0
      %506 = vmatprep.subr.mxu0 0.0
      %507 = vmatpush1.msra.mxu0 0.0
      %508 = vmatprep.subr.mxu0 0.0
      %509 = vmatpush1.msra.mxu0 0.0
      %510 = vmatprep.subr.mxu0 0.0
      %511 = vmatpush1.msra.mxu0 0.0
      %512 = vmatprep.subr.mxu0 0.0
      %513 = vmatpush1.msra.mxu0 0.0
      %514 = vmatprep.subr.mxu0 0.0
      %515 = vmatpush1.msra.mxu0 0.0
      %516 = vmatprep.subr.mxu0 0.0
      %517 = vmatpush1.msra.mxu0 0.0
      %518 = vmatprep.mubr.f32.mxu0 0.0
      %519 = vmatmul.mubr.f32.gmra.mrb[0].mxu0 %v428
      %v520 = vpop.f32.mrb[0].mxu0
      %v521 = vadd.f32 %v389, %v520
      %v522 = vpop.f32.mrb[0].mxu0
      %523 = vmatprep.mubr.f32.mxu0 0.0
      %524 = vmatmul.mubr.f32.gmra.mrb[0].mxu0 %v431
      %v525 = vpop.f32.mrb[0].mxu0
      %v526 = vadd.f32 %v394, %v525
      %v527 = vpop.f32.mrb[0].mxu0
      %528 = vmatprep.mubr.f32.mxu0 0.0
      %529 = vmatmul.mubr.f32.gmra.mrb[0].mxu0 %v434
      %v530 = vpop.f32.mrb[0].mxu0
      %v531 = vadd.f32 %v399, %v530
      %v532 = vpop.f32.mrb[0].mxu0
      %533 = vmatprep.mubr.f32.mxu0 0.0
      %534 = vmatmul.mubr.f32.gmra.mrb[0].mxu0 %v437
      %v535 = vpop.f32.mrb[0].mxu0
      %v536 = vadd.f32 %v404, %v535
      %v537 = vpop.f32.mrb[0].mxu0
      %538 = vmatprep.mubr.f32.mxu0 0.0
      %539 = vmatmul.mubr.f32.gmra.mrb[0].mxu0 %v440
      %v540 = vpop.f32.mrb[0].mxu0
      %v541 = vadd.f32 %v409, %v540
      %v542 = vpop.f32.mrb[0].mxu0
      %543 = vmatprep.mubr.f32.mxu0 0.0
      %544 = vmatmul.mubr.f32.gmra.mrb[0].mxu0 %v443
      %v545 = vpop.f32.mrb[0].mxu0
      %v546 = vadd.f32 %v414, %v545
      %v547 = vpop.f32.mrb[0].mxu0
      %548 = vmatprep.mubr.f32.mxu0 0.0
      %549 = vmatmul.mubr.f32.gmra.mrb[0].mxu0 %v446
      %v550 = vpop.f32.mrb[0].mxu0
      %v551 = vadd.f32 %v419, %v550
      %v552 = vpop.f32.mrb[0].mxu0
      %553 = vmatprep.mubr.f32.mxu0 0.0
      %554 = vmatmul.mubr.f32.gmra.mrb[0].mxu0 %v449
      %v555 = vpop.f32.mrb[0].mxu0
      %v556 = vadd.f32 %v424, %v555
      %v557 = vpop.f32.mrb[0].mxu0
      %558 = vdwg.mxu0
      %v559 = vld [vmem:[#allocation2 + $0x2] sm:$0xff]
      %v560 = vld [vmem:[#allocation2 + $0x12] sm:$0xff]
      %v561 = vld [vmem:[#allocation2 + $0x22] sm:$0xff]
      %v562 = vld [vmem:[#allocation2 + $0x32] sm:$0xff]
      %v563 = vld [vmem:[#allocation2 + $0x42] sm:$0xff]
      %v564 = vld [vmem:[#allocation2 + $0x52] sm:$0xff]
      %v565 = vld [vmem:[#allocation2 + $0x62] sm:$0xff]
      %v566 = vld [vmem:[#allocation2 + $0x72] sm:$0xff]
      %s567 = scalar_lea.vmem %s3, 8
      %v568 = vld [vmem:[%s567] sm:$0xf]
      %v570 = vsel %vm244, %v559, 0
      %v573 = vsel %vm244, %v560, 0
      %v576 = vsel %vm244, %v561, 0
      %v579 = vsel %vm244, %v562, 0
      %v582 = vsel %vm244, %v563, 0
      %v585 = vsel %vm244, %v564, 0
      %v588 = vsel %vm244, %v565, 0
      %v591 = vsel %vm244, %v566, 0
      %v594 = vsel %vm318, %v568, 0
      %596 = vmatprep.subr.mxu0 0.0
      %597 = vmatpush1.msra.mxu0 %v594
      %598 = vmatprep.subr.mxu0 0.0
      %599 = vmatpush1.msra.mxu0 0.0
      %600 = vmatprep.subr.mxu0 0.0
      %601 = vmatpush1.msra.mxu0 0.0
      %602 = vmatprep.subr.mxu0 0.0
      %603 = vmatpush1.msra.mxu0 0.0
      %604 = vmatprep.subr.mxu0 0.0
      %605 = vmatpush1.msra.mxu0 0.0
      %606 = vmatprep.subr.mxu0 0.0
      %607 = vmatpush1.msra.mxu0 0.0
      %608 = vmatprep.subr.mxu0 0.0
      %609 = vmatpush1.msra.mxu0 0.0
      %610 = vmatprep.subr.mxu0 0.0
      %611 = vmatpush1.msra.mxu0 0.0
      %612 = vmatprep.subr.mxu0 0.0
      %613 = vmatpush1.msra.mxu0 0.0
      %614 = vmatprep.subr.mxu0 0.0
      %615 = vmatpush1.msra.mxu0 0.0
      %616 = vmatprep.subr.mxu0 0.0
      %617 = vmatpush1.msra.mxu0 0.0
      %618 = vmatprep.subr.mxu0 0.0
      %619 = vmatpush1.msra.mxu0 0.0
      %620 = vmatprep.subr.mxu0 0.0
      %621 = vmatpush1.msra.mxu0 0.0
      %622 = vmatprep.subr.mxu0 0.0
      %623 = vmatpush1.msra.mxu0 0.0
      %624 = vmatprep.subr.mxu0 0.0
      %625 = vmatpush1.msra.mxu0 0.0
      %626 = vmatprep.subr.mxu0 0.0
      %627 = vmatpush1.msra.mxu0 0.0
      %628 = vmatprep.subr.mxu0 0.0
      %629 = vmatpush1.msra.mxu0 0.0
      %630 = vmatprep.subr.mxu0 0.0
      %631 = vmatpush1.msra.mxu0 0.0
      %632 = vmatprep.subr.mxu0 0.0
      %633 = vmatpush1.msra.mxu0 0.0
      %634 = vmatprep.subr.mxu0 0.0
      %635 = vmatpush1.msra.mxu0 0.0
      %636 = vmatprep.subr.mxu0 0.0
      %637 = vmatpush1.msra.mxu0 0.0
      %638 = vmatprep.subr.mxu0 0.0
      %639 = vmatpush1.msra.mxu0 0.0
      %640 = vmatprep.subr.mxu0 0.0
      %641 = vmatpush1.msra.mxu0 0.0
      %642 = vmatprep.subr.mxu0 0.0
      %643 = vmatpush1.msra.mxu0 0.0
      %644 = vmatprep.subr.mxu0 0.0
      %645 = vmatpush1.msra.mxu0 0.0
      %646 = vmatprep.subr.mxu0 0.0
      %647 = vmatpush1.msra.mxu0 0.0
      %648 = vmatprep.subr.mxu0 0.0
      %649 = vmatpush1.msra.mxu0 0.0
      %650 = vmatprep.subr.mxu0 0.0
      %651 = vmatpush1.msra.mxu0 0.0
      %652 = vmatprep.subr.mxu0 0.0
      %653 = vmatpush1.msra.mxu0 0.0
      %654 = vmatprep.subr.mxu0 0.0
      %655 = vmatpush1.msra.mxu0 0.0
      %656 = vmatprep.subr.mxu0 0.0
      %657 = vmatpush1.msra.mxu0 0.0
      %658 = vmatprep.subr.mxu0 0.0
      %659 = vmatpush1.msra.mxu0 0.0
      %660 = vmatprep.mubr.f32.mxu0 0.0
      %661 = vmatmul.mubr.f32.gmra.mrb[0].mxu0 %v570
      %v662 = vpop.f32.mrb[0].mxu0
      %v663 = vadd.f32 0.0, %v662
      %v664 = vpop.f32.mrb[0].mxu0
      %665 = vmatprep.mubr.f32.mxu0 0.0
      %666 = vmatmul.mubr.f32.gmra.mrb[0].mxu0 %v573
      %v667 = vpop.f32.mrb[0].mxu0
      %v668 = vadd.f32 0.0, %v667
      %v669 = vpop.f32.mrb[0].mxu0
      %670 = vmatprep.mubr.f32.mxu0 0.0
      %671 = vmatmul.mubr.f32.gmra.mrb[0].mxu0 %v576
      %v672 = vpop.f32.mrb[0].mxu0
      %v673 = vadd.f32 0.0, %v672
      %v674 = vpop.f32.mrb[0].mxu0
      %675 = vmatprep.mubr.f32.mxu0 0.0
      %676 = vmatmul.mubr.f32.gmra.mrb[0].mxu0 %v579
      %v677 = vpop.f32.mrb[0].mxu0
      %v678 = vadd.f32 0.0, %v677
      %v679 = vpop.f32.mrb[0].mxu0
      %680 = vmatprep.mubr.f32.mxu0 0.0
      %681 = vmatmul.mubr.f32.gmra.mrb[0].mxu0 %v582
      %v682 = vpop.f32.mrb[0].mxu0
      %v683 = vadd.f32 0.0, %v682
      %v684 = vpop.f32.mrb[0].mxu0
      %685 = vmatprep.mubr.f32.mxu0 0.0
      %686 = vmatmul.mubr.f32.gmra.mrb[0].mxu0 %v585
      %v687 = vpop.f32.mrb[0].mxu0
      %v688 = vadd.f32 0.0, %v687
      %v689 = vpop.f32.mrb[0].mxu0
      %690 = vmatprep.mubr.f32.mxu0 0.0
      %691 = vmatmul.mubr.f32.gmra.mrb[0].mxu0 %v588
      %v692 = vpop.f32.mrb[0].mxu0
      %v693 = vadd.f32 0.0, %v692
      %v694 = vpop.f32.mrb[0].mxu0
      %695 = vmatprep.mubr.f32.mxu0 0.0
      %696 = vmatmul.mubr.f32.gmra.mrb[0].mxu0 %v591
      %v697 = vpop.f32.mrb[0].mxu0
      %v698 = vadd.f32 0.0, %v697
      %v699 = vpop.f32.mrb[0].mxu0
      %700 = vdwg.mxu0
      %v701 = vadd.f32 %v521, %v663
      %v702 = vadd.f32 %v526, %v668
      %v703 = vadd.f32 %v531, %v673
      %v704 = vadd.f32 %v536, %v678
      %v705 = vadd.f32 %v541, %v683
      %v706 = vadd.f32 %v546, %v688
      %v707 = vadd.f32 %v551, %v693
      %v708 = vadd.f32 %v556, %v698
      %v709 = vld [vmem:[%s266] sm:$0xff]
      %v710 = vld [vmem:[%s266 + $0x10] sm:$0xff]
      %v711 = vld [vmem:[%s266 + $0x20] sm:$0xff]
      %v712 = vld [vmem:[%s266 + $0x30] sm:$0xff]
      %v713 = vld [vmem:[%s266 + $0x40] sm:$0xff]
      %v714 = vld [vmem:[%s266 + $0x50] sm:$0xff]
      %v715 = vld [vmem:[%s266 + $0x60] sm:$0xff]
      %v716 = vld [vmem:[%s266 + $0x70] sm:$0xff]
      %s717 = scalar_lea.vmem %s3, 12
      %v718 = vld [vmem:[%s717] sm:$0xf]
      %v720 = vsel %vm244, %v709, 0
      %v723 = vsel %vm244, %v710, 0
      %v726 = vsel %vm244, %v711, 0
      %v729 = vsel %vm244, %v712, 0
      %v732 = vsel %vm244, %v713, 0
      %v735 = vsel %vm244, %v714, 0
      %v738 = vsel %vm244, %v715, 0
      %v741 = vsel %vm244, %v716, 0
      %v744 = vsel %vm318, %v718, 0
      %746 = vmatprep.subr.mxu0 0.0
      %747 = vmatpush1.msra.mxu0 %v744
      %748 = vmatprep.subr.mxu0 0.0
      %749 = vmatpush1.msra.mxu0 0.0
      %750 = vmatprep.subr.mxu0 0.0
      %751 = vmatpush1.msra.mxu0 0.0
      %752 = vmatprep.subr.mxu0 0.0
      %753 = vmatpush1.msra.mxu0 0.0
      %754 = vmatprep.subr.mxu0 0.0
      %755 = vmatpush1.msra.mxu0 0.0
      %756 = vmatprep.subr.mxu0 0.0
      %757 = vmatpush1.msra.mxu0 0.0
      %758 = vmatprep.subr.mxu0 0.0
      %759 = vmatpush1.msra.mxu0 0.0
      %760 = vmatprep.subr.mxu0 0.0
      %761 = vmatpush1.msra.mxu0 0.0
      %762 = vmatprep.subr.mxu0 0.0
      %763 = vmatpush1.msra.mxu0 0.0
      %764 = vmatprep.subr.mxu0 0.0
      %765 = vmatpush1.msra.mxu0 0.0
      %766 = vmatprep.subr.mxu0 0.0
      %767 = vmatpush1.msra.mxu0 0.0
      %768 = vmatprep.subr.mxu0 0.0
      %769 = vmatpush1.msra.mxu0 0.0
      %770 = vmatprep.subr.mxu0 0.0
      %771 = vmatpush1.msra.mxu0 0.0
      %772 = vmatprep.subr.mxu0 0.0
      %773 = vmatpush1.msra.mxu0 0.0
      %774 = vmatprep.subr.mxu0 0.0
      %775 = vmatpush1.msra.mxu0 0.0
      %776 = vmatprep.subr.mxu0 0.0
      %777 = vmatpush1.msra.mxu0 0.0
      %778 = vmatprep.subr.mxu0 0.0
      %779 = vmatpush1.msra.mxu0 0.0
      %780 = vmatprep.subr.mxu0 0.0
      %781 = vmatpush1.msra.mxu0 0.0
      %782 = vmatprep.subr.mxu0 0.0
      %783 = vmatpush1.msra.mxu0 0.0
      %784 = vmatprep.subr.mxu0 0.0
      %785 = vmatpush1.msra.mxu0 0.0
      %786 = vmatprep.subr.mxu0 0.0
      %787 = vmatpush1.msra.mxu0 0.0
      %788 = vmatprep.subr.mxu0 0.0
      %789 = vmatpush1.msra.mxu0 0.0
      %790 = vmatprep.subr.mxu0 0.0
      %791 = vmatpush1.msra.mxu0 0.0
      %792 = vmatprep.subr.mxu0 0.0
      %793 = vmatpush1.msra.mxu0 0.0
      %794 = vmatprep.subr.mxu0 0.0
      %795 = vmatpush1.msra.mxu0 0.0
      %796 = vmatprep.subr.mxu0 0.0
      %797 = vmatpush1.msra.mxu0 0.0
      %798 = vmatprep.subr.mxu0 0.0
      %799 = vmatpush1.msra.mxu0 0.0
      %800 = vmatprep.subr.mxu0 0.0
      %801 = vmatpush1.msra.mxu0 0.0
      %802 = vmatprep.subr.mxu0 0.0
      %803 = vmatpush1.msra.mxu0 0.0
      %804 = vmatprep.subr.mxu0 0.0
      %805 = vmatpush1.msra.mxu0 0.0
      %806 = vmatprep.subr.mxu0 0.0
      %807 = vmatpush1.msra.mxu0 0.0
      %808 = vmatprep.subr.mxu0 0.0
      %809 = vmatpush1.msra.mxu0 0.0
      %810 = vmatprep.mubr.f32.mxu0 0.0
      %811 = vmatmul.mubr.f32.gmra.mrb[0].mxu0 %v720
      %v812 = vpop.f32.mrb[0].mxu0
      %v813 = vadd.f32 0.0, %v812
      %v814 = vpop.f32.mrb[0].mxu0
      %815 = vmatprep.mubr.f32.mxu0 0.0
      %816 = vmatmul.mubr.f32.gmra.mrb[0].mxu0 %v723
      %v817 = vpop.f32.mrb[0].mxu0
      %v818 = vadd.f32 0.0, %v817
      %v819 = vpop.f32.mrb[0].mxu0
      %820 = vmatprep.mubr.f32.mxu0 0.0
      %821 = vmatmul.mubr.f32.gmra.mrb[0].mxu0 %v726
      %v822 = vpop.f32.mrb[0].mxu0
      %v823 = vadd.f32 0.0, %v822
      %v824 = vpop.f32.mrb[0].mxu0
      %825 = vmatprep.mubr.f32.mxu0 0.0
      %826 = vmatmul.mubr.f32.gmra.mrb[0].mxu0 %v729
      %v827 = vpop.f32.mrb[0].mxu0
      %v828 = vadd.f32 0.0, %v827
      %v829 = vpop.f32.mrb[0].mxu0
      %830 = vmatprep.mubr.f32.mxu0 0.0
      %831 = vmatmul.mubr.f32.gmra.mrb[0].mxu0 %v732
      %v832 = vpop.f32.mrb[0].mxu0
      %v833 = vadd.f32 0.0, %v832
      %v834 = vpop.f32.mrb[0].mxu0
      %835 = vmatprep.mubr.f32.mxu0 0.0
      %836 = vmatmul.mubr.f32.gmra.mrb[0].mxu0 %v735
      %v837 = vpop.f32.mrb[0].mxu0
      %v838 = vadd.f32 0.0, %v837
      %v839 = vpop.f32.mrb[0].mxu0
      %840 = vmatprep.mubr.f32.mxu0 0.0
      %841 = vmatmul.mubr.f32.gmra.mrb[0].mxu0 %v738
      %v842 = vpop.f32.mrb[0].mxu0
      %v843 = vadd.f32 0.0, %v842
      %v844 = vpop.f32.mrb[0].mxu0
      %845 = vmatprep.mubr.f32.mxu0 0.0
      %846 = vmatmul.mubr.f32.gmra.mrb[0].mxu0 %v741
      %v847 = vpop.f32.mrb[0].mxu0
      %v848 = vadd.f32 0.0, %v847
      %v849 = vpop.f32.mrb[0].mxu0
      %850 = vdwg.mxu0
      %v851 = vadd.f32 %v701, %v813
      %v852 = vadd.f32 %v702, %v818
      %v853 = vadd.f32 %v703, %v823
      %v854 = vadd.f32 %v704, %v828
      %v855 = vadd.f32 %v705, %v833
      %v856 = vadd.f32 %v706, %v838
      %v857 = vadd.f32 %v707, %v843
      %v858 = vadd.f32 %v708, %v848
      %v859 = vld [vmem:[%s266 + $0x1] sm:$0xff]
      %v860 = vld [vmem:[%s266 + $0x11] sm:$0xff]
      %v861 = vld [vmem:[%s266 + $0x21] sm:$0xff]
      %v862 = vld [vmem:[%s266 + $0x31] sm:$0xff]
      %v863 = vld [vmem:[%s266 + $0x41] sm:$0xff]
      %v864 = vld [vmem:[%s266 + $0x51] sm:$0xff]
      %v865 = vld [vmem:[%s266 + $0x61] sm:$0xff]
      %v866 = vld [vmem:[%s266 + $0x71] sm:$0xff]
      %s867 = scalar_lea.vmem %s3, 16
      %v868 = vld [vmem:[%s867] sm:$0xf]
      %v870 = vsel %vm244, %v859, 0
      %v873 = vsel %vm244, %v860, 0
      %v876 = vsel %vm244, %v861, 0
      %v879 = vsel %vm244, %v862, 0
      %v882 = vsel %vm244, %v863, 0
      %v885 = vsel %vm244, %v864, 0
      %v888 = vsel %vm244, %v865, 0
      %v891 = vsel %vm244, %v866, 0
      %v894 = vsel %vm318, %v868, 0
      %896 = vmatprep.subr.mxu0 0.0
      %897 = vmatpush1.msra.mxu0 %v894
      %898 = vmatprep.subr.mxu0 0.0
      %899 = vmatpush1.msra.mxu0 0.0
      %900 = vmatprep.subr.mxu0 0.0
      %901 = vmatpush1.msra.mxu0 0.0
      %902 = vmatprep.subr.mxu0 0.0
      %903 = vmatpush1.msra.mxu0 0.0
      %904 = vmatprep.subr.mxu0 0.0
      %905 = vmatpush1.msra.mxu0 0.0
      %906 = vmatprep.subr.mxu0 0.0
      %907 = vmatpush1.msra.mxu0 0.0
      %908 = vmatprep.subr.mxu0 0.0
      %909 = vmatpush1.msra.mxu0 0.0
      %910 = vmatprep.subr.mxu0 0.0
      %911 = vmatpush1.msra.mxu0 0.0
      %912 = vmatprep.subr.mxu0 0.0
      %913 = vmatpush1.msra.mxu0 0.0
      %914 = vmatprep.subr.mxu0 0.0
      %915 = vmatpush1.msra.mxu0 0.0
      %916 = vmatprep.subr.mxu0 0.0
      %917 = vmatpush1.msra.mxu0 0.0
      %918 = vmatprep.subr.mxu0 0.0
      %919 = vmatpush1.msra.mxu0 0.0
      %920 = vmatprep.subr.mxu0 0.0
      %921 = vmatpush1.msra.mxu0 0.0
      %922 = vmatprep.subr.mxu0 0.0
      %923 = vmatpush1.msra.mxu0 0.0
      %924 = vmatprep.subr.mxu0 0.0
      %925 = vmatpush1.msra.mxu0 0.0
      %926 = vmatprep.subr.mxu0 0.0
      %927 = vmatpush1.msra.mxu0 0.0
      %928 = vmatprep.subr.mxu0 0.0
      %929 = vmatpush1.msra.mxu0 0.0
      %930 = vmatprep.subr.mxu0 0.0
      %931 = vmatpush1.msra.mxu0 0.0
      %932 = vmatprep.subr.mxu0 0.0
      %933 = vmatpush1.msra.mxu0 0.0
      %934 = vmatprep.subr.mxu0 0.0
      %935 = vmatpush1.msra.mxu0 0.0
      %936 = vmatprep.subr.mxu0 0.0
      %937 = vmatpush1.msra.mxu0 0.0
      %938 = vmatprep.subr.mxu0 0.0
      %939 = vmatpush1.msra.mxu0 0.0
      %940 = vmatprep.subr.mxu0 0.0
      %941 = vmatpush1.msra.mxu0 0.0
      %942 = vmatprep.subr.mxu0 0.0
      %943 = vmatpush1.msra.mxu0 0.0
      %944 = vmatprep.subr.mxu0 0.0
      %945 = vmatpush1.msra.mxu0 0.0
      %946 = vmatprep.subr.mxu0 0.0
      %947 = vmatpush1.msra.mxu0 0.0
      %948 = vmatprep.subr.mxu0 0.0
      %949 = vmatpush1.msra.mxu0 0.0
      %950 = vmatprep.subr.mxu0 0.0
      %951 = vmatpush1.msra.mxu0 0.0
      %952 = vmatprep.subr.mxu0 0.0
      %953 = vmatpush1.msra.mxu0 0.0
      %954 = vmatprep.subr.mxu0 0.0
      %955 = vmatpush1.msra.mxu0 0.0
      %956 = vmatprep.subr.mxu0 0.0
      %957 = vmatpush1.msra.mxu0 0.0
      %958 = vmatprep.subr.mxu0 0.0
      %959 = vmatpush1.msra.mxu0 0.0
      %960 = vmatprep.mubr.f32.mxu0 0.0
      %961 = vmatmul.mubr.f32.gmra.mrb[0].mxu0 %v870
      %v962 = vpop.f32.mrb[0].mxu0
      %v963 = vadd.f32 0.0, %v962
      %v964 = vpop.f32.mrb[0].mxu0
      %965 = vmatprep.mubr.f32.mxu0 0.0
      %966 = vmatmul.mubr.f32.gmra.mrb[0].mxu0 %v873
      %v967 = vpop.f32.mrb[0].mxu0
      %v968 = vadd.f32 0.0, %v967
      %v969 = vpop.f32.mrb[0].mxu0
      %970 = vmatprep.mubr.f32.mxu0 0.0
      %971 = vmatmul.mubr.f32.gmra.mrb[0].mxu0 %v876
      %v972 = vpop.f32.mrb[0].mxu0
      %v973 = vadd.f32 0.0, %v972
      %v974 = vpop.f32.mrb[0].mxu0
      %975 = vmatprep.mubr.f32.mxu0 0.0
      %976 = vmatmul.mubr.f32.gmra.mrb[0].mxu0 %v879
      %v977 = vpop.f32.mrb[0].mxu0
      %v978 = vadd.f32 0.0, %v977
      %v979 = vpop.f32.mrb[0].mxu0
      %980 = vmatprep.mubr.f32.mxu0 0.0
      %981 = vmatmul.mubr.f32.gmra.mrb[0].mxu0 %v882
      %v982 = vpop.f32.mrb[0].mxu0
      %v983 = vadd.f32 0.0, %v982
      %v984 = vpop.f32.mrb[0].mxu0
      %985 = vmatprep.mubr.f32.mxu0 0.0
      %986 = vmatmul.mubr.f32.gmra.mrb[0].mxu0 %v885
      %v987 = vpop.f32.mrb[0].mxu0
      %v988 = vadd.f32 0.0, %v987
      %v989 = vpop.f32.mrb[0].mxu0
      %990 = vmatprep.mubr.f32.mxu0 0.0
      %991 = vmatmul.mubr.f32.gmra.mrb[0].mxu0 %v888
      %v992 = vpop.f32.mrb[0].mxu0
      %v993 = vadd.f32 0.0, %v992
      %v994 = vpop.f32.mrb[0].mxu0
      %995 = vmatprep.mubr.f32.mxu0 0.0
      %996 = vmatmul.mubr.f32.gmra.mrb[0].mxu0 %v891
      %v997 = vpop.f32.mrb[0].mxu0
      %v998 = vadd.f32 0.0, %v997
      %v999 = vpop.f32.mrb[0].mxu0
      %1000 = vdwg.mxu0
      %v1001 = vadd.f32 %v851, %v963
      %v1002 = vadd.f32 %v852, %v968
      %v1003 = vadd.f32 %v853, %v973
      %v1004 = vadd.f32 %v854, %v978
      %v1005 = vadd.f32 %v855, %v983
      %v1006 = vadd.f32 %v856, %v988
      %v1007 = vadd.f32 %v857, %v993
      %v1008 = vadd.f32 %v858, %v998
      %v1009 = vld [vmem:[%s266 + $0x2] sm:$0xff]
      %v1010 = vld [vmem:[%s266 + $0x12] sm:$0xff]
      %v1011 = vld [vmem:[%s266 + $0x22] sm:$0xff]
      %v1012 = vld [vmem:[%s266 + $0x32] sm:$0xff]
      %v1013 = vld [vmem:[%s266 + $0x42] sm:$0xff]
      %v1014 = vld [vmem:[%s266 + $0x52] sm:$0xff]
      %v1015 = vld [vmem:[%s266 + $0x62] sm:$0xff]
      %v1016 = vld [vmem:[%s266 + $0x72] sm:$0xff]
      %s1017 = scalar_lea.vmem %s3, 20
      %v1018 = vld [vmem:[%s1017] sm:$0xf]
      %v1020 = vsel %vm244, %v1009, 0
      %v1023 = vsel %vm244, %v1010, 0
      %v1026 = vsel %vm244, %v1011, 0
      %v1029 = vsel %vm244, %v1012, 0
      %v1032 = vsel %vm244, %v1013, 0
      %v1035 = vsel %vm244, %v1014, 0
      %v1038 = vsel %vm244, %v1015, 0
      %v1041 = vsel %vm244, %v1016, 0
      %v1044 = vsel %vm318, %v1018, 0
      %1046 = vmatprep.subr.mxu0 0.0
      %1047 = vmatpush1.msra.mxu0 %v1044
      %1048 = vmatprep.subr.mxu0 0.0
      %1049 = vmatpush1.msra.mxu0 0.0
      %1050 = vmatprep.subr.mxu0 0.0
      %1051 = vmatpush1.msra.mxu0 0.0
      %1052 = vmatprep.subr.mxu0 0.0
      %1053 = vmatpush1.msra.mxu0 0.0
      %1054 = vmatprep.subr.mxu0 0.0
      %1055 = vmatpush1.msra.mxu0 0.0
      %1056 = vmatprep.subr.mxu0 0.0
      %1057 = vmatpush1.msra.mxu0 0.0
      %1058 = vmatprep.subr.mxu0 0.0
      %1059 = vmatpush1.msra.mxu0 0.0
      %1060 = vmatprep.subr.mxu0 0.0
      %1061 = vmatpush1.msra.mxu0 0.0
      %1062 = vmatprep.subr.mxu0 0.0
      %1063 = vmatpush1.msra.mxu0 0.0
      %1064 = vmatprep.subr.mxu0 0.0
      %1065 = vmatpush1.msra.mxu0 0.0
      %1066 = vmatprep.subr.mxu0 0.0
      %1067 = vmatpush1.msra.mxu0 0.0
      %1068 = vmatprep.subr.mxu0 0.0
      %1069 = vmatpush1.msra.mxu0 0.0
      %1070 = vmatprep.subr.mxu0 0.0
      %1071 = vmatpush1.msra.mxu0 0.0
      %1072 = vmatprep.subr.mxu0 0.0
      %1073 = vmatpush1.msra.mxu0 0.0
      %1074 = vmatprep.subr.mxu0 0.0
      %1075 = vmatpush1.msra.mxu0 0.0
      %1076 = vmatprep.subr.mxu0 0.0
      %1077 = vmatpush1.msra.mxu0 0.0
      %1078 = vmatprep.subr.mxu0 0.0
      %1079 = vmatpush1.msra.mxu0 0.0
      %1080 = vmatprep.subr.mxu0 0.0
      %1081 = vmatpush1.msra.mxu0 0.0
      %1082 = vmatprep.subr.mxu0 0.0
      %1083 = vmatpush1.msra.mxu0 0.0
      %1084 = vmatprep.subr.mxu0 0.0
      %1085 = vmatpush1.msra.mxu0 0.0
      %1086 = vmatprep.subr.mxu0 0.0
      %1087 = vmatpush1.msra.mxu0 0.0
      %1088 = vmatprep.subr.mxu0 0.0
      %1089 = vmatpush1.msra.mxu0 0.0
      %1090 = vmatprep.subr.mxu0 0.0
      %1091 = vmatpush1.msra.mxu0 0.0
      %1092 = vmatprep.subr.mxu0 0.0
      %1093 = vmatpush1.msra.mxu0 0.0
      %1094 = vmatprep.subr.mxu0 0.0
      %1095 = vmatpush1.msra.mxu0 0.0
      %1096 = vmatprep.subr.mxu0 0.0
      %1097 = vmatpush1.msra.mxu0 0.0
      %1098 = vmatprep.subr.mxu0 0.0
      %1099 = vmatpush1.msra.mxu0 0.0
      %1100 = vmatprep.subr.mxu0 0.0
      %1101 = vmatpush1.msra.mxu0 0.0
      %1102 = vmatprep.subr.mxu0 0.0
      %1103 = vmatpush1.msra.mxu0 0.0
      %1104 = vmatprep.subr.mxu0 0.0
      %1105 = vmatpush1.msra.mxu0 0.0
      %1106 = vmatprep.subr.mxu0 0.0
      %1107 = vmatpush1.msra.mxu0 0.0
      %1108 = vmatprep.subr.mxu0 0.0
      %1109 = vmatpush1.msra.mxu0 0.0
      %1110 = vmatprep.mubr.f32.mxu0 0.0
      %1111 = vmatmul.mubr.f32.gmra.mrb[0].mxu0 %v1020
      %v1112 = vpop.f32.mrb[0].mxu0
      %v1113 = vadd.f32 0.0, %v1112
      %v1114 = vpop.f32.mrb[0].mxu0
      %1115 = vmatprep.mubr.f32.mxu0 0.0
      %1116 = vmatmul.mubr.f32.gmra.mrb[0].mxu0 %v1023
      %v1117 = vpop.f32.mrb[0].mxu0
      %v1118 = vadd.f32 0.0, %v1117
      %v1119 = vpop.f32.mrb[0].mxu0
      %1120 = vmatprep.mubr.f32.mxu0 0.0
      %1121 = vmatmul.mubr.f32.gmra.mrb[0].mxu0 %v1026
      %v1122 = vpop.f32.mrb[0].mxu0
      %v1123 = vadd.f32 0.0, %v1122
      %v1124 = vpop.f32.mrb[0].mxu0
      %1125 = vmatprep.mubr.f32.mxu0 0.0
      %1126 = vmatmul.mubr.f32.gmra.mrb[0].mxu0 %v1029
      %v1127 = vpop.f32.mrb[0].mxu0
      %v1128 = vadd.f32 0.0, %v1127
      %v1129 = vpop.f32.mrb[0].mxu0
      %1130 = vmatprep.mubr.f32.mxu0 0.0
      %1131 = vmatmul.mubr.f32.gmra.mrb[0].mxu0 %v1032
      %v1132 = vpop.f32.mrb[0].mxu0
      %v1133 = vadd.f32 0.0, %v1132
      %v1134 = vpop.f32.mrb[0].mxu0
      %1135 = vmatprep.mubr.f32.mxu0 0.0
      %1136 = vmatmul.mubr.f32.gmra.mrb[0].mxu0 %v1035
      %v1137 = vpop.f32.mrb[0].mxu0
      %v1138 = vadd.f32 0.0, %v1137
      %v1139 = vpop.f32.mrb[0].mxu0
      %1140 = vmatprep.mubr.f32.mxu0 0.0
      %1141 = vmatmul.mubr.f32.gmra.mrb[0].mxu0 %v1038
      %v1142 = vpop.f32.mrb[0].mxu0
      %v1143 = vadd.f32 0.0, %v1142
      %v1144 = vpop.f32.mrb[0].mxu0
      %1145 = vmatprep.mubr.f32.mxu0 0.0
      %1146 = vmatmul.mubr.f32.gmra.mrb[0].mxu0 %v1041
      %v1147 = vpop.f32.mrb[0].mxu0
      %v1148 = vadd.f32 0.0, %v1147
      %v1149 = vpop.f32.mrb[0].mxu0
      %1150 = vdwg.mxu0
      %v1151 = vadd.f32 %v1001, %v1113
      %v1152 = vadd.f32 %v1002, %v1118
      %v1153 = vadd.f32 %v1003, %v1123
      %v1154 = vadd.f32 %v1004, %v1128
      %v1155 = vadd.f32 %v1005, %v1133
      %v1156 = vadd.f32 %v1006, %v1138
      %v1157 = vadd.f32 %v1007, %v1143
      %v1158 = vadd.f32 %v1008, %v1148
      %s1159 = scalar_lea.vmem [#allocation2], 32
      %v1160 = vld [vmem:[%s1159] sm:$0xff]
      %v1161 = vld [vmem:[%s1159 + $0x10] sm:$0xff]
      %v1162 = vld [vmem:[%s1159 + $0x20] sm:$0xff]
      %v1163 = vld [vmem:[%s1159 + $0x30] sm:$0xff]
      %v1164 = vld [vmem:[%s1159 + $0x40] sm:$0xff]
      %v1165 = vld [vmem:[%s1159 + $0x50] sm:$0xff]
      %v1166 = vld [vmem:[%s1159 + $0x60] sm:$0xff]
      %v1167 = vld [vmem:[%s1159 + $0x70] sm:$0xff]
      %s1168 = scalar_lea.vmem %s3, 24
      %v1169 = vld [vmem:[%s1168] sm:$0xf]
      %v1171 = vsel %vm244, %v1160, 0
      %v1174 = vsel %vm244, %v1161, 0
      %v1177 = vsel %vm244, %v1162, 0
      %v1180 = vsel %vm244, %v1163, 0
      %v1183 = vsel %vm244, %v1164, 0
      %v1186 = vsel %vm244, %v1165, 0
      %v1189 = vsel %vm244, %v1166, 0
      %v1192 = vsel %vm244, %v1167, 0
      %v1195 = vsel %vm318, %v1169, 0
      %1197 = vmatprep.subr.mxu0 0.0
      %1198 = vmatpush1.msra.mxu0 %v1195
      %1199 = vmatprep.subr.mxu0 0.0
      %1200 = vmatpush1.msra.mxu0 0.0
      %1201 = vmatprep.subr.mxu0 0.0
      %1202 = vmatpush1.msra.mxu0 0.0
      %1203 = vmatprep.subr.mxu0 0.0
      %1204 = vmatpush1.msra.mxu0 0.0
      %1205 = vmatprep.subr.mxu0 0.0
      %1206 = vmatpush1.msra.mxu0 0.0
      %1207 = vmatprep.subr.mxu0 0.0
      %1208 = vmatpush1.msra.mxu0 0.0
      %1209 = vmatprep.subr.mxu0 0.0
      %1210 = vmatpush1.msra.mxu0 0.0
      %1211 = vmatprep.subr.mxu0 0.0
      %1212 = vmatpush1.msra.mxu0 0.0
      %1213 = vmatprep.subr.mxu0 0.0
      %1214 = vmatpush1.msra.mxu0 0.0
      %1215 = vmatprep.subr.mxu0 0.0
      %1216 = vmatpush1.msra.mxu0 0.0
      %1217 = vmatprep.subr.mxu0 0.0
      %1218 = vmatpush1.msra.mxu0 0.0
      %1219 = vmatprep.subr.mxu0 0.0
      %1220 = vmatpush1.msra.mxu0 0.0
      %1221 = vmatprep.subr.mxu0 0.0
      %1222 = vmatpush1.msra.mxu0 0.0
      %1223 = vmatprep.subr.mxu0 0.0
      %1224 = vmatpush1.msra.mxu0 0.0
      %1225 = vmatprep.subr.mxu0 0.0
      %1226 = vmatpush1.msra.mxu0 0.0
      %1227 = vmatprep.subr.mxu0 0.0
      %1228 = vmatpush1.msra.mxu0 0.0
      %1229 = vmatprep.subr.mxu0 0.0
      %1230 = vmatpush1.msra.mxu0 0.0
      %1231 = vmatprep.subr.mxu0 0.0
      %1232 = vmatpush1.msra.mxu0 0.0
      %1233 = vmatprep.subr.mxu0 0.0
      %1234 = vmatpush1.msra.mxu0 0.0
      %1235 = vmatprep.subr.mxu0 0.0
      %1236 = vmatpush1.msra.mxu0 0.0
      %1237 = vmatprep.subr.mxu0 0.0
      %1238 = vmatpush1.msra.mxu0 0.0
      %1239 = vmatprep.subr.mxu0 0.0
      %1240 = vmatpush1.msra.mxu0 0.0
      %1241 = vmatprep.subr.mxu0 0.0
      %1242 = vmatpush1.msra.mxu0 0.0
      %1243 = vmatprep.subr.mxu0 0.0
      %1244 = vmatpush1.msra.mxu0 0.0
      %1245 = vmatprep.subr.mxu0 0.0
      %1246 = vmatpush1.msra.mxu0 0.0
      %1247 = vmatprep.subr.mxu0 0.0
      %1248 = vmatpush1.msra.mxu0 0.0
      %1249 = vmatprep.subr.mxu0 0.0
      %1250 = vmatpush1.msra.mxu0 0.0
      %1251 = vmatprep.subr.mxu0 0.0
      %1252 = vmatpush1.msra.mxu0 0.0
      %1253 = vmatprep.subr.mxu0 0.0
      %1254 = vmatpush1.msra.mxu0 0.0
      %1255 = vmatprep.subr.mxu0 0.0
      %1256 = vmatpush1.msra.mxu0 0.0
      %1257 = vmatprep.subr.mxu0 0.0
      %1258 = vmatpush1.msra.mxu0 0.0
      %1259 = vmatprep.subr.mxu0 0.0
      %1260 = vmatpush1.msra.mxu0 0.0
      %1261 = vmatprep.mubr.f32.mxu0 0.0
      %1262 = vmatmul.mubr.f32.gmra.mrb[0].mxu0 %v1171
      %v1263 = vpop.f32.mrb[0].mxu0
      %v1264 = vadd.f32 0.0, %v1263
      %v1265 = vpop.f32.mrb[0].mxu0
      %1266 = vmatprep.mubr.f32.mxu0 0.0
      %1267 = vmatmul.mubr.f32.gmra.mrb[0].mxu0 %v1174
      %v1268 = vpop.f32.mrb[0].mxu0
      %v1269 = vadd.f32 0.0, %v1268
      %v1270 = vpop.f32.mrb[0].mxu0
      %1271 = vmatprep.mubr.f32.mxu0 0.0
      %1272 = vmatmul.mubr.f32.gmra.mrb[0].mxu0 %v1177
      %v1273 = vpop.f32.mrb[0].mxu0
      %v1274 = vadd.f32 0.0, %v1273
      %v1275 = vpop.f32.mrb[0].mxu0
      %1276 = vmatprep.mubr.f32.mxu0 0.0
      %1277 = vmatmul.mubr.f32.gmra.mrb[0].mxu0 %v1180
      %v1278 = vpop.f32.mrb[0].mxu0
      %v1279 = vadd.f32 0.0, %v1278
      %v1280 = vpop.f32.mrb[0].mxu0
      %1281 = vmatprep.mubr.f32.mxu0 0.0
      %1282 = vmatmul.mubr.f32.gmra.mrb[0].mxu0 %v1183
      %v1283 = vpop.f32.mrb[0].mxu0
      %v1284 = vadd.f32 0.0, %v1283
      %v1285 = vpop.f32.mrb[0].mxu0
      %1286 = vmatprep.mubr.f32.mxu0 0.0
      %1287 = vmatmul.mubr.f32.gmra.mrb[0].mxu0 %v1186
      %v1288 = vpop.f32.mrb[0].mxu0
      %v1289 = vadd.f32 0.0, %v1288
      %v1290 = vpop.f32.mrb[0].mxu0
      %1291 = vmatprep.mubr.f32.mxu0 0.0
      %1292 = vmatmul.mubr.f32.gmra.mrb[0].mxu0 %v1189
      %v1293 = vpop.f32.mrb[0].mxu0
      %v1294 = vadd.f32 0.0, %v1293
      %v1295 = vpop.f32.mrb[0].mxu0
      %1296 = vmatprep.mubr.f32.mxu0 0.0
      %1297 = vmatmul.mubr.f32.gmra.mrb[0].mxu0 %v1192
      %v1298 = vpop.f32.mrb[0].mxu0
      %v1299 = vadd.f32 0.0, %v1298
      %v1300 = vpop.f32.mrb[0].mxu0
      %1301 = vdwg.mxu0
      %v1302 = vadd.f32 %v1151, %v1264
      %v1303 = vadd.f32 %v1152, %v1269
      %v1304 = vadd.f32 %v1153, %v1274
      %v1305 = vadd.f32 %v1154, %v1279
      %v1306 = vadd.f32 %v1155, %v1284
      %v1307 = vadd.f32 %v1156, %v1289
      %v1308 = vadd.f32 %v1157, %v1294
      %v1309 = vadd.f32 %v1158, %v1299
      %v1310 = vld [vmem:[%s1159 + $0x1] sm:$0xff]
      %v1311 = vld [vmem:[%s1159 + $0x11] sm:$0xff]
      %v1312 = vld [vmem:[%s1159 + $0x21] sm:$0xff]
      %v1313 = vld [vmem:[%s1159 + $0x31] sm:$0xff]
      %v1314 = vld [vmem:[%s1159 + $0x41] sm:$0xff]
      %v1315 = vld [vmem:[%s1159 + $0x51] sm:$0xff]
      %v1316 = vld [vmem:[%s1159 + $0x61] sm:$0xff]
      %v1317 = vld [vmem:[%s1159 + $0x71] sm:$0xff]
      %s1318 = scalar_lea.vmem %s3, 28
      %v1319 = vld [vmem:[%s1318] sm:$0xf]
      %v1321 = vsel %vm244, %v1310, 0
      %v1324 = vsel %vm244, %v1311, 0
      %v1327 = vsel %vm244, %v1312, 0
      %v1330 = vsel %vm244, %v1313, 0
      %v1333 = vsel %vm244, %v1314, 0
      %v1336 = vsel %vm244, %v1315, 0
      %v1339 = vsel %vm244, %v1316, 0
      %v1342 = vsel %vm244, %v1317, 0
      %v1345 = vsel %vm318, %v1319, 0
      %1347 = vmatprep.subr.mxu0 0.0
      %1348 = vmatpush1.msra.mxu0 %v1345
      %1349 = vmatprep.subr.mxu0 0.0
      %1350 = vmatpush1.msra.mxu0 0.0
      %1351 = vmatprep.subr.mxu0 0.0
      %1352 = vmatpush1.msra.mxu0 0.0
      %1353 = vmatprep.subr.mxu0 0.0
      %1354 = vmatpush1.msra.mxu0 0.0
      %1355 = vmatprep.subr.mxu0 0.0
      %1356 = vmatpush1.msra.mxu0 0.0
      %1357 = vmatprep.subr.mxu0 0.0
      %1358 = vmatpush1.msra.mxu0 0.0
      %1359 = vmatprep.subr.mxu0 0.0
      %1360 = vmatpush1.msra.mxu0 0.0
      %1361 = vmatprep.subr.mxu0 0.0
      %1362 = vmatpush1.msra.mxu0 0.0
      %1363 = vmatprep.subr.mxu0 0.0
      %1364 = vmatpush1.msra.mxu0 0.0
      %1365 = vmatprep.subr.mxu0 0.0
      %1366 = vmatpush1.msra.mxu0 0.0
      %1367 = vmatprep.subr.mxu0 0.0
      %1368 = vmatpush1.msra.mxu0 0.0
      %1369 = vmatprep.subr.mxu0 0.0
      %1370 = vmatpush1.msra.mxu0 0.0
      %1371 = vmatprep.subr.mxu0 0.0
      %1372 = vmatpush1.msra.mxu0 0.0
      %1373 = vmatprep.subr.mxu0 0.0
      %1374 = vmatpush1.msra.mxu0 0.0
      %1375 = vmatprep.subr.mxu0 0.0
      %1376 = vmatpush1.msra.mxu0 0.0
      %1377 = vmatprep.subr.mxu0 0.0
      %1378 = vmatpush1.msra.mxu0 0.0
      %1379 = vmatprep.subr.mxu0 0.0
      %1380 = vmatpush1.msra.mxu0 0.0
      %1381 = vmatprep.subr.mxu0 0.0
      %1382 = vmatpush1.msra.mxu0 0.0
      %1383 = vmatprep.subr.mxu0 0.0
      %1384 = vmatpush1.msra.mxu0 0.0
      %1385 = vmatprep.subr.mxu0 0.0
      %1386 = vmatpush1.msra.mxu0 0.0
      %1387 = vmatprep.subr.mxu0 0.0
      %1388 = vmatpush1.msra.mxu0 0.0
      %1389 = vmatprep.subr.mxu0 0.0
      %1390 = vmatpush1.msra.mxu0 0.0
      %1391 = vmatprep.subr.mxu0 0.0
      %1392 = vmatpush1.msra.mxu0 0.0
      %1393 = vmatprep.subr.mxu0 0.0
      %1394 = vmatpush1.msra.mxu0 0.0
      %1395 = vmatprep.subr.mxu0 0.0
      %1396 = vmatpush1.msra.mxu0 0.0
      %1397 = vmatprep.subr.mxu0 0.0
      %1398 = vmatpush1.msra.mxu0 0.0
      %1399 = vmatprep.subr.mxu0 0.0
      %1400 = vmatpush1.msra.mxu0 0.0
      %1401 = vmatprep.subr.mxu0 0.0
      %1402 = vmatpush1.msra.mxu0 0.0
      %1403 = vmatprep.subr.mxu0 0.0
      %1404 = vmatpush1.msra.mxu0 0.0
      %1405 = vmatprep.subr.mxu0 0.0
      %1406 = vmatpush1.msra.mxu0 0.0
      %1407 = vmatprep.subr.mxu0 0.0
      %1408 = vmatpush1.msra.mxu0 0.0
      %1409 = vmatprep.subr.mxu0 0.0
      %1410 = vmatpush1.msra.mxu0 0.0
      %1411 = vmatprep.mubr.f32.mxu0 0.0
      %1412 = vmatmul.mubr.f32.gmra.mrb[0].mxu0 %v1321
      %v1413 = vpop.f32.mrb[0].mxu0
      %v1414 = vadd.f32 0.0, %v1413
      %v1415 = vpop.f32.mrb[0].mxu0
      %1416 = vmatprep.mubr.f32.mxu0 0.0
      %1417 = vmatmul.mubr.f32.gmra.mrb[0].mxu0 %v1324
      %v1418 = vpop.f32.mrb[0].mxu0
      %v1419 = vadd.f32 0.0, %v1418
      %v1420 = vpop.f32.mrb[0].mxu0
      %1421 = vmatprep.mubr.f32.mxu0 0.0
      %1422 = vmatmul.mubr.f32.gmra.mrb[0].mxu0 %v1327
      %v1423 = vpop.f32.mrb[0].mxu0
      %v1424 = vadd.f32 0.0, %v1423
      %v1425 = vpop.f32.mrb[0].mxu0
      %1426 = vmatprep.mubr.f32.mxu0 0.0
      %1427 = vmatmul.mubr.f32.gmra.mrb[0].mxu0 %v1330
      %v1428 = vpop.f32.mrb[0].mxu0
      %v1429 = vadd.f32 0.0, %v1428
      %v1430 = vpop.f32.mrb[0].mxu0
      %1431 = vmatprep.mubr.f32.mxu0 0.0
      %1432 = vmatmul.mubr.f32.gmra.mrb[0].mxu0 %v1333
      %v1433 = vpop.f32.mrb[0].mxu0
      %v1434 = vadd.f32 0.0, %v1433
      %v1435 = vpop.f32.mrb[0].mxu0
      %1436 = vmatprep.mubr.f32.mxu0 0.0
      %1437 = vmatmul.mubr.f32.gmra.mrb[0].mxu0 %v1336
      %v1438 = vpop.f32.mrb[0].mxu0
      %v1439 = vadd.f32 0.0, %v1438
      %v1440 = vpop.f32.mrb[0].mxu0
      %1441 = vmatprep.mubr.f32.mxu0 0.0
      %1442 = vmatmul.mubr.f32.gmra.mrb[0].mxu0 %v1339
      %v1443 = vpop.f32.mrb[0].mxu0
      %v1444 = vadd.f32 0.0, %v1443
      %v1445 = vpop.f32.mrb[0].mxu0
      %1446 = vmatprep.mubr.f32.mxu0 0.0
      %1447 = vmatmul.mubr.f32.gmra.mrb[0].mxu0 %v1342
      %v1448 = vpop.f32.mrb[0].mxu0
      %v1449 = vadd.f32 0.0, %v1448
      %v1450 = vpop.f32.mrb[0].mxu0
      %1451 = vdwg.mxu0
      %v1452 = vadd.f32 %v1302, %v1414
      %v1453 = vadd.f32 %v1303, %v1419
      %v1454 = vadd.f32 %v1304, %v1424
      %v1455 = vadd.f32 %v1305, %v1429
      %v1456 = vadd.f32 %v1306, %v1434
      %v1457 = vadd.f32 %v1307, %v1439
      %v1458 = vadd.f32 %v1308, %v1444
      %v1459 = vadd.f32 %v1309, %v1449
      %v1460 = vld [vmem:[%s1159 + $0x2] sm:$0xff]
      %v1461 = vld [vmem:[%s1159 + $0x12] sm:$0xff]
      %v1462 = vld [vmem:[%s1159 + $0x22] sm:$0xff]
      %v1463 = vld [vmem:[%s1159 + $0x32] sm:$0xff]
      %v1464 = vld [vmem:[%s1159 + $0x42] sm:$0xff]
      %v1465 = vld [vmem:[%s1159 + $0x52] sm:$0xff]
      %v1466 = vld [vmem:[%s1159 + $0x62] sm:$0xff]
      %v1467 = vld [vmem:[%s1159 + $0x72] sm:$0xff]
      %s1468 = scalar_lea.vmem %s3, 32
      %v1469 = vld [vmem:[%s1468] sm:$0xf]
      %v1471 = vsel %vm244, %v1460, 0
      %v1474 = vsel %vm244, %v1461, 0
      %v1477 = vsel %vm244, %v1462, 0
      %v1480 = vsel %vm244, %v1463, 0
      %v1483 = vsel %vm244, %v1464, 0
      %v1486 = vsel %vm244, %v1465, 0
      %v1489 = vsel %vm244, %v1466, 0
      %v1492 = vsel %vm244, %v1467, 0
      %v1495 = vsel %vm318, %v1469, 0
      %1497 = vmatprep.subr.mxu0 0.0
      %1498 = vmatpush1.msra.mxu0 %v1495
      %1499 = vmatprep.subr.mxu0 0.0
      %1500 = vmatpush1.msra.mxu0 0.0
      %1501 = vmatprep.subr.mxu0 0.0
      %1502 = vmatpush1.msra.mxu0 0.0
      %1503 = vmatprep.subr.mxu0 0.0
      %1504 = vmatpush1.msra.mxu0 0.0
      %1505 = vmatprep.subr.mxu0 0.0
      %1506 = vmatpush1.msra.mxu0 0.0
      %1507 = vmatprep.subr.mxu0 0.0
      %1508 = vmatpush1.msra.mxu0 0.0
      %1509 = vmatprep.subr.mxu0 0.0
      %1510 = vmatpush1.msra.mxu0 0.0
      %1511 = vmatprep.subr.mxu0 0.0
      %1512 = vmatpush1.msra.mxu0 0.0
      %1513 = vmatprep.subr.mxu0 0.0
      %1514 = vmatpush1.msra.mxu0 0.0
      %1515 = vmatprep.subr.mxu0 0.0
      %1516 = vmatpush1.msra.mxu0 0.0
      %1517 = vmatprep.subr.mxu0 0.0
      %1518 = vmatpush1.msra.mxu0 0.0
      %1519 = vmatprep.subr.mxu0 0.0
      %1520 = vmatpush1.msra.mxu0 0.0
      %1521 = vmatprep.subr.mxu0 0.0
      %1522 = vmatpush1.msra.mxu0 0.0
      %1523 = vmatprep.subr.mxu0 0.0
      %1524 = vmatpush1.msra.mxu0 0.0
      %1525 = vmatprep.subr.mxu0 0.0
      %1526 = vmatpush1.msra.mxu0 0.0
      %1527 = vmatprep.subr.mxu0 0.0
      %1528 = vmatpush1.msra.mxu0 0.0
      %1529 = vmatprep.subr.mxu0 0.0
      %1530 = vmatpush1.msra.mxu0 0.0
      %1531 = vmatprep.subr.mxu0 0.0
      %1532 = vmatpush1.msra.mxu0 0.0
      %1533 = vmatprep.subr.mxu0 0.0
      %1534 = vmatpush1.msra.mxu0 0.0
      %1535 = vmatprep.subr.mxu0 0.0
      %1536 = vmatpush1.msra.mxu0 0.0
      %1537 = vmatprep.subr.mxu0 0.0
      %1538 = vmatpush1.msra.mxu0 0.0
      %1539 = vmatprep.subr.mxu0 0.0
      %1540 = vmatpush1.msra.mxu0 0.0
      %1541 = vmatprep.subr.mxu0 0.0
      %1542 = vmatpush1.msra.mxu0 0.0
      %1543 = vmatprep.subr.mxu0 0.0
      %1544 = vmatpush1.msra.mxu0 0.0
      %1545 = vmatprep.subr.mxu0 0.0
      %1546 = vmatpush1.msra.mxu0 0.0
      %1547 = vmatprep.subr.mxu0 0.0
      %1548 = vmatpush1.msra.mxu0 0.0
      %1549 = vmatprep.subr.mxu0 0.0
      %1550 = vmatpush1.msra.mxu0 0.0
      %1551 = vmatprep.subr.mxu0 0.0
      %1552 = vmatpush1.msra.mxu0 0.0
      %1553 = vmatprep.subr.mxu0 0.0
      %1554 = vmatpush1.msra.mxu0 0.0
      %1555 = vmatprep.subr.mxu0 0.0
      %1556 = vmatpush1.msra.mxu0 0.0
      %1557 = vmatprep.subr.mxu0 0.0
      %1558 = vmatpush1.msra.mxu0 0.0
      %1559 = vmatprep.subr.mxu0 0.0
      %1560 = vmatpush1.msra.mxu0 0.0
      %1561 = vmatprep.mubr.f32.mxu0 0.0
      %1562 = vmatmul.mubr.f32.gmra.mrb[0].mxu0 %v1471
      %v1563 = vpop.f32.mrb[0].mxu0
      %v1564 = vadd.f32 0.0, %v1563
      %v1565 = vpop.f32.mrb[0].mxu0
      %1566 = vmatprep.mubr.f32.mxu0 0.0
      %1567 = vmatmul.mubr.f32.gmra.mrb[0].mxu0 %v1474
      %v1568 = vpop.f32.mrb[0].mxu0
      %v1569 = vadd.f32 0.0, %v1568
      %v1570 = vpop.f32.mrb[0].mxu0
      %1571 = vmatprep.mubr.f32.mxu0 0.0
      %1572 = vmatmul.mubr.f32.gmra.mrb[0].mxu0 %v1477
      %v1573 = vpop.f32.mrb[0].mxu0
      %v1574 = vadd.f32 0.0, %v1573
      %v1575 = vpop.f32.mrb[0].mxu0
      %1576 = vmatprep.mubr.f32.mxu0 0.0
      %1577 = vmatmul.mubr.f32.gmra.mrb[0].mxu0 %v1480
      %v1578 = vpop.f32.mrb[0].mxu0
      %v1579 = vadd.f32 0.0, %v1578
      %v1580 = vpop.f32.mrb[0].mxu0
      %1581 = vmatprep.mubr.f32.mxu0 0.0
      %1582 = vmatmul.mubr.f32.gmra.mrb[0].mxu0 %v1483
      %v1583 = vpop.f32.mrb[0].mxu0
      %v1584 = vadd.f32 0.0, %v1583
      %v1585 = vpop.f32.mrb[0].mxu0
      %1586 = vmatprep.mubr.f32.mxu0 0.0
      %1587 = vmatmul.mubr.f32.gmra.mrb[0].mxu0 %v1486
      %v1588 = vpop.f32.mrb[0].mxu0
      %v1589 = vadd.f32 0.0, %v1588
      %v1590 = vpop.f32.mrb[0].mxu0
      %1591 = vmatprep.mubr.f32.mxu0 0.0
      %1592 = vmatmul.mubr.f32.gmra.mrb[0].mxu0 %v1489
      %v1593 = vpop.f32.mrb[0].mxu0
      %v1594 = vadd.f32 0.0, %v1593
      %v1595 = vpop.f32.mrb[0].mxu0
      %1596 = vmatprep.mubr.f32.mxu0 0.0
      %1597 = vmatmul.mubr.f32.gmra.mrb[0].mxu0 %v1492
      %v1598 = vpop.f32.mrb[0].mxu0
      %v1599 = vadd.f32 0.0, %v1598
      %v1600 = vpop.f32.mrb[0].mxu0
      %1601 = vdwg.mxu0
      %v1602 = vadd.f32 %v1452, %v1564
      %v1603 = vadd.f32 %v1453, %v1569
      %v1604 = vadd.f32 %v1454, %v1574
      %v1605 = vadd.f32 %v1455, %v1579
      %v1606 = vadd.f32 %v1456, %v1584
      %v1607 = vadd.f32 %v1457, %v1589
      %v1608 = vadd.f32 %v1458, %v1594
      %v1609 = vadd.f32 %v1459, %v1599
      %vm1610 = vcmask 64512
      %1611 = vst.msk [vmem:[%s231] sm:$0xff] %vm1610, %v1602
      %1612 = vst.msk [vmem:[%s231 + $0x8] sm:$0xff] %vm1610, %v1603
      %1613 = vst.msk [vmem:[%s231 + $0x10] sm:$0xff] %vm1610, %v1604
      %1614 = vst.msk [vmem:[%s231 + $0x18] sm:$0xff] %vm1610, %v1605
      %1615 = vst.msk [vmem:[%s231 + $0x20] sm:$0xff] %vm1610, %v1606
      %1616 = vst.msk [vmem:[%s231 + $0x28] sm:$0xff] %vm1610, %v1607
      %1617 = vst.msk [vmem:[%s231 + $0x30] sm:$0xff] %vm1610, %v1608
      %1618 = vst.msk [vmem:[%s231 + $0x38] sm:$0xff] %vm1610, %v1609
      %v1619 = vsel %vm1610, %v1602, 0.0
      %v1620 = vsel %vm1610, %v1603, 0.0
      %v1621 = vadd.f32 %v1619, %v1620
      %v1622 = vsel %vm1610, %v1604, 0.0
      %v1623 = vadd.f32 %v1621, %v1622
      %v1624 = vsel %vm1610, %v1605, 0.0
      %v1625 = vadd.f32 %v1623, %v1624
      %v1626 = vsel %vm1610, %v1606, 0.0
      %v1627 = vadd.f32 %v1625, %v1626
      %v1628 = vsel %vm1610, %v1607, 0.0
      %v1629 = vadd.f32 %v1627, %v1628
      %v1630 = vsel %vm1610, %v1608, 0.0
      %v1631 = vadd.f32 %v1629, %v1630
      %v1632 = vsel %vm1610, %v1609, 0.0
      %v1633 = vadd.f32 %v1631, %v1632
      %v1634 = vrot.slane %v1633, 4
      %v1635 = vadd.f32 %v1633, %v1634
      %v1636 = vrot.slane %v1635, 2
      %v1637 = vadd.f32 %v1635, %v1636
      %v1638 = vrot.slane %v1637, 1
      %v1639 = vadd.f32 %v1637, %v1638
      %vm1640 = vcmask 57344
      %1641 = vst.msk [vmem:[%s235] sm:$0x1] %vm1640, %v1639
      %v1642 = vmul.f32 %v1602, %v1602
      %v1643 = vmul.f32 %v1603, %v1603
      %v1644 = vmul.f32 %v1604, %v1604
      %v1645 = vmul.f32 %v1605, %v1605
      %v1646 = vmul.f32 %v1606, %v1606
      %v1647 = vmul.f32 %v1607, %v1607
      %v1648 = vmul.f32 %v1608, %v1608
      %v1649 = vmul.f32 %v1609, %v1609
      %v1650 = vsel %vm1610, %v1642, 0.0
      %v1651 = vsel %vm1610, %v1643, 0.0
      %v1652 = vadd.f32 %v1650, %v1651
      %v1653 = vsel %vm1610, %v1644, 0.0
      %v1654 = vadd.f32 %v1652, %v1653
      %v1655 = vsel %vm1610, %v1645, 0.0
      %v1656 = vadd.f32 %v1654, %v1655
      %v1657 = vsel %vm1610, %v1646, 0.0
      %v1658 = vadd.f32 %v1656, %v1657
      %v1659 = vsel %vm1610, %v1647, 0.0
      %v1660 = vadd.f32 %v1658, %v1659
      %v1661 = vsel %vm1610, %v1648, 0.0
      %v1662 = vadd.f32 %v1660, %v1661
      %v1663 = vsel %vm1610, %v1649, 0.0
      %v1664 = vadd.f32 %v1662, %v1663
      %v1665 = vrot.slane %v1664, 4
      %v1666 = vadd.f32 %v1664, %v1665
      %v1667 = vrot.slane %v1666, 2
      %v1668 = vadd.f32 %v1666, %v1667
      %v1669 = vrot.slane %v1668, 1
      %v1670 = vadd.f32 %v1668, %v1669
      %1671 = vst.msk [vmem:[%s235 + $0x1] sm:$0x1] %vm1640, %v1670
      %p1672 = scmp.lt.s32.totalorder %s17, 1
      %s1673 = scalar_select %p1672, %s17, 1
      %s1674 = smul.addr %s1673, 8
      %s1675 = smul.addr %s1674, 8
      %s1676 = scalar_lea.vmem %s4, %s1675
      %p1677 = scmp.lt.s32.totalorder %s17, 1
      %s1678 = scalar_select %p1677, %s17, 1
      %s1679 = smul.addr %s1678, 2
      %s1680 = scalar_lea.vmem %s5, %s1679
      // Predicated region
      $region37: #{downscale.5} parent=35 // pred_check
        %p1681 = pneg %p124
      $region38: #{downscale.5} parent=35 // pred_check_branch
        %1683 = sbr.rel (%p1681) target = $region40
      $region39: #{downscale.5} parent=35 // pred_region
        _
      $region40: #{downscale.5} parent=35 // pred_fallthru
        _
      // Predicated region
      $region41: #{downscale.5} parent=35 // pred_check
        %p1684 = pneg %p150
      $region42: #{downscale.5} parent=35 // pred_check_branch
        %1686 = sbr.rel (%p1684) target = $region44
      $region43: #{downscale.5} parent=35 // pred_region
        _
      $region44: #{downscale.5} parent=35 // pred_fallthru
        _
    $region36: #{downscale.5} parent=5 // pred_fallthru
      _
    %p1687 = scmp.le.s32.totalorder 2, %s12
    // Predicated region
    $region45: #{downscale.5} parent=5 // pred_check
      %p1688 = pneg %p1687
    $region46: #{downscale.5} parent=5 // pred_check_branch
      %1690 = sbr.rel (%p1688) target = $region48
    $region47: #{downscale.5} parent=5 // pred_region
      %s1691 = ssub.s32 %s12, 2
      // Predicated region
      $region49: #{downscale.5} parent=47 // pred_check
        %p1692 = pneg %p130
      $region50: #{downscale.5} parent=47 // pred_check_branch
        %1694 = sbr.rel (%p1692) target = $region52
      $region51: #{downscale.5} parent=47 // pred_region
        %p1695 = scmp.lt.s32.totalorder %s18, 1
        %s1696 = scalar_select %p1695, %s18, 1
        %s1697 = smul.addr %s1696, 8
        %s1698 = smul.addr %s1697, 8
        %s1699 = scalar_lea.vmem %s4, %s1698
      $region52: #{downscale.5} parent=47 // pred_fallthru
        _
      // Predicated region
      $region53: #{downscale.5} parent=47 // pred_check
        %p1700 = pneg %p156
      $region54: #{downscale.5} parent=47 // pred_check_branch
        %1702 = sbr.rel (%p1700) target = $region56
      $region55: #{downscale.5} parent=47 // pred_region
        %p1703 = scmp.lt.s32.totalorder %s18, 1
        %s1704 = scalar_select %p1703, %s18, 1
        %s1705 = smul.addr %s1704, 2
        %s1706 = scalar_lea.vmem %s5, %s1705
      $region56: #{downscale.5} parent=47 // pred_fallthru
        _
    $region48: #{downscale.5} parent=5 // pred_fallthru
      _
  $region6: #{downscale.5} parent=0 // loop_footer
    %s16 = sadd.s32 1, %s12
  $region7: #{downscale.5} parent=0 // loop_footer_branch
    %11 = sbr.rel target = $region3
  $region8: #{downscale.5} parent=0 // loop_exit
    _

// kernel: downscale.6
$region0: #{downscale.6}
  #allocation0 [shape = 'u32[]', space=smem, size = 0x4, offset = 0x4, fixed_abs, tag = 'smem constant byte address 0x4 - core index']
  #allocation1 [shape = 'u32[144,128]{1,0:T(1,128)}', space=vmem, size = 0x12000, scoped, tag = 'internal scratch']
  #allocation2 [shape = 'f32[10,10,8]{2,1,0:T(8,128)}', space=vmem, size = 0x14000, scoped, tag = 'scratch operand']
  %s0 = inlined_call_operand.vmem [shape: f32[2,8,8,8], index: 0, kind: input, shape index: {}]
  %s1 = inlined_call_operand.vmem [shape: f32[1,8], index: 1, kind: input, shape index: {}]
  %s2 = inlined_call_operand.vmem [shape: f32[1,8], index: 2, kind: input, shape index: {}]
  %s3 = inlined_call_operand.vmem [shape: f32[3,3,8,8], index: 3, kind: input, shape index: {}]
  %s4 = inlined_call_operand.vmem [shape: f32[2,64,8], index: 4, kind: output, shape index: {0}]
  %s5 = inlined_call_operand.vmem [shape: f32[2,2,8], index: 5, kind: output, shape index: {1}]
  %6 = xla_tuple %s4, %s5
  %s7 = sld [smem:[#allocation0]]
  $region57: #{downscale.6} parent=0
    _
  %s9 = ssub.s32 1, %s7
  %s10 = scalar_select 0, %s9, %s7
  loop: start=0, step=1, limit=4
  $region2: #{downscale.6} parent=0 // loop_pre_header
    _
  $region3: #{downscale.6} parent=0 // loop_header
    %s12 = sphi 0, %s16
    %p13 = scmp.ge.s32.totalorder %s12, 4
    %s22 = sphi 0, %s24
    %s25 = sphi 0, %s22
    %s26 = sphi 0, %s25
    %s42 = sphi 0, %s26
    %s46 = sphi 0, %s46
    %s48 = sphi 0, %s46
    %s49 = sphi 0, %s48
    %s63 = sphi 0, %s49
    %s67 = sphi 0, %s67
    %s69 = sphi 0, %s67
    %s70 = sphi 0, %s69
    %s84 = sphi 0, %s70
    %s88 = sphi 0, %s88
    %s90 = sphi 0, %s88
    %s91 = sphi 0, %s90
    %s105 = sphi 0, %s91
    %s111 = sphi 0, %s113
    %s114 = sphi 0, %s111
    %s115 = sphi 0, %s114
    %s131 = sphi 0, %s115
    %s137 = sphi 0, %s139
    %s140 = sphi 0, %s137
    %s141 = sphi 0, %s140
    %s157 = sphi 0, %s141
  $region4: #{downscale.6} parent=0 // loop_header_branch
    %15 = sbr.rel (%p13) target = $region8
  $region5: #{downscale.6} parent=0 // loop_body
    %s17 = ssub.s32 %s12, 1
    %s18 = ssub.s32 %s12, 2
    %s19 = sadd.s32 %s12, 1
    %s20 = ssub.s32 %s12, %s19
    %p21 = scmp.eq.s32.totalorder %s20, 0
    %s23 = sadd.s32 %s22, 1
    %s24 = scalar_select %p21, %s22, %s23
    %p27 = pneg %p21
    %p28 = scmp.eq.s32.totalorder %s12, 1
    %p29 = por %p27, %p28
    %p30 = scmp.ne.s32.totalorder %s22, %s25
    %p31 = scmp.eq.s32.totalorder %s12, 0
    %p32 = por %p30, %p31
    %p33 = scmp.ne.s32.totalorder %s22, %s25
    %p34 = scmp.eq.s32.totalorder %s17, 1
    %p35 = por %p33, %p34
    %p36 = scmp.ne.s32.totalorder %s25, %s26
    %p37 = scmp.eq.s32.totalorder %s17, 0
    %p38 = por %p36, %p37
    %p39 = scmp.ne.s32.totalorder %s25, %s26
    %p40 = scmp.eq.s32.totalorder %s18, 1
    %p41 = por %p39, %p40
    %p43 = scmp.ne.s32.totalorder %s26, %s42
    %p44 = scmp.eq.s32.totalorder %s18, 0
    %p45 = por %p43, %p44
    %s47 = sadd.s32 %s46, 1
    %p50 = scmp.eq.s32.totalorder %s12, 1
    %p51 = scmp.ne.s32.totalorder %s46, %s48
    %p52 = scmp.eq.s32.totalorder %s12, 0
    %p53 = por %p51, %p52
    %p54 = scmp.ne.s32.totalorder %s46, %s48
    %p55 = scmp.eq.s32.totalorder %s17, 1
    %p56 = por %p54, %p55
    %p57 = scmp.ne.s32.totalorder %s48, %s49
    %p58 = scmp.eq.s32.totalorder %s17, 0
    %p59 = por %p57, %p58
    %p60 = scmp.ne.s32.totalorder %s48, %s49
    %p61 = scmp.eq.s32.totalorder %s18, 1
    %p62 = por %p60, %p61
    %p64 = scmp.ne.s32.totalorder %s49, %s63
    %p65 = scmp.eq.s32.totalorder %s18, 0
    %p66 = por %p64, %p65
    %s68 = sadd.s32 %s67, 1
    %p71 = scmp.eq.s32.totalorder %s12, 1
    %p72 = scmp.ne.s32.totalorder %s67, %s69
    %p73 = scmp.eq.s32.totalorder %s12, 0
    %p74 = por %p72, %p73
    %p75 = scmp.ne.s32.totalorder %s67, %s69
    %p76 = scmp.eq.s32.totalorder %s17, 1
    %p77 = por %p75, %p76
    %p78 = scmp.ne.s32.totalorder %s69, %s70
    %p79 = scmp.eq.s32.totalorder %s17, 0
    %p80 = por %p78, %p79
    %p81 = scmp.ne.s32.totalorder %s69, %s70
    %p82 = scmp.eq.s32.totalorder %s18, 1
    %p83 = por %p81, %p82
    %p85 = scmp.ne.s32.totalorder %s70, %s84
    %p86 = scmp.eq.s32.totalorder %s18, 0
    %p87 = por %p85, %p86
    %s89 = sadd.s32 %s88, 1
    %p92 = scmp.eq.s32.totalorder %s12, 1
    %p93 = scmp.ne.s32.totalorder %s88, %s90
    %p94 = scmp.eq.s32.totalorder %s12, 0
    %p95 = por %p93, %p94
    %p96 = scmp.ne.s32.totalorder %s88, %s90
    %p97 = scmp.eq.s32.totalorder %s17, 1
    %p98 = por %p96, %p97
    %p99 = scmp.ne.s32.totalorder %s90, %s91
    %p100 = scmp.eq.s32.totalorder %s17, 0
    %p101 = por %p99, %p100
    %p102 = scmp.ne.s32.totalorder %s90, %s91
    %p103 = scmp.eq.s32.totalorder %s18, 1
    %p104 = por %p102, %p103
    %p106 = scmp.ne.s32.totalorder %s91, %s105
    %p107 = scmp.eq.s32.totalorder %s18, 0
    %p108 = por %p106, %p107
    %s109 = ssub.s32 %s12, %s19
    %p110 = scmp.eq.s32.totalorder %s109, 0
    %s112 = sadd.s32 %s111, 1
    %s113 = scalar_select %p110, %s111, %s112
    %p116 = pneg %p110
    %p117 = scmp.eq.s32.totalorder %s12, 1
    %p118 = por %p116, %p117
    %p119 = scmp.ne.s32.totalorder %s111, %s114
    %p120 = scmp.eq.s32.totalorder %s12, 0
    %p121 = por %p119, %p120
    %p122 = scmp.ne.s32.totalorder %s111, %s114
    %p123 = scmp.eq.s32.totalorder %s17, 1
    %p124 = por %p122, %p123
    %p125 = scmp.ne.s32.totalorder %s114, %s115
    %p126 = scmp.eq.s32.totalorder %s17, 0
    %p127 = por %p125, %p126
    %p128 = scmp.ne.s32.totalorder %s114, %s115
    %p129 = scmp.eq.s32.totalorder %s18, 1
    %p130 = por %p128, %p129
    %p132 = scmp.ne.s32.totalorder %s115, %s131
    %p133 = scmp.eq.s32.totalorder %s18, 0
    %p134 = por %p132, %p133
    %s135 = ssub.s32 %s12, %s19
    %p136 = scmp.eq.s32.totalorder %s135, 0
    %s138 = sadd.s32 %s137, 1
    %s139 = scalar_select %p136, %s137, %s138
    %p142 = pneg %p136
    %p143 = scmp.eq.s32.totalorder %s12, 1
    %p144 = por %p142, %p143
    %p145 = scmp.ne.s32.totalorder %s137, %s140
    %p146 = scmp.eq.s32.totalorder %s12, 0
    %p147 = por %p145, %p146
    %p148 = scmp.ne.s32.totalorder %s137, %s140
    %p149 = scmp.eq.s32.totalorder %s17, 1
    %p150 = por %p148, %p149
    %p151 = scmp.ne.s32.totalorder %s140, %s141
    %p152 = scmp.eq.s32.totalorder %s17, 0
    %p153 = por %p151, %p152
    %p154 = scmp.ne.s32.totalorder %s140, %s141
    %p155 = scmp.eq.s32.totalorder %s18, 1
    %p156 = por %p154, %p155
    %p158 = scmp.ne.s32.totalorder %s141, %s157
    %p159 = scmp.eq.s32.totalorder %s18, 0
    %p160 = por %p158, %p159
    %p161 = scmp.le.s32.totalorder 1, %s12
    %p162 = scmp.lt.s32.totalorder %s12, 3
    %p163 = pnand %p161, %p162
    %p164 = pneg %p163
    // Predicated region
    $region9: #{downscale.6} parent=5 // pred_check
      _
    $region10: #{downscale.6} parent=5 // pred_check_branch
      %166 = sbr.rel (%p163) target = $region12
    $region11: #{downscale.6} parent=5 // pred_region
      %s167 = ssub.s32 %s12, 1
      // Predicated region
      $region13: #{downscale.6} parent=11 // pred_check
        %p168 = pneg %p59
      $region14: #{downscale.6} parent=11 // pred_check_branch
        %170 = sbr.rel (%p168) target = $region16
      $region15: #{downscale.6} parent=11 // pred_region
        _
      $region16: #{downscale.6} parent=11 // pred_fallthru
        _
      // Predicated region
      $region17: #{downscale.6} parent=11 // pred_check
        %p171 = pneg %p80
      $region18: #{downscale.6} parent=11 // pred_check_branch
        %173 = sbr.rel (%p171) target = $region20
      $region19: #{downscale.6} parent=11 // pred_region
        _
      $region20: #{downscale.6} parent=11 // pred_fallthru
        _
      // Predicated region
      $region21: #{downscale.6} parent=11 // pred_check
        %p174 = pneg %p101
      $region22: #{downscale.6} parent=11 // pred_check_branch
        %176 = sbr.rel (%p174) target = $region24
      $region23: #{downscale.6} parent=11 // pred_region
        _
      $region24: #{downscale.6} parent=11 // pred_fallthru
        _
    $region12: #{downscale.6} parent=5 // pred_fallthru
      _
    %p177 = scmp.lt.s32.totalorder %s12, 2
    // Predicated region
    $region25: #{downscale.6} parent=5 // pred_check
      %p178 = pneg %p177
    $region26: #{downscale.6} parent=5 // pred_check_branch
      %180 = sbr.rel (%p178) target = $region28
    $region27: #{downscale.6} parent=5 // pred_region
      // Predicated region
      $region29: #{downscale.6} parent=27 // pred_check
        %p181 = pneg %p32
      $region30: #{downscale.6} parent=27 // pred_check_branch
        %183 = sbr.rel (%p181) target = $region32
      $region31: #{downscale.6} parent=27 // pred_region
        %p184 = scmp.lt.s32.totalorder %s12, 1
        %s185 = scalar_select %p184, %s12, 1
        %s186 = smul.addr %s185, 8
        %s187 = smul.addr %s186, 8
        %s188 = scalar_lea.vmem %s0, %s187
      $region32: #{downscale.6} parent=27 // pred_fallthru
        _
    $region28: #{downscale.6} parent=5 // pred_fallthru
      _
    %p189 = scmp.le.s32.totalorder 1, %s12
    %p190 = scmp.lt.s32.totalorder %s12, 3
    %p191 = pnand %p189, %p190
    %p192 = pneg %p191
    // Predicated region
    $region33: #{downscale.6} parent=5 // pred_check
      _
    $region34: #{downscale.6} parent=5 // pred_check_branch
      %194 = sbr.rel (%p191) target = $region36
    $region35: #{downscale.6} parent=5 // pred_region
      %s195 = ssub.s32 %s12, 1
      %p196 = scmp.lt.s32.totalorder %s17, 1
      %s197 = scalar_select %p196, %s17, 1
      %s198 = smul.addr %s197, 8
      %s199 = smul.addr %s198, 8
      %s200 = scalar_lea.vmem %s0, %s199
      %p201 = pneg %p38
      %p202 = pneg %p35
      %p203 = pneg %p59
      %p204 = pneg %p56
      %p205 = pneg %p80
      %p206 = pneg %p77
      %p207 = pneg %p101
      %p208 = pneg %p98
      %p209 = pneg %p127
      %p210 = pneg %p124
      %p211 = scmp.lt.s32.totalorder %s17, 1
      %s212 = scalar_select %p211, %s17, 1
      %s213 = smul.addr %s212, 8
      %s214 = smul.addr %s213, 8
      %s215 = scalar_lea.vmem %s4, %s214
      %p216 = pneg %p153
      %p217 = pneg %p150
      %p218 = scmp.lt.s32.totalorder %s17, 1
      %s219 = scalar_select %p218, %s17, 1
      %s220 = smul.addr %s219, 2
      %s221 = scalar_lea.vmem %s5, %s220
      %p222 = scmp.lt.s32.totalorder %s17, 1
      %s223 = scalar_select %p222, %s17, 1
      %s224 = smul.addr %s223, 8
      %s225 = smul.addr %s224, 8
      %s226 = scalar_lea.vmem %s0, %s225
      %p227 = scmp.lt.s32.totalorder %s17, 1
      %s228 = scalar_select %p227, %s17, 1
      %s229 = smul.addr %s228, 8
      %s230 = smul.addr %s229, 8
      %s231 = scalar_lea.vmem %s4, %s230
      %p232 = scmp.lt.s32.totalorder %s17, 1
      %s233 = scalar_select %p232, %s17, 1
      %s234 = smul.addr %s233, 2
      %s235 = scalar_lea.vmem %s5, %s234
      %v236 = vld [vmem:[%s226] sm:$0xff]
      %v237 = vld [vmem:[%s226 + $0x8] sm:$0xff]
      %v238 = vld [vmem:[%s226 + $0x10] sm:$0xff]
      %v239 = vld [vmem:[%s226 + $0x18] sm:$0xff]
      %v240 = vld [vmem:[%s226 + $0x20] sm:$0xff]
      %v241 = vld [vmem:[%s226 + $0x28] sm:$0xff]
      %v242 = vld [vmem:[%s226 + $0x30] sm:$0xff]
      %v243 = vld [vmem:[%s226 + $0x38] sm:$0xff]
      %v244 = vld [vmem:[%s1] sm:$0x1]
      %v246 = vlaneseq
      %v247 = vshrl.u32 %v246, 7
      %v248 = vsub.s32 0, %v247
      %v249 = vrot.slane %v244, %v248
      %v251 = vmul.f32 %v236, %v249
      %v252 = vmul.f32 %v237, %v249
      %v253 = vmul.f32 %v238, %v249
      %v254 = vmul.f32 %v239, %v249
      %v255 = vmul.f32 %v240, %v249
      %v256 = vmul.f32 %v241, %v249
      %v257 = vmul.f32 %v242, %v249
      %v258 = vmul.f32 %v243, %v249
      %v259 = vld [vmem:[%s2] sm:$0x1]
      %v261 = vlaneseq
      %v262 = vshrl.u32 %v261, 7
      %v263 = vsub.s32 0, %v262
      %v264 = vrot.slane %v259, %v263
      %v266 = vadd.f32 %v251, %v264
      %v267 = vadd.f32 %v252, %v264
      %v268 = vadd.f32 %v253, %v264
      %v269 = vadd.f32 %v254, %v264
      %v270 = vadd.f32 %v255, %v264
      %v271 = vadd.f32 %v256, %v264
      %v272 = vadd.f32 %v257, %v264
      %v273 = vadd.f32 %v258, %v264
      %v274 = vmax.f32 %v266, 0.0
      %v275 = vmax.f32 %v267, 0.0
      %v276 = vmax.f32 %v268, 0.0
      %v277 = vmax.f32 %v269, 0.0
      %v278 = vmax.f32 %v270, 0.0
      %v279 = vmax.f32 %v271, 0.0
      %v280 = vmax.f32 %v272, 0.0
      %v281 = vmax.f32 %v273, 0.0
      %vm282 = vcmask 64512
      %283 = vst.msk [vmem:[#allocation2] sm:$0xff] %vm282, 0.0
      %vm284 = vcmask 58368
      %285 = vst.msk [vmem:[#allocation2 + $0x8] sm:$0x3] %vm284, 0.0
      %286 = vst.msk [vmem:[#allocation2 + $0x10] sm:$0xff] %vm282, 0.0
      %287 = vst.msk [vmem:[#allocation2 + $0x18] sm:$0x3] %vm284, 0.0
      %288 = vst.msk [vmem:[#allocation2 + $0x20] sm:$0xff] %vm282, 0.0
      %289 = vst.msk [vmem:[#allocation2 + $0x28] sm:$0x3] %vm284, 0.0
      %290 = vst.msk [vmem:[#allocation2 + $0x30] sm:$0xff] %vm282, 0.0
      %291 = vst.msk [vmem:[#allocation2 + $0x38] sm:$0x3] %vm284, 0.0
      %292 = vst.msk [vmem:[#allocation2 + $0x40] sm:$0xff] %vm282, 0.0
      %293 = vst.msk [vmem:[#allocation2 + $0x48] sm:$0x3] %vm284, 0.0
      %294 = vst.msk [vmem:[#allocation2 + $0x50] sm:$0xff] %vm282, 0.0
      %295 = vst.msk [vmem:[#allocation2 + $0x58] sm:$0x3] %vm284, 0.0
      %296 = vst.msk [vmem:[#allocation2 + $0x60] sm:$0xff] %vm282, 0.0
      %297 = vst.msk [vmem:[#allocation2 + $0x68] sm:$0x3] %vm284, 0.0
      %298 = vst.msk [vmem:[#allocation2 + $0x70] sm:$0xff] %vm282, 0.0
      %299 = vst.msk [vmem:[#allocation2 + $0x78] sm:$0x3] %vm284, 0.0
      %300 = vst.msk [vmem:[#allocation2 + $0x80] sm:$0xff] %vm282, 0.0
      %301 = vst.msk [vmem:[#allocation2 + $0x88] sm:$0x3] %vm284, 0.0
      %302 = vst.msk [vmem:[#allocation2 + $0x90] sm:$0xff] %vm282, 0.0
      %303 = vst.msk [vmem:[#allocation2 + $0x98] sm:$0x3] %vm284, 0.0
      %s304 = scalar_lea.vmem [#allocation2], 16
      %305 = vst.msk [vmem:[%s304 + $0x1] sm:$0xff] %vm282, %v274
      %306 = vst.msk [vmem:[%s304 + $0x11] sm:$0xff] %vm282, %v275
      %307 = vst.msk [vmem:[%s304 + $0x21] sm:$0xff] %vm282, %v276
      %308 = vst.msk [vmem:[%s304 + $0x31] sm:$0xff] %vm282, %v277
      %309 = vst.msk [vmem:[%s304 + $0x41] sm:$0xff] %vm282, %v278
      %310 = vst.msk [vmem:[%s304 + $0x51] sm:$0xff] %vm282, %v279
      %311 = vst.msk [vmem:[%s304 + $0x61] sm:$0xff] %vm282, %v280
      %312 = vst.msk [vmem:[%s304 + $0x71] sm:$0xff] %vm282, %v281
      %v313 = vld [vmem:[#allocation2] sm:$0xff]
      %v314 = vld [vmem:[#allocation2 + $0x10] sm:$0xff]
      %v315 = vld [vmem:[#allocation2 + $0x20] sm:$0xff]
      %v316 = vld [vmem:[#allocation2 + $0x30] sm:$0xff]
      %v317 = vld [vmem:[#allocation2 + $0x40] sm:$0xff]
      %v318 = vld [vmem:[#allocation2 + $0x50] sm:$0xff]
      %v319 = vld [vmem:[#allocation2 + $0x60] sm:$0xff]
      %v320 = vld [vmem:[#allocation2 + $0x70] sm:$0xff]
      %v321 = vld [vmem:[%s3] sm:$0xff]
      %v322 = vld [vmem:[#allocation2 + $0x1] sm:$0xff]
      %v323 = vld [vmem:[#allocation2 + $0x11] sm:$0xff]
      %v324 = vld [vmem:[#allocation2 + $0x21] sm:$0xff]
      %v325 = vld [vmem:[#allocation2 + $0x31] sm:$0xff]
      %v326 = vld [vmem:[#allocation2 + $0x41] sm:$0xff]
      %v327 = vld [vmem:[#allocation2 + $0x51] sm:$0xff]
      %v328 = vld [vmem:[#allocation2 + $0x61] sm:$0xff]
      %v329 = vld [vmem:[#allocation2 + $0x71] sm:$0xff]
      %s330 = scalar_lea.vmem %s3, 8
      %v331 = vld [vmem:[%s330] sm:$0xff]
      %v333 = vsel %vm282, %v322, 0
      %v336 = vsel %vm282, %v323, 0
      %v339 = vsel %vm282, %v324, 0
      %v342 = vsel %vm282, %v325, 0
      %v345 = vsel %vm282, %v326, 0
      %v348 = vsel %vm282, %v327, 0
      %v351 = vsel %vm282, %v328, 0
      %v354 = vsel %vm282, %v329, 0
      %356 = vmatprep.subr.mxu0 0.0
      %357 = vmatpush1.msra.mxu0 %v331
      %358 = vmatprep.subr.mxu0 0.0
      %359 = vmatpush1.msra.mxu0 0.0
      %360 = vmatprep.subr.mxu0 0.0
      %361 = vmatpush1.msra.mxu0 0.0
      %362 = vmatprep.subr.mxu0 0.0
      %363 = vmatpush1.msra.mxu0 0.0
      %364 = vmatprep.subr.mxu0 0.0
      %365 = vmatpush1.msra.mxu0 0.0
      %366 = vmatprep.subr.mxu0 0.0
      %367 = vmatpush1.msra.mxu0 0.0
      %368 = vmatprep.subr.mxu0 0.0
      %369 = vmatpush1.msra.mxu0 0.0
      %370 = vmatprep.subr.mxu0 0.0
      %371 = vmatpush1.msra.mxu0 0.0
      %372 = vmatprep.subr.mxu0 0.0
      %373 = vmatpush1.msra.mxu0 0.0
      %374 = vmatprep.subr.mxu0 0.0
      %375 = vmatpush1.msra.mxu0 0.0
      %376 = vmatprep.subr.mxu0 0.0
      %377 = vmatpush1.msra.mxu0 0.0
      %378 = vmatprep.subr.mxu0 0.0
      %379 = vmatpush1.msra.mxu0 0.0
      %380 = vmatprep.subr.mxu0 0.0
      %381 = vmatpush1.msra.mxu0 0.0
      %382 = vmatprep.subr.mxu0 0.0
      %383 = vmatpush1.msra.mxu0 0.0
      %384 = vmatprep.subr.mxu0 0.0
      %385 = vmatpush1.msra.mxu0 0.0
      %386 = vmatprep.subr.mxu0 0.0
      %387 = vmatpush1.msra.mxu0 0.0
      %388 = vmatprep.subr.mxu0 0.0
      %389 = vmatpush1.msra.mxu0 0.0
      %390 = vmatprep.subr.mxu0 0.0
      %391 = vmatpush1.msra.mxu0 0.0
      %392 = vmatprep.subr.mxu0 0.0
      %393 = vmatpush1.msra.mxu0 0.0
      %394 = vmatprep.subr.mxu0 0.0
      %395 = vmatpush1.msra.mxu0 0.0
      %396 = vmatprep.subr.mxu0 0.0
      %397 = vmatpush1.msra.mxu0 0.0
      %398 = vmatprep.subr.mxu0 0.0
      %399 = vmatpush1.msra.mxu0 0.0
      %400 = vmatprep.subr.mxu0 0.0
      %401 = vmatpush1.msra.mxu0 0.0
      %402 = vmatprep.subr.mxu0 0.0
      %403 = vmatpush1.msra.mxu0 0.0
      %404 = vmatprep.subr.mxu0 0.0
      %405 = vmatpush1.msra.mxu0 0.0
      %406 = vmatprep.subr.mxu0 0.0
      %407 = vmatpush1.msra.mxu0 0.0
      %408 = vmatprep.subr.mxu0 0.0
      %409 = vmatpush1.msra.mxu0 0.0
      %410 = vmatprep.subr.mxu0 0.0
      %411 = vmatpush1.msra.mxu0 0.0
      %412 = vmatprep.subr.mxu0 0.0
      %413 = vmatpush1.msra.mxu0 0.0
      %414 = vmatprep.subr.mxu0 0.0
      %415 = vmatpush1.msra.mxu0 0.0
      %416 = vmatprep.subr.mxu0 0.0
      %417 = vmatpush1.msra.mxu0 0.0
      %418 = vmatprep.subr.mxu0 0.0
      %419 = vmatpush1.msra.mxu0 0.0
      %420 = vmatprep.mubr.f32.mxu0 0.0
      %421 = vmatmul.mubr.f32.gmra.mrb[0].mxu0 %v333
      %v422 = vpop.f32.mrb[0].mxu0
      %v423 = vadd.f32 0.0, %v422
      %v424 = vpop.f32.mrb[0].mxu0
      %425 = vmatprep.mubr.f32.mxu0 0.0
      %426 = vmatmul.mubr.f32.gmra.mrb[0].mxu0 %v336
      %v427 = vpop.f32.mrb[0].mxu0
      %v428 = vadd.f32 0.0, %v427
      %v429 = vpop.f32.mrb[0].mxu0
      %430 = vmatprep.mubr.f32.mxu0 0.0
      %431 = vmatmul.mubr.f32.gmra.mrb[0].mxu0 %v339
      %v432 = vpop.f32.mrb[0].mxu0
      %v433 = vadd.f32 0.0, %v432
      %v434 = vpop.f32.mrb[0].mxu0
      %435 = vmatprep.mubr.f32.mxu0 0.0
      %436 = vmatmul.mubr.f32.gmra.mrb[0].mxu0 %v342
      %v437 = vpop.f32.mrb[0].mxu0
      %v438 = vadd.f32 0.0, %v437
      %v439 = vpop.f32.mrb[0].mxu0
      %440 = vmatprep.mubr.f32.mxu0 0.0
      %441 = vmatmul.mubr.f32.gmra.mrb[0].mxu0 %v345
      %v442 = vpop.f32.mrb[0].mxu0
      %v443 = vadd.f32 0.0, %v442
      %v444 = vpop.f32.mrb[0].mxu0
      %445 = vmatprep.mubr.f32.mxu0 0.0
      %446 = vmatmul.mubr.f32.gmra.mrb[0].mxu0 %v348
      %v447 = vpop.f32.mrb[0].mxu0
      %v448 = vadd.f32 0.0, %v447
      %v449 = vpop.f32.mrb[0].mxu0
      %450 = vmatprep.mubr.f32.mxu0 0.0
      %451 = vmatmul.mubr.f32.gmra.mrb[0].mxu0 %v351
      %v452 = vpop.f32.mrb[0].mxu0
      %v453 = vadd.f32 0.0, %v452
      %v454 = vpop.f32.mrb[0].mxu0
      %455 = vmatprep.mubr.f32.mxu0 0.0
      %456 = vmatmul.mubr.f32.gmra.mrb[0].mxu0 %v354
      %v457 = vpop.f32.mrb[0].mxu0
      %v458 = vadd.f32 0.0, %v457
      %v459 = vpop.f32.mrb[0].mxu0
      %460 = vdwg.mxu0
      %v462 = vsel %vm282, %v313, 0
      %v465 = vsel %vm282, %v314, 0
      %v468 = vsel %vm282, %v315, 0
      %v471 = vsel %vm282, %v316, 0
      %v474 = vsel %vm282, %v317, 0
      %v477 = vsel %vm282, %v318, 0
      %v480 = vsel %vm282, %v319, 0
      %v483 = vsel %vm282, %v320, 0
      %485 = vmatprep.subr.mxu0 0.0
      %486 = vmatpush1.msra.mxu0 %v321
      %487 = vmatprep.subr.mxu0 0.0
      %488 = vmatpush1.msra.mxu0 0.0
      %489 = vmatprep.subr.mxu0 0.0
      %490 = vmatpush1.msra.mxu0 0.0
      %491 = vmatprep.subr.mxu0 0.0
      %492 = vmatpush1.msra.mxu0 0.0
      %493 = vmatprep.subr.mxu0 0.0
      %494 = vmatpush1.msra.mxu0 0.0
      %495 = vmatprep.subr.mxu0 0.0
      %496 = vmatpush1.msra.mxu0 0.0
      %497 = vmatprep.subr.mxu0 0.0
      %498 = vmatpush1.msra.mxu0 0.0
      %499 = vmatprep.subr.mxu0 0.0
      %500 = vmatpush1.msra.mxu0 0.0
      %501 = vmatprep.subr.mxu0 0.0
      %502 = vmatpush1.msra.mxu0 0.0
      %503 = vmatprep.subr.mxu0 0.0
      %504 = vmatpush1.msra.mxu0 0.0
      %505 = vmatprep.subr.mxu0 0.0
      %506 = vmatpush1.msra.mxu0 0.0
      %507 = vmatprep.subr.mxu0 0.0
      %508 = vmatpush1.msra.mxu0 0.0
      %509 = vmatprep.subr.mxu0 0.0
      %510 = vmatpush1.msra.mxu0 0.0
      %511 = vmatprep.subr.mxu0 0.0
      %512 = vmatpush1.msra.mxu0 0.0
      %513 = vmatprep.subr.mxu0 0.0
      %514 = vmatpush1.msra.mxu0 0.0
      %515 = vmatprep.subr.mxu0 0.0
      %516 = vmatpush1.msra.mxu0 0.0
      %517 = vmatprep.subr.mxu0 0.0
      %518 = vmatpush1.msra.mxu0 0.0
      %519 = vmatprep.subr.mxu0 0.0
      %520 = vmatpush1.msra.mxu0 0.0
      %521 = vmatprep.subr.mxu0 0.0
      %522 = vmatpush1.msra.mxu0 0.0
      %523 = vmatprep.subr.mxu0 0.0
      %524 = vmatpush1.msra.mxu0 0.0
      %525 = vmatprep.subr.mxu0 0.0
      %526 = vmatpush1.msra.mxu0 0.0
      %527 = vmatprep.subr.mxu0 0.0
      %528 = vmatpush1.msra.mxu0 0.0
      %529 = vmatprep.subr.mxu0 0.0
      %530 = vmatpush1.msra.mxu0 0.0
      %531 = vmatprep.subr.mxu0 0.0
      %532 = vmatpush1.msra.mxu0 0.0
      %533 = vmatprep.subr.mxu0 0.0
      %534 = vmatpush1.msra.mxu0 0.0
      %535 = vmatprep.subr.mxu0 0.0
      %536 = vmatpush1.msra.mxu0 0.0
      %537 = vmatprep.subr.mxu0 0.0
      %538 = vmatpush1.msra.mxu0 0.0
      %539 = vmatprep.subr.mxu0 0.0
      %540 = vmatpush1.msra.mxu0 0.0
      %541 = vmatprep.subr.mxu0 0.0
      %542 = vmatpush1.msra.mxu0 0.0
      %543 = vmatprep.subr.mxu0 0.0
      %544 = vmatpush1.msra.mxu0 0.0
      %545 = vmatprep.subr.mxu0 0.0
      %546 = vmatpush1.msra.mxu0 0.0
      %547 = vmatprep.subr.mxu0 0.0
      %548 = vmatpush1.msra.mxu0 0.0
      %549 = vmatprep.mubr.f32.mxu0 0.0
      %550 = vmatmul.mubr.f32.gmra.mrb[0].mxu0 %v462
      %v551 = vpop.f32.mrb[0].mxu0
      %v552 = vadd.f32 %v423, %v551
      %v553 = vpop.f32.mrb[0].mxu0
      %554 = vmatprep.mubr.f32.mxu0 0.0
      %555 = vmatmul.mubr.f32.gmra.mrb[0].mxu0 %v465
      %v556 = vpop.f32.mrb[0].mxu0
      %v557 = vadd.f32 %v428, %v556
      %v558 = vpop.f32.mrb[0].mxu0
      %559 = vmatprep.mubr.f32.mxu0 0.0
      %560 = vmatmul.mubr.f32.gmra.mrb[0].mxu0 %v468
      %v561 = vpop.f32.mrb[0].mxu0
      %v562 = vadd.f32 %v433, %v561
      %v563 = vpop.f32.mrb[0].mxu0
      %564 = vmatprep.mubr.f32.mxu0 0.0
      %565 = vmatmul.mubr.f32.gmra.mrb[0].mxu0 %v471
      %v566 = vpop.f32.mrb[0].mxu0
      %v567 = vadd.f32 %v438, %v566
      %v568 = vpop.f32.mrb[0].mxu0
      %569 = vmatprep.mubr.f32.mxu0 0.0
      %570 = vmatmul.mubr.f32.gmra.mrb[0].mxu0 %v474
      %v571 = vpop.f32.mrb[0].mxu0
      %v572 = vadd.f32 %v443, %v571
      %v573 = vpop.f32.mrb[0].mxu0
      %574 = vmatprep.mubr.f32.mxu0 0.0
      %575 = vmatmul.mubr.f32.gmra.mrb[0].mxu0 %v477
      %v576 = vpop.f32.mrb[0].mxu0
      %v577 = vadd.f32 %v448, %v576
      %v578 = vpop.f32.mrb[0].mxu0
      %579 = vmatprep.mubr.f32.mxu0 0.0
      %580 = vmatmul.mubr.f32.gmra.mrb[0].mxu0 %v480
      %v581 = vpop.f32.mrb[0].mxu0
      %v582 = vadd.f32 %v453, %v581
      %v583 = vpop.f32.mrb[0].mxu0
      %584 = vmatprep.mubr.f32.mxu0 0.0
      %585 = vmatmul.mubr.f32.gmra.mrb[0].mxu0 %v483
      %v586 = vpop.f32.mrb[0].mxu0
      %v587 = vadd.f32 %v458, %v586
      %v588 = vpop.f32.mrb[0].mxu0
      %589 = vdwg.mxu0
      %v590 = vld [vmem:[#allocation2 + $0x2] sm:$0xff]
      %v591 = vld [vmem:[#allocation2 + $0x12] sm:$0xff]
      %v592 = vld [vmem:[#allocation2 + $0x22] sm:$0xff]
      %v593 = vld [vmem:[#allocation2 + $0x32] sm:$0xff]
      %v594 = vld [vmem:[#allocation2 + $0x42] sm:$0xff]
      %v595 = vld [vmem:[#allocation2 + $0x52] sm:$0xff]
      %v596 = vld [vmem:[#allocation2 + $0x62] sm:$0xff]
      %v597 = vld [vmem:[#allocation2 + $0x72] sm:$0xff]
      %s598 = scalar_lea.vmem %s3, 16
      %v599 = vld [vmem:[%s598] sm:$0xff]
      %v601 = vsel %vm282, %v590, 0
      %v604 = vsel %vm282, %v591, 0
      %v607 = vsel %vm282, %v592, 0
      %v610 = vsel %vm282, %v593, 0
      %v613 = vsel %vm282, %v594, 0
      %v616 = vsel %vm282, %v595, 0
      %v619 = vsel %vm282, %v596, 0
      %v622 = vsel %vm282, %v597, 0
      %624 = vmatprep.subr.mxu0 0.0
      %625 = vmatpush1.msra.mxu0 %v599
      %626 = vmatprep.subr.mxu0 0.0
      %627 = vmatpush1.msra.mxu0 0.0
      %628 = vmatprep.subr.mxu0 0.0
      %629 = vmatpush1.msra.mxu0 0.0
      %630 = vmatprep.subr.mxu0 0.0
      %631 = vmatpush1.msra.mxu0 0.0
      %632 = vmatprep.subr.mxu0 0.0
      %633 = vmatpush1.msra.mxu0 0.0
      %634 = vmatprep.subr.mxu0 0.0
      %635 = vmatpush1.msra.mxu0 0.0
      %636 = vmatprep.subr.mxu0 0.0
      %637 = vmatpush1.msra.mxu0 0.0
      %638 = vmatprep.subr.mxu0 0.0
      %639 = vmatpush1.msra.mxu0 0.0
      %640 = vmatprep.subr.mxu0 0.0
      %641 = vmatpush1.msra.mxu0 0.0
      %642 = vmatprep.subr.mxu0 0.0
      %643 = vmatpush1.msra.mxu0 0.0
      %644 = vmatprep.subr.mxu0 0.0
      %645 = vmatpush1.msra.mxu0 0.0
      %646 = vmatprep.subr.mxu0 0.0
      %647 = vmatpush1.msra.mxu0 0.0
      %648 = vmatprep.subr.mxu0 0.0
      %649 = vmatpush1.msra.mxu0 0.0
      %650 = vmatprep.subr.mxu0 0.0
      %651 = vmatpush1.msra.mxu0 0.0
      %652 = vmatprep.subr.mxu0 0.0
      %653 = vmatpush1.msra.mxu0 0.0
      %654 = vmatprep.subr.mxu0 0.0
      %655 = vmatpush1.msra.mxu0 0.0
      %656 = vmatprep.subr.mxu0 0.0
      %657 = vmatpush1.msra.mxu0 0.0
      %658 = vmatprep.subr.mxu0 0.0
      %659 = vmatpush1.msra.mxu0 0.0
      %660 = vmatprep.subr.mxu0 0.0
      %661 = vmatpush1.msra.mxu0 0.0
      %662 = vmatprep.subr.mxu0 0.0
      %663 = vmatpush1.msra.mxu0 0.0
      %664 = vmatprep.subr.mxu0 0.0
      %665 = vmatpush1.msra.mxu0 0.0
      %666 = vmatprep.subr.mxu0 0.0
      %667 = vmatpush1.msra.mxu0 0.0
      %668 = vmatprep.subr.mxu0 0.0
      %669 = vmatpush1.msra.mxu0 0.0
      %670 = vmatprep.subr.mxu0 0.0
      %671 = vmatpush1.msra.mxu0 0.0
      %672 = vmatprep.subr.mxu0 0.0
      %673 = vmatpush1.msra.mxu0 0.0
      %674 = vmatprep.subr.mxu0 0.0
      %675 = vmatpush1.msra.mxu0 0.0
      %676 = vmatprep.subr.mxu0 0.0
      %677 = vmatpush1.msra.mxu0 0.0
      %678 = vmatprep.subr.mxu0 0.0
      %679 = vmatpush1.msra.mxu0 0.0
      %680 = vmatprep.subr.mxu0 0.0
      %681 = vmatpush1.msra.mxu0 0.0
      %682 = vmatprep.subr.mxu0 0.0
      %683 = vmatpush1.msra.mxu0 0.0
      %684 = vmatprep.subr.mxu0 0.0
      %685 = vmatpush1.msra.mxu0 0.0
      %686 = vmatprep.subr.mxu0 0.0
      %687 = vmatpush1.msra.mxu0 0.0
      %688 = vmatprep.mubr.f32.mxu0 0.0
      %689 = vmatmul.mubr.f32.gmra.mrb[0].mxu0 %v601
      %v690 = vpop.f32.mrb[0].mxu0
      %v691 = vadd.f32 0.0, %v690
      %v692 = vpop.f32.mrb[0].mxu0
      %693 = vmatprep.mubr.f32.mxu0 0.0
      %694 = vmatmul.mubr.f32.gmra.mrb[0].mxu0 %v604
      %v695 = vpop.f32.mrb[0].mxu0
      %v696 = vadd.f32 0.0, %v695
      %v697 = vpop.f32.mrb[0].mxu0
      %698 = vmatprep.mubr.f32.mxu0 0.0
      %699 = vmatmul.mubr.f32.gmra.mrb[0].mxu0 %v607
      %v700 = vpop.f32.mrb[0].mxu0
      %v701 = vadd.f32 0.0, %v700
      %v702 = vpop.f32.mrb[0].mxu0
      %703 = vmatprep.mubr.f32.mxu0 0.0
      %704 = vmatmul.mubr.f32.gmra.mrb[0].mxu0 %v610
      %v705 = vpop.f32.mrb[0].mxu0
      %v706 = vadd.f32 0.0, %v705
      %v707 = vpop.f32.mrb[0].mxu0
      %708 = vmatprep.mubr.f32.mxu0 0.0
      %709 = vmatmul.mubr.f32.gmra.mrb[0].mxu0 %v613
      %v710 = vpop.f32.mrb[0].mxu0
      %v711 = vadd.f32 0.0, %v710
      %v712 = vpop.f32.mrb[0].mxu0
      %713 = vmatprep.mubr.f32.mxu0 0.0
      %714 = vmatmul.mubr.f32.gmra.mrb[0].mxu0 %v616
      %v715 = vpop.f32.mrb[0].mxu0
      %v716 = vadd.f32 0.0, %v715
      %v717 = vpop.f32.mrb[0].mxu0
      %718 = vmatprep.mubr.f32.mxu0 0.0
      %719 = vmatmul.mubr.f32.gmra.mrb[0].mxu0 %v619
      %v720 = vpop.f32.mrb[0].mxu0
      %v721 = vadd.f32 0.0, %v720
      %v722 = vpop.f32.mrb[0].mxu0
      %723 = vmatprep.mubr.f32.mxu0 0.0
      %724 = vmatmul.mubr.f32.gmra.mrb[0].mxu0 %v622
      %v725 = vpop.f32.mrb[0].mxu0
      %v726 = vadd.f32 0.0, %v725
      %v727 = vpop.f32.mrb[0].mxu0
      %728 = vdwg.mxu0
      %v729 = vadd.f32 %v552, %v691
      %v730 = vadd.f32 %v557, %v696
      %v731 = vadd.f32 %v562, %v701
      %v732 = vadd.f32 %v567, %v706
      %v733 = vadd.f32 %v572, %v711
      %v734 = vadd.f32 %v577, %v716
      %v735 = vadd.f32 %v582, %v721
      %v736 = vadd.f32 %v587, %v726
      %v737 = vld [vmem:[%s304] sm:$0xff]
      %v738 = vld [vmem:[%s304 + $0x10] sm:$0xff]
      %v739 = vld [vmem:[%s304 + $0x20] sm:$0xff]
      %v740 = vld [vmem:[%s304 + $0x30] sm:$0xff]
      %v741 = vld [vmem:[%s304 + $0x40] sm:$0xff]
      %v742 = vld [vmem:[%s304 + $0x50] sm:$0xff]
      %v743 = vld [vmem:[%s304 + $0x60] sm:$0xff]
      %v744 = vld [vmem:[%s304 + $0x70] sm:$0xff]
      %s745 = scalar_lea.vmem %s3, 24
      %v746 = vld [vmem:[%s745] sm:$0xff]
      %v748 = vsel %vm282, %v737, 0
      %v751 = vsel %vm282, %v738, 0
      %v754 = vsel %vm282, %v739, 0
      %v757 = vsel %vm282, %v740, 0
      %v760 = vsel %vm282, %v741, 0
      %v763 = vsel %vm282, %v742, 0
      %v766 = vsel %vm282, %v743, 0
      %v769 = vsel %vm282, %v744, 0
      %771 = vmatprep.subr.mxu0 0.0
      %772 = vmatpush1.msra.mxu0 %v746
      %773 = vmatprep.subr.mxu0 0.0
      %774 = vmatpush1.msra.mxu0 0.0
      %775 = vmatprep.subr.mxu0 0.0
      %776 = vmatpush1.msra.mxu0 0.0
      %777 = vmatprep.subr.mxu0 0.0
      %778 = vmatpush1.msra.mxu0 0.0
      %779 = vmatprep.subr.mxu0 0.0
      %780 = vmatpush1.msra.mxu0 0.0
      %781 = vmatprep.subr.mxu0 0.0
      %782 = vmatpush1.msra.mxu0 0.0
      %783 = vmatprep.subr.mxu0 0.0
      %784 = vmatpush1.msra.mxu0 0.0
      %785 = vmatprep.subr.mxu0 0.0
      %786 = vmatpush1.msra.mxu0 0.0
      %787 = vmatprep.subr.mxu0 0.0
      %788 = vmatpush1.msra.mxu0 0.0
      %789 = vmatprep.subr.mxu0 0.0
      %790 = vmatpush1.msra.mxu0 0.0
      %791 = vmatprep.subr.mxu0 0.0
      %792 = vmatpush1.msra.mxu0 0.0
      %793 = vmatprep.subr.mxu0 0.0
      %794 = vmatpush1.msra.mxu0 0.0
      %795 = vmatprep.subr.mxu0 0.0
      %796 = vmatpush1.msra.mxu0 0.0
      %797 = vmatprep.subr.mxu0 0.0
      %798 = vmatpush1.msra.mxu0 0.0
      %799 = vmatprep.subr.mxu0 0.0
      %800 = vmatpush1.msra.mxu0 0.0
      %801 = vmatprep.subr.mxu0 0.0
      %802 = vmatpush1.msra.mxu0 0.0
      %803 = vmatprep.subr.mxu0 0.0
      %804 = vmatpush1.msra.mxu0 0.0
      %805 = vmatprep.subr.mxu0 0.0
      %806 = vmatpush1.msra.mxu0 0.0
      %807 = vmatprep.subr.mxu0 0.0
      %808 = vmatpush1.msra.mxu0 0.0
      %809 = vmatprep.subr.mxu0 0.0
      %810 = vmatpush1.msra.mxu0 0.0
      %811 = vmatprep.subr.mxu0 0.0
      %812 = vmatpush1.msra.mxu0 0.0
      %813 = vmatprep.subr.mxu0 0.0
      %814 = vmatpush1.msra.mxu0 0.0
      %815 = vmatprep.subr.mxu0 0.0
      %816 = vmatpush1.msra.mxu0 0.0
      %817 = vmatprep.subr.mxu0 0.0
      %818 = vmatpush1.msra.mxu0 0.0
      %819 = vmatprep.subr.mxu0 0.0
      %820 = vmatpush1.msra.mxu0 0.0
      %821 = vmatprep.subr.mxu0 0.0
      %822 = vmatpush1.msra.mxu0 0.0
      %823 = vmatprep.subr.mxu0 0.0
      %824 = vmatpush1.msra.mxu0 0.0
      %825 = vmatprep.subr.mxu0 0.0
      %826 = vmatpush1.msra.mxu0 0.0
      %827 = vmatprep.subr.mxu0 0.0
      %828 = vmatpush1.msra.mxu0 0.0
      %829 = vmatprep.subr.mxu0 0.0
      %830 = vmatpush1.msra.mxu0 0.0
      %831 = vmatprep.subr.mxu0 0.0
      %832 = vmatpush1.msra.mxu0 0.0
      %833 = vmatprep.subr.mxu0 0.0
      %834 = vmatpush1.msra.mxu0 0.0
      %835 = vmatprep.mubr.f32.mxu0 0.0
      %836 = vmatmul.mubr.f32.gmra.mrb[0].mxu0 %v748
      %v837 = vpop.f32.mrb[0].mxu0
      %v838 = vadd.f32 0.0, %v837
      %v839 = vpop.f32.mrb[0].mxu0
      %840 = vmatprep.mubr.f32.mxu0 0.0
      %841 = vmatmul.mubr.f32.gmra.mrb[0].mxu0 %v751
      %v842 = vpop.f32.mrb[0].mxu0
      %v843 = vadd.f32 0.0, %v842
      %v844 = vpop.f32.mrb[0].mxu0
      %845 = vmatprep.mubr.f32.mxu0 0.0
      %846 = vmatmul.mubr.f32.gmra.mrb[0].mxu0 %v754
      %v847 = vpop.f32.mrb[0].mxu0
      %v848 = vadd.f32 0.0, %v847
      %v849 = vpop.f32.mrb[0].mxu0
      %850 = vmatprep.mubr.f32.mxu0 0.0
      %851 = vmatmul.mubr.f32.gmra.mrb[0].mxu0 %v757
      %v852 = vpop.f32.mrb[0].mxu0
      %v853 = vadd.f32 0.0, %v852
      %v854 = vpop.f32.mrb[0].mxu0
      %855 = vmatprep.mubr.f32.mxu0 0.0
      %856 = vmatmul.mubr.f32.gmra.mrb[0].mxu0 %v760
      %v857 = vpop.f32.mrb[0].mxu0
      %v858 = vadd.f32 0.0, %v857
      %v859 = vpop.f32.mrb[0].mxu0
      %860 = vmatprep.mubr.f32.mxu0 0.0
      %861 = vmatmul.mubr.f32.gmra.mrb[0].mxu0 %v763
      %v862 = vpop.f32.mrb[0].mxu0
      %v863 = vadd.f32 0.0, %v862
      %v864 = vpop.f32.mrb[0].mxu0
      %865 = vmatprep.mubr.f32.mxu0 0.0
      %866 = vmatmul.mubr.f32.gmra.mrb[0].mxu0 %v766
      %v867 = vpop.f32.mrb[0].mxu0
      %v868 = vadd.f32 0.0, %v867
      %v869 = vpop.f32.mrb[0].mxu0
      %870 = vmatprep.mubr.f32.mxu0 0.0
      %871 = vmatmul.mubr.f32.gmra.mrb[0].mxu0 %v769
      %v872 = vpop.f32.mrb[0].mxu0
      %v873 = vadd.f32 0.0, %v872
      %v874 = vpop.f32.mrb[0].mxu0
      %875 = vdwg.mxu0
      %v876 = vadd.f32 %v729, %v838
      %v877 = vadd.f32 %v730, %v843
      %v878 = vadd.f32 %v731, %v848
      %v879 = vadd.f32 %v732, %v853
      %v880 = vadd.f32 %v733, %v858
      %v881 = vadd.f32 %v734, %v863
      %v882 = vadd.f32 %v735, %v868
      %v883 = vadd.f32 %v736, %v873
      %v884 = vld [vmem:[%s304 + $0x1] sm:$0xff]
      %v885 = vld [vmem:[%s304 + $0x11] sm:$0xff]
      %v886 = vld [vmem:[%s304 + $0x21] sm:$0xff]
      %v887 = vld [vmem:[%s304 + $0x31] sm:$0xff]
      %v888 = vld [vmem:[%s304 + $0x41] sm:$0xff]
      %v889 = vld [vmem:[%s304 + $0x51] sm:$0xff]
      %v890 = vld [vmem:[%s304 + $0x61] sm:$0xff]
      %v891 = vld [vmem:[%s304 + $0x71] sm:$0xff]
      %s892 = scalar_lea.vmem %s3, 32
      %v893 = vld [vmem:[%s892] sm:$0xff]
      %v895 = vsel %vm282, %v884, 0
      %v898 = vsel %vm282, %v885, 0
      %v901 = vsel %vm282, %v886, 0
      %v904 = vsel %vm282, %v887, 0
      %v907 = vsel %vm282, %v888, 0
      %v910 = vsel %vm282, %v889, 0
      %v913 = vsel %vm282, %v890, 0
      %v916 = vsel %vm282, %v891, 0
      %918 = vmatprep.subr.mxu0 0.0
      %919 = vmatpush1.msra.mxu0 %v893
      %920 = vmatprep.subr.mxu0 0.0
      %921 = vmatpush1.msra.mxu0 0.0
      %922 = vmatprep.subr.mxu0 0.0
      %923 = vmatpush1.msra.mxu0 0.0
      %924 = vmatprep.subr.mxu0 0.0
      %925 = vmatpush1.msra.mxu0 0.0
      %926 = vmatprep.subr.mxu0 0.0
      %927 = vmatpush1.msra.mxu0 0.0
      %928 = vmatprep.subr.mxu0 0.0
      %929 = vmatpush1.msra.mxu0 0.0
      %930 = vmatprep.subr.mxu0 0.0
      %931 = vmatpush1.msra.mxu0 0.0
      %932 = vmatprep.subr.mxu0 0.0
      %933 = vmatpush1.msra.mxu0 0.0
      %934 = vmatprep.subr.mxu0 0.0
      %935 = vmatpush1.msra.mxu0 0.0
      %936 = vmatprep.subr.mxu0 0.0
      %937 = vmatpush1.msra.mxu0 0.0
      %938 = vmatprep.subr.mxu0 0.0
      %939 = vmatpush1.msra.mxu0 0.0
      %940 = vmatprep.subr.mxu0 0.0
      %941 = vmatpush1.msra.mxu0 0.0
      %942 = vmatprep.subr.mxu0 0.0
      %943 = vmatpush1.msra.mxu0 0.0
      %944 = vmatprep.subr.mxu0 0.0
      %945 = vmatpush1.msra.mxu0 0.0
      %946 = vmatprep.subr.mxu0 0.0
      %947 = vmatpush1.msra.mxu0 0.0
      %948 = vmatprep.subr.mxu0 0.0
      %949 = vmatpush1.msra.mxu0 0.0
      %950 = vmatprep.subr.mxu0 0.0
      %951 = vmatpush1.msra.mxu0 0.0
      %952 = vmatprep.subr.mxu0 0.0
      %953 = vmatpush1.msra.mxu0 0.0
      %954 = vmatprep.subr.mxu0 0.0
      %955 = vmatpush1.msra.mxu0 0.0
      %956 = vmatprep.subr.mxu0 0.0
      %957 = vmatpush1.msra.mxu0 0.0
      %958 = vmatprep.subr.mxu0 0.0
      %959 = vmatpush1.msra.mxu0 0.0
      %960 = vmatprep.subr.mxu0 0.0
      %961 = vmatpush1.msra.mxu0 0.0
      %962 = vmatprep.subr.mxu0 0.0
      %963 = vmatpush1.msra.mxu0 0.0
      %964 = vmatprep.subr.mxu0 0.0
      %965 = vmatpush1.msra.mxu0 0.0
      %966 = vmatprep.subr.mxu0 0.0
      %967 = vmatpush1.msra.mxu0 0.0
      %968 = vmatprep.subr.mxu0 0.0
      %969 = vmatpush1.msra.mxu0 0.0
      %970 = vmatprep.subr.mxu0 0.0
      %971 = vmatpush1.msra.mxu0 0.0
      %972 = vmatprep.subr.mxu0 0.0
      %973 = vmatpush1.msra.mxu0 0.0
      %974 = vmatprep.subr.mxu0 0.0
      %975 = vmatpush1.msra.mxu0 0.0
      %976 = vmatprep.subr.mxu0 0.0
      %977 = vmatpush1.msra.mxu0 0.0
      %978 = vmatprep.subr.mxu0 0.0
      %979 = vmatpush1.msra.mxu0 0.0
      %980 = vmatprep.subr.mxu0 0.0
      %981 = vmatpush1.msra.mxu0 0.0
      %982 = vmatprep.mubr.f32.mxu0 0.0
      %983 = vmatmul.mubr.f32.gmra.mrb[0].mxu0 %v895
      %v984 = vpop.f32.mrb[0].mxu0
      %v985 = vadd.f32 0.0, %v984
      %v986 = vpop.f32.mrb[0].mxu0
      %987 = vmatprep.mubr.f32.mxu0 0.0
      %988 = vmatmul.mubr.f32.gmra.mrb[0].mxu0 %v898
      %v989 = vpop.f32.mrb[0].mxu0
      %v990 = vadd.f32 0.0, %v989
      %v991 = vpop.f32.mrb[0].mxu0
      %992 = vmatprep.mubr.f32.mxu0 0.0
      %993 = vmatmul.mubr.f32.gmra.mrb[0].mxu0 %v901
      %v994 = vpop.f32.mrb[0].mxu0
      %v995 = vadd.f32 0.0, %v994
      %v996 = vpop.f32.mrb[0].mxu0
      %997 = vmatprep.mubr.f32.mxu0 0.0
      %998 = vmatmul.mubr.f32.gmra.mrb[0].mxu0 %v904
      %v999 = vpop.f32.mrb[0].mxu0
      %v1000 = vadd.f32 0.0, %v999
      %v1001 = vpop.f32.mrb[0].mxu0
      %1002 = vmatprep.mubr.f32.mxu0 0.0
      %1003 = vmatmul.mubr.f32.gmra.mrb[0].mxu0 %v907
      %v1004 = vpop.f32.mrb[0].mxu0
      %v1005 = vadd.f32 0.0, %v1004
      %v1006 = vpop.f32.mrb[0].mxu0
      %1007 = vmatprep.mubr.f32.mxu0 0.0
      %1008 = vmatmul.mubr.f32.gmra.mrb[0].mxu0 %v910
      %v1009 = vpop.f32.mrb[0].mxu0
      %v1010 = vadd.f32 0.0, %v1009
      %v1011 = vpop.f32.mrb[0].mxu0
      %1012 = vmatprep.mubr.f32.mxu0 0.0
      %1013 = vmatmul.mubr.f32.gmra.mrb[0].mxu0 %v913
      %v1014 = vpop.f32.mrb[0].mxu0
      %v1015 = vadd.f32 0.0, %v1014
      %v1016 = vpop.f32.mrb[0].mxu0
      %1017 = vmatprep.mubr.f32.mxu0 0.0
      %1018 = vmatmul.mubr.f32.gmra.mrb[0].mxu0 %v916
      %v1019 = vpop.f32.mrb[0].mxu0
      %v1020 = vadd.f32 0.0, %v1019
      %v1021 = vpop.f32.mrb[0].mxu0
      %1022 = vdwg.mxu0
      %v1023 = vadd.f32 %v876, %v985
      %v1024 = vadd.f32 %v877, %v990
      %v1025 = vadd.f32 %v878, %v995
      %v1026 = vadd.f32 %v879, %v1000
      %v1027 = vadd.f32 %v880, %v1005
      %v1028 = vadd.f32 %v881, %v1010
      %v1029 = vadd.f32 %v882, %v1015
      %v1030 = vadd.f32 %v883, %v1020
      %v1031 = vld [vmem:[%s304 + $0x2] sm:$0xff]
      %v1032 = vld [vmem:[%s304 + $0x12] sm:$0xff]
      %v1033 = vld [vmem:[%s304 + $0x22] sm:$0xff]
      %v1034 = vld [vmem:[%s304 + $0x32] sm:$0xff]
      %v1035 = vld [vmem:[%s304 + $0x42] sm:$0xff]
      %v1036 = vld [vmem:[%s304 + $0x52] sm:$0xff]
      %v1037 = vld [vmem:[%s304 + $0x62] sm:$0xff]
      %v1038 = vld [vmem:[%s304 + $0x72] sm:$0xff]
      %s1039 = scalar_lea.vmem %s3, 40
      %v1040 = vld [vmem:[%s1039] sm:$0xff]
      %v1042 = vsel %vm282, %v1031, 0
      %v1045 = vsel %vm282, %v1032, 0
      %v1048 = vsel %vm282, %v1033, 0
      %v1051 = vsel %vm282, %v1034, 0
      %v1054 = vsel %vm282, %v1035, 0
      %v1057 = vsel %vm282, %v1036, 0
      %v1060 = vsel %vm282, %v1037, 0
      %v1063 = vsel %vm282, %v1038, 0
      %1065 = vmatprep.subr.mxu0 0.0
      %1066 = vmatpush1.msra.mxu0 %v1040
      %1067 = vmatprep.subr.mxu0 0.0
      %1068 = vmatpush1.msra.mxu0 0.0
      %1069 = vmatprep.subr.mxu0 0.0
      %1070 = vmatpush1.msra.mxu0 0.0
      %1071 = vmatprep.subr.mxu0 0.0
      %1072 = vmatpush1.msra.mxu0 0.0
      %1073 = vmatprep.subr.mxu0 0.0
      %1074 = vmatpush1.msra.mxu0 0.0
      %1075 = vmatprep.subr.mxu0 0.0
      %1076 = vmatpush1.msra.mxu0 0.0
      %1077 = vmatprep.subr.mxu0 0.0
      %1078 = vmatpush1.msra.mxu0 0.0
      %1079 = vmatprep.subr.mxu0 0.0
      %1080 = vmatpush1.msra.mxu0 0.0
      %1081 = vmatprep.subr.mxu0 0.0
      %1082 = vmatpush1.msra.mxu0 0.0
      %1083 = vmatprep.subr.mxu0 0.0
      %1084 = vmatpush1.msra.mxu0 0.0
      %1085 = vmatprep.subr.mxu0 0.0
      %1086 = vmatpush1.msra.mxu0 0.0
      %1087 = vmatprep.subr.mxu0 0.0
      %1088 = vmatpush1.msra.mxu0 0.0
      %1089 = vmatprep.subr.mxu0 0.0
      %1090 = vmatpush1.msra.mxu0 0.0
      %1091 = vmatprep.subr.mxu0 0.0
      %1092 = vmatpush1.msra.mxu0 0.0
      %1093 = vmatprep.subr.mxu0 0.0
      %1094 = vmatpush1.msra.mxu0 0.0
      %1095 = vmatprep.subr.mxu0 0.0
      %1096 = vmatpush1.msra.mxu0 0.0
      %1097 = vmatprep.subr.mxu0 0.0
      %1098 = vmatpush1.msra.mxu0 0.0
      %1099 = vmatprep.subr.mxu0 0.0
      %1100 = vmatpush1.msra.mxu0 0.0
      %1101 = vmatprep.subr.mxu0 0.0
      %1102 = vmatpush1.msra.mxu0 0.0
      %1103 = vmatprep.subr.mxu0 0.0
      %1104 = vmatpush1.msra.mxu0 0.0
      %1105 = vmatprep.subr.mxu0 0.0
      %1106 = vmatpush1.msra.mxu0 0.0
      %1107 = vmatprep.subr.mxu0 0.0
      %1108 = vmatpush1.msra.mxu0 0.0
      %1109 = vmatprep.subr.mxu0 0.0
      %1110 = vmatpush1.msra.mxu0 0.0
      %1111 = vmatprep.subr.mxu0 0.0
      %1112 = vmatpush1.msra.mxu0 0.0
      %1113 = vmatprep.subr.mxu0 0.0
      %1114 = vmatpush1.msra.mxu0 0.0
      %1115 = vmatprep.subr.mxu0 0.0
      %1116 = vmatpush1.msra.mxu0 0.0
      %1117 = vmatprep.subr.mxu0 0.0
      %1118 = vmatpush1.msra.mxu0 0.0
      %1119 = vmatprep.subr.mxu0 0.0
      %1120 = vmatpush1.msra.mxu0 0.0
      %1121 = vmatprep.subr.mxu0 0.0
      %1122 = vmatpush1.msra.mxu0 0.0
      %1123 = vmatprep.subr.mxu0 0.0
      %1124 = vmatpush1.msra.mxu0 0.0
      %1125 = vmatprep.subr.mxu0 0.0
      %1126 = vmatpush1.msra.mxu0 0.0
      %1127 = vmatprep.subr.mxu0 0.0
      %1128 = vmatpush1.msra.mxu0 0.0
      %1129 = vmatprep.mubr.f32.mxu0 0.0
      %1130 = vmatmul.mubr.f32.gmra.mrb[0].mxu0 %v1042
      %v1131 = vpop.f32.mrb[0].mxu0
      %v1132 = vadd.f32 0.0, %v1131
      %v1133 = vpop.f32.mrb[0].mxu0
      %1134 = vmatprep.mubr.f32.mxu0 0.0
      %1135 = vmatmul.mubr.f32.gmra.mrb[0].mxu0 %v1045
      %v1136 = vpop.f32.mrb[0].mxu0
      %v1137 = vadd.f32 0.0, %v1136
      %v1138 = vpop.f32.mrb[0].mxu0
      %1139 = vmatprep.mubr.f32.mxu0 0.0
      %1140 = vmatmul.mubr.f32.gmra.mrb[0].mxu0 %v1048
      %v1141 = vpop.f32.mrb[0].mxu0
      %v1142 = vadd.f32 0.0, %v1141
      %v1143 = vpop.f32.mrb[0].mxu0
      %1144 = vmatprep.mubr.f32.mxu0 0.0
      %1145 = vmatmul.mubr.f32.gmra.mrb[0].mxu0 %v1051
      %v1146 = vpop.f32.mrb[0].mxu0
      %v1147 = vadd.f32 0.0, %v1146
      %v1148 = vpop.f32.mrb[0].mxu0
      %1149 = vmatprep.mubr.f32.mxu0 0.0
      %1150 = vmatmul.mubr.f32.gmra.mrb[0].mxu0 %v1054
      %v1151 = vpop.f32.mrb[0].mxu0
      %v1152 = vadd.f32 0.0, %v1151
      %v1153 = vpop.f32.mrb[0].mxu0
      %1154 = vmatprep.mubr.f32.mxu0 0.0
      %1155 = vmatmul.mubr.f32.gmra.mrb[0].mxu0 %v1057
      %v1156 = vpop.f32.mrb[0].mxu0
      %v1157 = vadd.f32 0.0, %v1156
      %v1158 = vpop.f32.mrb[0].mxu0
      %1159 = vmatprep.mubr.f32.mxu0 0.0
      %1160 = vmatmul.mubr.f32.gmra.mrb[0].mxu0 %v1060
      %v1161 = vpop.f32.mrb[0].mxu0
      %v1162 = vadd.f32 0.0, %v1161
      %v1163 = vpop.f32.mrb[0].mxu0
      %1164 = vmatprep.mubr.f32.mxu0 0.0
      %1165 = vmatmul.mubr.f32.gmra.mrb[0].mxu0 %v1063
      %v1166 = vpop.f32.mrb[0].mxu0
      %v1167 = vadd.f32 0.0, %v1166
      %v1168 = vpop.f32.mrb[0].mxu0
      %1169 = vdwg.mxu0
      %v1170 = vadd.f32 %v1023, %v1132
      %v1171 = vadd.f32 %v1024, %v1137
      %v1172 = vadd.f32 %v1025, %v1142
      %v1173 = vadd.f32 %v1026, %v1147
      %v1174 = vadd.f32 %v1027, %v1152
      %v1175 = vadd.f32 %v1028, %v1157
      %v1176 = vadd.f32 %v1029, %v1162
      %v1177 = vadd.f32 %v1030, %v1167
      %s1178 = scalar_lea.vmem [#allocation2], 32
      %v1179 = vld [vmem:[%s1178] sm:$0xff]
      %v1180 = vld [vmem:[%s1178 + $0x10] sm:$0xff]
      %v1181 = vld [vmem:[%s1178 + $0x20] sm:$0xff]
      %v1182 = vld [vmem:[%s1178 + $0x30] sm:$0xff]
      %v1183 = vld [vmem:[%s1178 + $0x40] sm:$0xff]
      %v1184 = vld [vmem:[%s1178 + $0x50] sm:$0xff]
      %v1185 = vld [vmem:[%s1178 + $0x60] sm:$0xff]
      %v1186 = vld [vmem:[%s1178 + $0x70] sm:$0xff]
      %s1187 = scalar_lea.vmem %s3, 48
      %v1188 = vld [vmem:[%s1187] sm:$0xff]
      %v1190 = vsel %vm282, %v1179, 0
      %v1193 = vsel %vm282, %v1180, 0
      %v1196 = vsel %vm282, %v1181, 0
      %v1199 = vsel %vm282, %v1182, 0
      %v1202 = vsel %vm282, %v1183, 0
      %v1205 = vsel %vm282, %v1184, 0
      %v1208 = vsel %vm282, %v1185, 0
      %v1211 = vsel %vm282, %v1186, 0
      %1213 = vmatprep.subr.mxu0 0.0
      %1214 = vmatpush1.msra.mxu0 %v1188
      %1215 = vmatprep.subr.mxu0 0.0
      %1216 = vmatpush1.msra.mxu0 0.0
      %1217 = vmatprep.subr.mxu0 0.0
      %1218 = vmatpush1.msra.mxu0 0.0
      %1219 = vmatprep.subr.mxu0 0.0
      %1220 = vmatpush1.msra.mxu0 0.0
      %1221 = vmatprep.subr.mxu0 0.0
      %1222 = vmatpush1.msra.mxu0 0.0
      %1223 = vmatprep.subr.mxu0 0.0
      %1224 = vmatpush1.msra.mxu0 0.0
      %1225 = vmatprep.subr.mxu0 0.0
      %1226 = vmatpush1.msra.mxu0 0.0
      %1227 = vmatprep.subr.mxu0 0.0
      %1228 = vmatpush1.msra.mxu0 0.0
      %1229 = vmatprep.subr.mxu0 0.0
      %1230 = vmatpush1.msra.mxu0 0.0
      %1231 = vmatprep.subr.mxu0 0.0
      %1232 = vmatpush1.msra.mxu0 0.0
      %1233 = vmatprep.subr.mxu0 0.0
      %1234 = vmatpush1.msra.mxu0 0.0
      %1235 = vmatprep.subr.mxu0 0.0
      %1236 = vmatpush1.msra.mxu0 0.0
      %1237 = vmatprep.subr.mxu0 0.0
      %1238 = vmatpush1.msra.mxu0 0.0
      %1239 = vmatprep.subr.mxu0 0.0
      %1240 = vmatpush1.msra.mxu0 0.0
      %1241 = vmatprep.subr.mxu0 0.0
      %1242 = vmatpush1.msra.mxu0 0.0
      %1243 = vmatprep.subr.mxu0 0.0
      %1244 = vmatpush1.msra.mxu0 0.0
      %1245 = vmatprep.subr.mxu0 0.0
      %1246 = vmatpush1.msra.mxu0 0.0
      %1247 = vmatprep.subr.mxu0 0.0
      %1248 = vmatpush1.msra.mxu0 0.0
      %1249 = vmatprep.subr.mxu0 0.0
      %1250 = vmatpush1.msra.mxu0 0.0
      %1251 = vmatprep.subr.mxu0 0.0
      %1252 = vmatpush1.msra.mxu0 0.0
      %1253 = vmatprep.subr.mxu0 0.0
      %1254 = vmatpush1.msra.mxu0 0.0
      %1255 = vmatprep.subr.mxu0 0.0
      %1256 = vmatpush1.msra.mxu0 0.0
      %1257 = vmatprep.subr.mxu0 0.0
      %1258 = vmatpush1.msra.mxu0 0.0
      %1259 = vmatprep.subr.mxu0 0.0
      %1260 = vmatpush1.msra.mxu0 0.0
      %1261 = vmatprep.subr.mxu0 0.0
      %1262 = vmatpush1.msra.mxu0 0.0
      %1263 = vmatprep.subr.mxu0 0.0
      %1264 = vmatpush1.msra.mxu0 0.0
      %1265 = vmatprep.subr.mxu0 0.0
      %1266 = vmatpush1.msra.mxu0 0.0
      %1267 = vmatprep.subr.mxu0 0.0
      %1268 = vmatpush1.msra.mxu0 0.0
      %1269 = vmatprep.subr.mxu0 0.0
      %1270 = vmatpush1.msra.mxu0 0.0
      %1271 = vmatprep.subr.mxu0 0.0
      %1272 = vmatpush1.msra.mxu0 0.0
      %1273 = vmatprep.subr.mxu0 0.0
      %1274 = vmatpush1.msra.mxu0 0.0
      %1275 = vmatprep.subr.mxu0 0.0
      %1276 = vmatpush1.msra.mxu0 0.0
      %1277 = vmatprep.mubr.f32.mxu0 0.0
      %1278 = vmatmul.mubr.f32.gmra.mrb[0].mxu0 %v1190
      %v1279 = vpop.f32.mrb[0].mxu0
      %v1280 = vadd.f32 0.0, %v1279
      %v1281 = vpop.f32.mrb[0].mxu0
      %1282 = vmatprep.mubr.f32.mxu0 0.0
      %1283 = vmatmul.mubr.f32.gmra.mrb[0].mxu0 %v1193
      %v1284 = vpop.f32.mrb[0].mxu0
      %v1285 = vadd.f32 0.0, %v1284
      %v1286 = vpop.f32.mrb[0].mxu0
      %1287 = vmatprep.mubr.f32.mxu0 0.0
      %1288 = vmatmul.mubr.f32.gmra.mrb[0].mxu0 %v1196
      %v1289 = vpop.f32.mrb[0].mxu0
      %v1290 = vadd.f32 0.0, %v1289
      %v1291 = vpop.f32.mrb[0].mxu0
      %1292 = vmatprep.mubr.f32.mxu0 0.0
      %1293 = vmatmul.mubr.f32.gmra.mrb[0].mxu0 %v1199
      %v1294 = vpop.f32.mrb[0].mxu0
      %v1295 = vadd.f32 0.0, %v1294
      %v1296 = vpop.f32.mrb[0].mxu0
      %1297 = vmatprep.mubr.f32.mxu0 0.0
      %1298 = vmatmul.mubr.f32.gmra.mrb[0].mxu0 %v1202
      %v1299 = vpop.f32.mrb[0].mxu0
      %v1300 = vadd.f32 0.0, %v1299
      %v1301 = vpop.f32.mrb[0].mxu0
      %1302 = vmatprep.mubr.f32.mxu0 0.0
      %1303 = vmatmul.mubr.f32.gmra.mrb[0].mxu0 %v1205
      %v1304 = vpop.f32.mrb[0].mxu0
      %v1305 = vadd.f32 0.0, %v1304
      %v1306 = vpop.f32.mrb[0].mxu0
      %1307 = vmatprep.mubr.f32.mxu0 0.0
      %1308 = vmatmul.mubr.f32.gmra.mrb[0].mxu0 %v1208
      %v1309 = vpop.f32.mrb[0].mxu0
      %v1310 = vadd.f32 0.0, %v1309
      %v1311 = vpop.f32.mrb[0].mxu0
      %1312 = vmatprep.mubr.f32.mxu0 0.0
      %1313 = vmatmul.mubr.f32.gmra.mrb[0].mxu0 %v1211
      %v1314 = vpop.f32.mrb[0].mxu0
      %v1315 = vadd.f32 0.0, %v1314
      %v1316 = vpop.f32.mrb[0].mxu0
      %1317 = vdwg.mxu0
      %v1318 = vadd.f32 %v1170, %v1280
      %v1319 = vadd.f32 %v1171, %v1285
      %v1320 = vadd.f32 %v1172, %v1290
      %v1321 = vadd.f32 %v1173, %v1295
      %v1322 = vadd.f32 %v1174, %v1300
      %v1323 = vadd.f32 %v1175, %v1305
      %v1324 = vadd.f32 %v1176, %v1310
      %v1325 = vadd.f32 %v1177, %v1315
      %v1326 = vld [vmem:[%s1178 + $0x1] sm:$0xff]
      %v1327 = vld [vmem:[%s1178 + $0x11] sm:$0xff]
      %v1328 = vld [vmem:[%s1178 + $0x21] sm:$0xff]
      %v1329 = vld [vmem:[%s1178 + $0x31] sm:$0xff]
      %v1330 = vld [vmem:[%s1178 + $0x41] sm:$0xff]
      %v1331 = vld [vmem:[%s1178 + $0x51] sm:$0xff]
      %v1332 = vld [vmem:[%s1178 + $0x61] sm:$0xff]
      %v1333 = vld [vmem:[%s1178 + $0x71] sm:$0xff]
      %s1334 = scalar_lea.vmem %s3, 56
      %v1335 = vld [vmem:[%s1334] sm:$0xff]
      %v1337 = vsel %vm282, %v1326, 0
      %v1340 = vsel %vm282, %v1327, 0
      %v1343 = vsel %vm282, %v1328, 0
      %v1346 = vsel %vm282, %v1329, 0
      %v1349 = vsel %vm282, %v1330, 0
      %v1352 = vsel %vm282, %v1331, 0
      %v1355 = vsel %vm282, %v1332, 0
      %v1358 = vsel %vm282, %v1333, 0
      %1360 = vmatprep.subr.mxu0 0.0
      %1361 = vmatpush1.msra.mxu0 %v1335
      %1362 = vmatprep.subr.mxu0 0.0
      %1363 = vmatpush1.msra.mxu0 0.0
      %1364 = vmatprep.subr.mxu0 0.0
      %1365 = vmatpush1.msra.mxu0 0.0
      %1366 = vmatprep.subr.mxu0 0.0
      %1367 = vmatpush1.msra.mxu0 0.0
      %1368 = vmatprep.subr.mxu0 0.0
      %1369 = vmatpush1.msra.mxu0 0.0
      %1370 = vmatprep.subr.mxu0 0.0
      %1371 = vmatpush1.msra.mxu0 0.0
      %1372 = vmatprep.subr.mxu0 0.0
      %1373 = vmatpush1.msra.mxu0 0.0
      %1374 = vmatprep.subr.mxu0 0.0
      %1375 = vmatpush1.msra.mxu0 0.0
      %1376 = vmatprep.subr.mxu0 0.0
      %1377 = vmatpush1.msra.mxu0 0.0
      %1378 = vmatprep.subr.mxu0 0.0
      %1379 = vmatpush1.msra.mxu0 0.0
      %1380 = vmatprep.subr.mxu0 0.0
      %1381 = vmatpush1.msra.mxu0 0.0
      %1382 = vmatprep.subr.mxu0 0.0
      %1383 = vmatpush1.msra.mxu0 0.0
      %1384 = vmatprep.subr.mxu0 0.0
      %1385 = vmatpush1.msra.mxu0 0.0
      %1386 = vmatprep.subr.mxu0 0.0
      %1387 = vmatpush1.msra.mxu0 0.0
      %1388 = vmatprep.subr.mxu0 0.0
      %1389 = vmatpush1.msra.mxu0 0.0
      %1390 = vmatprep.subr.mxu0 0.0
      %1391 = vmatpush1.msra.mxu0 0.0
      %1392 = vmatprep.subr.mxu0 0.0
      %1393 = vmatpush1.msra.mxu0 0.0
      %1394 = vmatprep.subr.mxu0 0.0
      %1395 = vmatpush1.msra.mxu0 0.0
      %1396 = vmatprep.subr.mxu0 0.0
      %1397 = vmatpush1.msra.mxu0 0.0
      %1398 = vmatprep.subr.mxu0 0.0
      %1399 = vmatpush1.msra.mxu0 0.0
      %1400 = vmatprep.subr.mxu0 0.0
      %1401 = vmatpush1.msra.mxu0 0.0
      %1402 = vmatprep.subr.mxu0 0.0
      %1403 = vmatpush1.msra.mxu0 0.0
      %1404 = vmatprep.subr.mxu0 0.0
      %1405 = vmatpush1.msra.mxu0 0.0
      %1406 = vmatprep.subr.mxu0 0.0
      %1407 = vmatpush1.msra.mxu0 0.0
      %1408 = vmatprep.subr.mxu0 0.0
      %1409 = vmatpush1.msra.mxu0 0.0
      %1410 = vmatprep.subr.mxu0 0.0
      %1411 = vmatpush1.msra.mxu0 0.0
      %1412 = vmatprep.subr.mxu0 0.0
      %1413 = vmatpush1.msra.mxu0 0.0
      %1414 = vmatprep.subr.mxu0 0.0
      %1415 = vmatpush1.msra.mxu0 0.0
      %1416 = vmatprep.subr.mxu0 0.0
      %1417 = vmatpush1.msra.mxu0 0.0
      %1418 = vmatprep.subr.mxu0 0.0
      %1419 = vmatpush1.msra.mxu0 0.0
      %1420 = vmatprep.subr.mxu0 0.0
      %1421 = vmatpush1.msra.mxu0 0.0
      %1422 = vmatprep.subr.mxu0 0.0
      %1423 = vmatpush1.msra.mxu0 0.0
      %1424 = vmatprep.mubr.f32.mxu0 0.0
      %1425 = vmatmul.mubr.f32.gmra.mrb[0].mxu0 %v1337
      %v1426 = vpop.f32.mrb[0].mxu0
      %v1427 = vadd.f32 0.0, %v1426
      %v1428 = vpop.f32.mrb[0].mxu0
      %1429 = vmatprep.mubr.f32.mxu0 0.0
      %1430 = vmatmul.mubr.f32.gmra.mrb[0].mxu0 %v1340
      %v1431 = vpop.f32.mrb[0].mxu0
      %v1432 = vadd.f32 0.0, %v1431
      %v1433 = vpop.f32.mrb[0].mxu0
      %1434 = vmatprep.mubr.f32.mxu0 0.0
      %1435 = vmatmul.mubr.f32.gmra.mrb[0].mxu0 %v1343
      %v1436 = vpop.f32.mrb[0].mxu0
      %v1437 = vadd.f32 0.0, %v1436
      %v1438 = vpop.f32.mrb[0].mxu0
      %1439 = vmatprep.mubr.f32.mxu0 0.0
      %1440 = vmatmul.mubr.f32.gmra.mrb[0].mxu0 %v1346
      %v1441 = vpop.f32.mrb[0].mxu0
      %v1442 = vadd.f32 0.0, %v1441
      %v1443 = vpop.f32.mrb[0].mxu0
      %1444 = vmatprep.mubr.f32.mxu0 0.0
      %1445 = vmatmul.mubr.f32.gmra.mrb[0].mxu0 %v1349
      %v1446 = vpop.f32.mrb[0].mxu0
      %v1447 = vadd.f32 0.0, %v1446
      %v1448 = vpop.f32.mrb[0].mxu0
      %1449 = vmatprep.mubr.f32.mxu0 0.0
      %1450 = vmatmul.mubr.f32.gmra.mrb[0].mxu0 %v1352
      %v1451 = vpop.f32.mrb[0].mxu0
      %v1452 = vadd.f32 0.0, %v1451
      %v1453 = vpop.f32.mrb[0].mxu0
      %1454 = vmatprep.mubr.f32.mxu0 0.0
      %1455 = vmatmul.mubr.f32.gmra.mrb[0].mxu0 %v1355
      %v1456 = vpop.f32.mrb[0].mxu0
      %v1457 = vadd.f32 0.0, %v1456
      %v1458 = vpop.f32.mrb[0].mxu0
      %1459 = vmatprep.mubr.f32.mxu0 0.0
      %1460 = vmatmul.mubr.f32.gmra.mrb[0].mxu0 %v1358
      %v1461 = vpop.f32.mrb[0].mxu0
      %v1462 = vadd.f32 0.0, %v1461
      %v1463 = vpop.f32.mrb[0].mxu0
      %1464 = vdwg.mxu0
      %v1465 = vadd.f32 %v1318, %v1427
      %v1466 = vadd.f32 %v1319, %v1432
      %v1467 = vadd.f32 %v1320, %v1437
      %v1468 = vadd.f32 %v1321, %v1442
      %v1469 = vadd.f32 %v1322, %v1447
      %v1470 = vadd.f32 %v1323, %v1452
      %v1471 = vadd.f32 %v1324, %v1457
      %v1472 = vadd.f32 %v1325, %v1462
      %v1473 = vld [vmem:[%s1178 + $0x2] sm:$0xff]
      %v1474 = vld [vmem:[%s1178 + $0x12] sm:$0xff]
      %v1475 = vld [vmem:[%s1178 + $0x22] sm:$0xff]
      %v1476 = vld [vmem:[%s1178 + $0x32] sm:$0xff]
      %v1477 = vld [vmem:[%s1178 + $0x42] sm:$0xff]
      %v1478 = vld [vmem:[%s1178 + $0x52] sm:$0xff]
      %v1479 = vld [vmem:[%s1178 + $0x62] sm:$0xff]
      %v1480 = vld [vmem:[%s1178 + $0x72] sm:$0xff]
      %s1481 = scalar_lea.vmem %s3, 64
      %v1482 = vld [vmem:[%s1481] sm:$0xff]
      %v1484 = vsel %vm282, %v1473, 0
      %v1487 = vsel %vm282, %v1474, 0
      %v1490 = vsel %vm282, %v1475, 0
      %v1493 = vsel %vm282, %v1476, 0
      %v1496 = vsel %vm282, %v1477, 0
      %v1499 = vsel %vm282, %v1478, 0
      %v1502 = vsel %vm282, %v1479, 0
      %v1505 = vsel %vm282, %v1480, 0
      %1507 = vmatprep.subr.mxu0 0.0
      %1508 = vmatpush1.msra.mxu0 %v1482
      %1509 = vmatprep.subr.mxu0 0.0
      %1510 = vmatpush1.msra.mxu0 0.0
      %1511 = vmatprep.subr.mxu0 0.0
      %1512 = vmatpush1.msra.mxu0 0.0
      %1513 = vmatprep.subr.mxu0 0.0
      %1514 = vmatpush1.msra.mxu0 0.0
      %1515 = vmatprep.subr.mxu0 0.0
      %1516 = vmatpush1.msra.mxu0 0.0
      %1517 = vmatprep.subr.mxu0 0.0
      %1518 = vmatpush1.msra.mxu0 0.0
      %1519 = vmatprep.subr.mxu0 0.0
      %1520 = vmatpush1.msra.mxu0 0.0
      %1521 = vmatprep.subr.mxu0 0.0
      %1522 = vmatpush1.msra.mxu0 0.0
      %1523 = vmatprep.subr.mxu0 0.0
      %1524 = vmatpush1.msra.mxu0 0.0
      %1525 = vmatprep.subr.mxu0 0.0
      %1526 = vmatpush1.msra.mxu0 0.0
      %1527 = vmatprep.subr.mxu0 0.0
      %1528 = vmatpush1.msra.mxu0 0.0
      %1529 = vmatprep.subr.mxu0 0.0
      %1530 = vmatpush1.msra.mxu0 0.0
      %1531 = vmatprep.subr.mxu0 0.0
      %1532 = vmatpush1.msra.mxu0 0.0
      %1533 = vmatprep.subr.mxu0 0.0
      %1534 = vmatpush1.msra.mxu0 0.0
      %1535 = vmatprep.subr.mxu0 0.0
      %1536 = vmatpush1.msra.mxu0 0.0
      %1537 = vmatprep.subr.mxu0 0.0
      %1538 = vmatpush1.msra.mxu0 0.0
      %1539 = vmatprep.subr.mxu0 0.0
      %1540 = vmatpush1.msra.mxu0 0.0
      %1541 = vmatprep.subr.mxu0 0.0
      %1542 = vmatpush1.msra.mxu0 0.0
      %1543 = vmatprep.subr.mxu0 0.0
      %1544 = vmatpush1.msra.mxu0 0.0
      %1545 = vmatprep.subr.mxu0 0.0
      %1546 = vmatpush1.msra.mxu0 0.0
      %1547 = vmatprep.subr.mxu0 0.0
      %1548 = vmatpush1.msra.mxu0 0.0
      %1549 = vmatprep.subr.mxu0 0.0
      %1550 = vmatpush1.msra.mxu0 0.0
      %1551 = vmatprep.subr.mxu0 0.0
      %1552 = vmatpush1.msra.mxu0 0.0
      %1553 = vmatprep.subr.mxu0 0.0
      %1554 = vmatpush1.msra.mxu0 0.0
      %1555 = vmatprep.subr.mxu0 0.0
      %1556 = vmatpush1.msra.mxu0 0.0
      %1557 = vmatprep.subr.mxu0 0.0
      %1558 = vmatpush1.msra.mxu0 0.0
      %1559 = vmatprep.subr.mxu0 0.0
      %1560 = vmatpush1.msra.mxu0 0.0
      %1561 = vmatprep.subr.mxu0 0.0
      %1562 = vmatpush1.msra.mxu0 0.0
      %1563 = vmatprep.subr.mxu0 0.0
      %1564 = vmatpush1.msra.mxu0 0.0
      %1565 = vmatprep.subr.mxu0 0.0
      %1566 = vmatpush1.msra.mxu0 0.0
      %1567 = vmatprep.subr.mxu0 0.0
      %1568 = vmatpush1.msra.mxu0 0.0
      %1569 = vmatprep.subr.mxu0 0.0
      %1570 = vmatpush1.msra.mxu0 0.0
      %1571 = vmatprep.mubr.f32.mxu0 0.0
      %1572 = vmatmul.mubr.f32.gmra.mrb[0].mxu0 %v1484
      %v1573 = vpop.f32.mrb[0].mxu0
      %v1574 = vadd.f32 0.0, %v1573
      %v1575 = vpop.f32.mrb[0].mxu0
      %1576 = vmatprep.mubr.f32.mxu0 0.0
      %1577 = vmatmul.mubr.f32.gmra.mrb[0].mxu0 %v1487
      %v1578 = vpop.f32.mrb[0].mxu0
      %v1579 = vadd.f32 0.0, %v1578
      %v1580 = vpop.f32.mrb[0].mxu0
      %1581 = vmatprep.mubr.f32.mxu0 0.0
      %1582 = vmatmul.mubr.f32.gmra.mrb[0].mxu0 %v1490
      %v1583 = vpop.f32.mrb[0].mxu0
      %v1584 = vadd.f32 0.0, %v1583
      %v1585 = vpop.f32.mrb[0].mxu0
      %1586 = vmatprep.mubr.f32.mxu0 0.0
      %1587 = vmatmul.mubr.f32.gmra.mrb[0].mxu0 %v1493
      %v1588 = vpop.f32.mrb[0].mxu0
      %v1589 = vadd.f32 0.0, %v1588
      %v1590 = vpop.f32.mrb[0].mxu0
      %1591 = vmatprep.mubr.f32.mxu0 0.0
      %1592 = vmatmul.mubr.f32.gmra.mrb[0].mxu0 %v1496
      %v1593 = vpop.f32.mrb[0].mxu0
      %v1594 = vadd.f32 0.0, %v1593
      %v1595 = vpop.f32.mrb[0].mxu0
      %1596 = vmatprep.mubr.f32.mxu0 0.0
      %1597 = vmatmul.mubr.f32.gmra.mrb[0].mxu0 %v1499
      %v1598 = vpop.f32.mrb[0].mxu0
      %v1599 = vadd.f32 0.0, %v1598
      %v1600 = vpop.f32.mrb[0].mxu0
      %1601 = vmatprep.mubr.f32.mxu0 0.0
      %1602 = vmatmul.mubr.f32.gmra.mrb[0].mxu0 %v1502
      %v1603 = vpop.f32.mrb[0].mxu0
      %v1604 = vadd.f32 0.0, %v1603
      %v1605 = vpop.f32.mrb[0].mxu0
      %1606 = vmatprep.mubr.f32.mxu0 0.0
      %1607 = vmatmul.mubr.f32.gmra.mrb[0].mxu0 %v1505
      %v1608 = vpop.f32.mrb[0].mxu0
      %v1609 = vadd.f32 0.0, %v1608
      %v1610 = vpop.f32.mrb[0].mxu0
      %1611 = vdwg.mxu0
      %v1612 = vadd.f32 %v1465, %v1574
      %v1613 = vadd.f32 %v1466, %v1579
      %v1614 = vadd.f32 %v1467, %v1584
      %v1615 = vadd.f32 %v1468, %v1589
      %v1616 = vadd.f32 %v1469, %v1594
      %v1617 = vadd.f32 %v1470, %v1599
      %v1618 = vadd.f32 %v1471, %v1604
      %v1619 = vadd.f32 %v1472, %v1609
      %1620 = vst.msk [vmem:[%s231] sm:$0xff] %vm282, %v1612
      %1621 = vst.msk [vmem:[%s231 + $0x8] sm:$0xff] %vm282, %v1613
      %1622 = vst.msk [vmem:[%s231 + $0x10] sm:$0xff] %vm282, %v1614
      %1623 = vst.msk [vmem:[%s231 + $0x18] sm:$0xff] %vm282, %v1615
      %1624 = vst.msk [vmem:[%s231 + $0x20] sm:$0xff] %vm282, %v1616
      %1625 = vst.msk [vmem:[%s231 + $0x28] sm:$0xff] %vm282, %v1617
      %1626 = vst.msk [vmem:[%s231 + $0x30] sm:$0xff] %vm282, %v1618
      %1627 = vst.msk [vmem:[%s231 + $0x38] sm:$0xff] %vm282, %v1619
      %v1628 = vsel %vm282, %v1612, 0.0
      %v1629 = vsel %vm282, %v1613, 0.0
      %v1630 = vadd.f32 %v1628, %v1629
      %v1631 = vsel %vm282, %v1614, 0.0
      %v1632 = vadd.f32 %v1630, %v1631
      %v1633 = vsel %vm282, %v1615, 0.0
      %v1634 = vadd.f32 %v1632, %v1633
      %v1635 = vsel %vm282, %v1616, 0.0
      %v1636 = vadd.f32 %v1634, %v1635
      %v1637 = vsel %vm282, %v1617, 0.0
      %v1638 = vadd.f32 %v1636, %v1637
      %v1639 = vsel %vm282, %v1618, 0.0
      %v1640 = vadd.f32 %v1638, %v1639
      %v1641 = vsel %vm282, %v1619, 0.0
      %v1642 = vadd.f32 %v1640, %v1641
      %v1643 = vrot.slane %v1642, 4
      %v1644 = vadd.f32 %v1642, %v1643
      %v1645 = vrot.slane %v1644, 2
      %v1646 = vadd.f32 %v1644, %v1645
      %v1647 = vrot.slane %v1646, 1
      %v1648 = vadd.f32 %v1646, %v1647
      %vm1649 = vcmask 57344
      %1650 = vst.msk [vmem:[%s235] sm:$0x1] %vm1649, %v1648
      %v1651 = vmul.f32 %v1612, %v1612
      %v1652 = vmul.f32 %v1613, %v1613
      %v1653 = vmul.f32 %v1614, %v1614
      %v1654 = vmul.f32 %v1615, %v1615
      %v1655 = vmul.f32 %v1616, %v1616
      %v1656 = vmul.f32 %v1617, %v1617
      %v1657 = vmul.f32 %v1618, %v1618
      %v1658 = vmul.f32 %v1619, %v1619
      %v1659 = vsel %vm282, %v1651, 0.0
      %v1660 = vsel %vm282, %v1652, 0.0
      %v1661 = vadd.f32 %v1659, %v1660
      %v1662 = vsel %vm282, %v1653, 0.0
      %v1663 = vadd.f32 %v1661, %v1662
      %v1664 = vsel %vm282, %v1654, 0.0
      %v1665 = vadd.f32 %v1663, %v1664
      %v1666 = vsel %vm282, %v1655, 0.0
      %v1667 = vadd.f32 %v1665, %v1666
      %v1668 = vsel %vm282, %v1656, 0.0
      %v1669 = vadd.f32 %v1667, %v1668
      %v1670 = vsel %vm282, %v1657, 0.0
      %v1671 = vadd.f32 %v1669, %v1670
      %v1672 = vsel %vm282, %v1658, 0.0
      %v1673 = vadd.f32 %v1671, %v1672
      %v1674 = vrot.slane %v1673, 4
      %v1675 = vadd.f32 %v1673, %v1674
      %v1676 = vrot.slane %v1675, 2
      %v1677 = vadd.f32 %v1675, %v1676
      %v1678 = vrot.slane %v1677, 1
      %v1679 = vadd.f32 %v1677, %v1678
      %1680 = vst.msk [vmem:[%s235 + $0x1] sm:$0x1] %vm1649, %v1679
      %p1681 = scmp.lt.s32.totalorder %s17, 1
      %s1682 = scalar_select %p1681, %s17, 1
      %s1683 = smul.addr %s1682, 8
      %s1684 = smul.addr %s1683, 8
      %s1685 = scalar_lea.vmem %s4, %s1684
      %p1686 = scmp.lt.s32.totalorder %s17, 1
      %s1687 = scalar_select %p1686, %s17, 1
      %s1688 = smul.addr %s1687, 2
      %s1689 = scalar_lea.vmem %s5, %s1688
      // Predicated region
      $region37: #{downscale.6} parent=35 // pred_check
        %p1690 = pneg %p124
      $region38: #{downscale.6} parent=35 // pred_check_branch
        %1692 = sbr.rel (%p1690) target = $region40
      $region39: #{downscale.6} parent=35 // pred_region
        _
      $region40: #{downscale.6} parent=35 // pred_fallthru
        _
      // Predicated region
      $region41: #{downscale.6} parent=35 // pred_check
        %p1693 = pneg %p150
      $region42: #{downscale.6} parent=35 // pred_check_branch
        %1695 = sbr.rel (%p1693) target = $region44
      $region43: #{downscale.6} parent=35 // pred_region
        _
      $region44: #{downscale.6} parent=35 // pred_fallthru
        _
    $region36: #{downscale.6} parent=5 // pred_fallthru
      _
    %p1696 = scmp.le.s32.totalorder 2, %s12
    // Predicated region
    $region45: #{downscale.6} parent=5 // pred_check
      %p1697 = pneg %p1696
    $region46: #{downscale.6} parent=5 // pred_check_branch
      %1699 = sbr.rel (%p1697) target = $region48
    $region47: #{downscale.6} parent=5 // pred_region
      %s1700 = ssub.s32 %s12, 2
      // Predicated region
      $region49: #{downscale.6} parent=47 // pred_check
        %p1701 = pneg %p130
      $region50: #{downscale.6} parent=47 // pred_check_branch
        %1703 = sbr.rel (%p1701) target = $region52
      $region51: #{downscale.6} parent=47 // pred_region
        %p1704 = scmp.lt.s32.totalorder %s18, 1
        %s1705 = scalar_select %p1704, %s18, 1
        %s1706 = smul.addr %s1705, 8
        %s1707 = smul.addr %s1706, 8
        %s1708 = scalar_lea.vmem %s4, %s1707
      $region52: #{downscale.6} parent=47 // pred_fallthru
        _
      // Predicated region
      $region53: #{downscale.6} parent=47 // pred_check
        %p1709 = pneg %p156
      $region54: #{downscale.6} parent=47 // pred_check_branch
        %1711 = sbr.rel (%p1709) target = $region56
      $region55: #{downscale.6} parent=47 // pred_region
        %p1712 = scmp.lt.s32.totalorder %s18, 1
        %s1713 = scalar_select %p1712, %s18, 1
        %s1714 = smul.addr %s1713, 2
        %s1715 = scalar_lea.vmem %s5, %s1714
      $region56: #{downscale.6} parent=47 // pred_fallthru
        _
    $region48: #{downscale.6} parent=5 // pred_fallthru
      _
  $region6: #{downscale.6} parent=0 // loop_footer
    %s16 = sadd.s32 1, %s12
  $region7: #{downscale.6} parent=0 // loop_footer_branch
    %11 = sbr.rel target = $region3
  $region8: #{downscale.6} parent=0 // loop_exit
    _

// kernel: downscale.4
$region0: #{downscale.4}
  #allocation0 [shape = 'u32[]', space=smem, size = 0x4, offset = 0x4, fixed_abs, tag = 'smem constant byte address 0x4 - core index']
  #allocation1 [shape = 'u32[144,128]{1,0:T(1,128)}', space=vmem, size = 0x12000, scoped, tag = 'internal scratch']
  %s0 = inlined_call_operand.vmem [shape: f32[16,2,8,2,4], index: 0, kind: input, shape index: {}]
  %s1 = inlined_call_operand.vmem [shape: f32[16,8,4], index: 1, kind: output, shape index: {}]
  %s2 = sld [smem:[#allocation0]]
  $region14: #{downscale.4} parent=0
    _
  %s4 = ssub.s32 1, %s2
  %s5 = scalar_select 0, %s4, %s2
  // Predicated region
  $region2: #{downscale.4} parent=0 // pred_check
    _
  $region3: #{downscale.4} parent=0 // pred_check_branch
    %7 = sbr.rel (0) target = $region5
  $region4: #{downscale.4} parent=0 // pred_region
    _
  $region5: #{downscale.4} parent=0 // pred_fallthru
    _
  %v8 = vld [vmem:[%s0] sm:$0x1]
  %v9 = vld [vmem:[%s0 + $0x2] sm:$0x1]
  %v10 = vld [vmem:[%s0 + $0x4] sm:$0x1]
  %v11 = vld [vmem:[%s0 + $0x6] sm:$0x1]
  %v12 = vld [vmem:[%s0 + $0x8] sm:$0x1]
  %v13 = vld [vmem:[%s0 + $0xa] sm:$0x1]
  %v14 = vld [vmem:[%s0 + $0xc] sm:$0x1]
  %v15 = vld [vmem:[%s0 + $0xe] sm:$0x1]
  %v16 = vld [vmem:[%s0 + $0x20] sm:$0x1]
  %v17 = vld [vmem:[%s0 + $0x22] sm:$0x1]
  %v18 = vld [vmem:[%s0 + $0x24] sm:$0x1]
  %v19 = vld [vmem:[%s0 + $0x26] sm:$0x1]
  %v20 = vld [vmem:[%s0 + $0x28] sm:$0x1]
  %v21 = vld [vmem:[%s0 + $0x2a] sm:$0x1]
  %v22 = vld [vmem:[%s0 + $0x2c] sm:$0x1]
  %v23 = vld [vmem:[%s0 + $0x2e] sm:$0x1]
  %v24 = vld [vmem:[%s0 + $0x40] sm:$0x1]
  %v25 = vld [vmem:[%s0 + $0x42] sm:$0x1]
  %v26 = vld [vmem:[%s0 + $0x44] sm:$0x1]
  %v27 = vld [vmem:[%s0 + $0x46] sm:$0x1]
  %v28 = vld [vmem:[%s0 + $0x48] sm:$0x1]
  %v29 = vld [vmem:[%s0 + $0x4a] sm:$0x1]
  %v30 = vld [vmem:[%s0 + $0x4c] sm:$0x1]
  %v31 = vld [vmem:[%s0 + $0x4e] sm:$0x1]
  %v32 = vld [vmem:[%s0 + $0x60] sm:$0x1]
  %v33 = vld [vmem:[%s0 + $0x62] sm:$0x1]
  %v34 = vld [vmem:[%s0 + $0x64] sm:$0x1]
  %v35 = vld [vmem:[%s0 + $0x66] sm:$0x1]
  %v36 = vld [vmem:[%s0 + $0x68] sm:$0x1]
  %v37 = vld [vmem:[%s0 + $0x6a] sm:$0x1]
  %v38 = vld [vmem:[%s0 + $0x6c] sm:$0x1]
  %v39 = vld [vmem:[%s0 + $0x6e] sm:$0x1]
  %v40 = vld [vmem:[%s0 + $0x80] sm:$0x1]
  %v41 = vld [vmem:[%s0 + $0x82] sm:$0x1]
  %v42 = vld [vmem:[%s0 + $0x84] sm:$0x1]
  %v43 = vld [vmem:[%s0 + $0x86] sm:$0x1]
  %v44 = vld [vmem:[%s0 + $0x88] sm:$0x1]
  %v45 = vld [vmem:[%s0 + $0x8a] sm:$0x1]
  %v46 = vld [vmem:[%s0 + $0x8c] sm:$0x1]
  %v47 = vld [vmem:[%s0 + $0x8e] sm:$0x1]
  %v48 = vld [vmem:[%s0 + $0xa0] sm:$0x1]
  %v49 = vld [vmem:[%s0 + $0xa2] sm:$0x1]
  %v50 = vld [vmem:[%s0 + $0xa4] sm:$0x1]
  %v51 = vld [vmem:[%s0 + $0xa6] sm:$0x1]
  %v52 = vld [vmem:[%s0 + $0xa8] sm:$0x1]
  %v53 = vld [vmem:[%s0 + $0xaa] sm:$0x1]
  %v54 = vld [vmem:[%s0 + $0xac] sm:$0x1]
  %v55 = vld [vmem:[%s0 + $0xae] sm:$0x1]
  %v56 = vld [vmem:[%s0 + $0xc0] sm:$0x1]
  %v57 = vld [vmem:[%s0 + $0xc2] sm:$0x1]
  %v58 = vld [vmem:[%s0 + $0xc4] sm:$0x1]
  %v59 = vld [vmem:[%s0 + $0xc6] sm:$0x1]
  %v60 = vld [vmem:[%s0 + $0xc8] sm:$0x1]
  %v61 = vld [vmem:[%s0 + $0xca] sm:$0x1]
  %v62 = vld [vmem:[%s0 + $0xcc] sm:$0x1]
  %v63 = vld [vmem:[%s0 + $0xce] sm:$0x1]
  %v64 = vld [vmem:[%s0 + $0xe0] sm:$0x1]
  %v65 = vld [vmem:[%s0 + $0xe2] sm:$0x1]
  %v66 = vld [vmem:[%s0 + $0xe4] sm:$0x1]
  %v67 = vld [vmem:[%s0 + $0xe6] sm:$0x1]
  %v68 = vld [vmem:[%s0 + $0xe8] sm:$0x1]
  %v69 = vld [vmem:[%s0 + $0xea] sm:$0x1]
  %v70 = vld [vmem:[%s0 + $0xec] sm:$0x1]
  %v71 = vld [vmem:[%s0 + $0xee] sm:$0x1]
  %v72 = vld [vmem:[%s0 + $0x100] sm:$0x1]
  %v73 = vld [vmem:[%s0 + $0x102] sm:$0x1]
  %v74 = vld [vmem:[%s0 + $0x104] sm:$0x1]
  %v75 = vld [vmem:[%s0 + $0x106] sm:$0x1]
  %v76 = vld [vmem:[%s0 + $0x108] sm:$0x1]
  %v77 = vld [vmem:[%s0 + $0x10a] sm:$0x1]
  %v78 = vld [vmem:[%s0 + $0x10c] sm:$0x1]
  %v79 = vld [vmem:[%s0 + $0x10e] sm:$0x1]
  %v80 = vld [vmem:[%s0 + $0x120] sm:$0x1]
  %v81 = vld [vmem:[%s0 + $0x122] sm:$0x1]
  %v82 = vld [vmem:[%s0 + $0x124] sm:$0x1]
  %v83 = vld [vmem:[%s0 + $0x126] sm:$0x1]
  %v84 = vld [vmem:[%s0 + $0x128] sm:$0x1]
  %v85 = vld [vmem:[%s0 + $0x12a] sm:$0x1]
  %v86 = vld [vmem:[%s0 + $0x12c] sm:$0x1]
  %v87 = vld [vmem:[%s0 + $0x12e] sm:$0x1]
  %v88 = vld [vmem:[%s0 + $0x140] sm:$0x1]
  %v89 = vld [vmem:[%s0 + $0x142] sm:$0x1]
  %v90 = vld [vmem:[%s0 + $0x144] sm:$0x1]
  %v91 = vld [vmem:[%s0 + $0x146] sm:$0x1]
  %v92 = vld [vmem:[%s0 + $0x148] sm:$0x1]
  %v93 = vld [vmem:[%s0 + $0x14a] sm:$0x1]
  %v94 = vld [vmem:[%s0 + $0x14c] sm:$0x1]
  %v95 = vld [vmem:[%s0 + $0x14e] sm:$0x1]
  %v96 = vld [vmem:[%s0 + $0x160] sm:$0x1]
  %v97 = vld [vmem:[%s0 + $0x162] sm:$0x1]
  %v98 = vld [vmem:[%s0 + $0x164] sm:$0x1]
  %v99 = vld [vmem:[%s0 + $0x166] sm:$0x1]
  %v100 = vld [vmem:[%s0 + $0x168] sm:$0x1]
  %v101 = vld [vmem:[%s0 + $0x16a] sm:$0x1]
  %v102 = vld [vmem:[%s0 + $0x16c] sm:$0x1]
  %v103 = vld [vmem:[%s0 + $0x16e] sm:$0x1]
  %v104 = vld [vmem:[%s0 + $0x180] sm:$0x1]
  %v105 = vld [vmem:[%s0 + $0x182] sm:$0x1]
  %v106 = vld [vmem:[%s0 + $0x184] sm:$0x1]
  %v107 = vld [vmem:[%s0 + $0x186] sm:$0x1]
  %v108 = vld [vmem:[%s0 + $0x188] sm:$0x1]
  %v109 = vld [vmem:[%s0 + $0x18a] sm:$0x1]
  %v110 = vld [vmem:[%s0 + $0x18c] sm:$0x1]
  %v111 = vld [vmem:[%s0 + $0x18e] sm:$0x1]
  %v112 = vld [vmem:[%s0 + $0x1a0] sm:$0x1]
  %v113 = vld [vmem:[%s0 + $0x1a2] sm:$0x1]
  %v114 = vld [vmem:[%s0 + $0x1a4] sm:$0x1]
  %v115 = vld [vmem:[%s0 + $0x1a6] sm:$0x1]
  %v116 = vld [vmem:[%s0 + $0x1a8] sm:$0x1]
  %v117 = vld [vmem:[%s0 + $0x1aa] sm:$0x1]
  %v118 = vld [vmem:[%s0 + $0x1ac] sm:$0x1]
  %v119 = vld [vmem:[%s0 + $0x1ae] sm:$0x1]
  %v120 = vld [vmem:[%s0 + $0x1c0] sm:$0x1]
  %v121 = vld [vmem:[%s0 + $0x1c2] sm:$0x1]
  %v122 = vld [vmem:[%s0 + $0x1c4] sm:$0x1]
  %v123 = vld [vmem:[%s0 + $0x1c6] sm:$0x1]
  %v124 = vld [vmem:[%s0 + $0x1c8] sm:$0x1]
  %v125 = vld [vmem:[%s0 + $0x1ca] sm:$0x1]
  %v126 = vld [vmem:[%s0 + $0x1cc] sm:$0x1]
  %v127 = vld [vmem:[%s0 + $0x1ce] sm:$0x1]
  %v128 = vld [vmem:[%s0 + $0x1e0] sm:$0x1]
  %v129 = vld [vmem:[%s0 + $0x1e2] sm:$0x1]
  %v130 = vld [vmem:[%s0 + $0x1e4] sm:$0x1]
  %v131 = vld [vmem:[%s0 + $0x1e6] sm:$0x1]
  %v132 = vld [vmem:[%s0 + $0x1e8] sm:$0x1]
  %v133 = vld [vmem:[%s0 + $0x1ea] sm:$0x1]
  %v134 = vld [vmem:[%s0 + $0x1ec] sm:$0x1]
  %v135 = vld [vmem:[%s0 + $0x1ee] sm:$0x1]
  %v136 = vld [vmem:[%s0 + $0x1] sm:$0x1]
  %v137 = vld [vmem:[%s0 + $0x3] sm:$0x1]
  %v138 = vld [vmem:[%s0 + $0x5] sm:$0x1]
  %v139 = vld [vmem:[%s0 + $0x7] sm:$0x1]
  %v140 = vld [vmem:[%s0 + $0x9] sm:$0x1]
  %v141 = vld [vmem:[%s0 + $0xb] sm:$0x1]
  %v142 = vld [vmem:[%s0 + $0xd] sm:$0x1]
  %v143 = vld [vmem:[%s0 + $0xf] sm:$0x1]
  %v144 = vld [vmem:[%s0 + $0x21] sm:$0x1]
  %v145 = vld [vmem:[%s0 + $0x23] sm:$0x1]
  %v146 = vld [vmem:[%s0 + $0x25] sm:$0x1]
  %v147 = vld [vmem:[%s0 + $0x27] sm:$0x1]
  %v148 = vld [vmem:[%s0 + $0x29] sm:$0x1]
  %v149 = vld [vmem:[%s0 + $0x2b] sm:$0x1]
  %v150 = vld [vmem:[%s0 + $0x2d] sm:$0x1]
  %v151 = vld [vmem:[%s0 + $0x2f] sm:$0x1]
  %v152 = vld [vmem:[%s0 + $0x41] sm:$0x1]
  %v153 = vld [vmem:[%s0 + $0x43] sm:$0x1]
  %v154 = vld [vmem:[%s0 + $0x45] sm:$0x1]
  %v155 = vld [vmem:[%s0 + $0x47] sm:$0x1]
  %v156 = vld [vmem:[%s0 + $0x49] sm:$0x1]
  %v157 = vld [vmem:[%s0 + $0x4b] sm:$0x1]
  %v158 = vld [vmem:[%s0 + $0x4d] sm:$0x1]
  %v159 = vld [vmem:[%s0 + $0x4f] sm:$0x1]
  %v160 = vld [vmem:[%s0 + $0x61] sm:$0x1]
  %v161 = vld [vmem:[%s0 + $0x63] sm:$0x1]
  %v162 = vld [vmem:[%s0 + $0x65] sm:$0x1]
  %v163 = vld [vmem:[%s0 + $0x67] sm:$0x1]
  %v164 = vld [vmem:[%s0 + $0x69] sm:$0x1]
  %v165 = vld [vmem:[%s0 + $0x6b] sm:$0x1]
  %v166 = vld [vmem:[%s0 + $0x6d] sm:$0x1]
  %v167 = vld [vmem:[%s0 + $0x6f] sm:$0x1]
  %v168 = vld [vmem:[%s0 + $0x81] sm:$0x1]
  %v169 = vld [vmem:[%s0 + $0x83] sm:$0x1]
  %v170 = vld [vmem:[%s0 + $0x85] sm:$0x1]
  %v171 = vld [vmem:[%s0 + $0x87] sm:$0x1]
  %v172 = vld [vmem:[%s0 + $0x89] sm:$0x1]
  %v173 = vld [vmem:[%s0 + $0x8b] sm:$0x1]
  %v174 = vld [vmem:[%s0 + $0x8d] sm:$0x1]
  %v175 = vld [vmem:[%s0 + $0x8f] sm:$0x1]
  %v176 = vld [vmem:[%s0 + $0xa1] sm:$0x1]
  %v177 = vld [vmem:[%s0 + $0xa3] sm:$0x1]
  %v178 = vld [vmem:[%s0 + $0xa5] sm:$0x1]
  %v179 = vld [vmem:[%s0 + $0xa7] sm:$0x1]
  %v180 = vld [vmem:[%s0 + $0xa9] sm:$0x1]
  %v181 = vld [vmem:[%s0 + $0xab] sm:$0x1]
  %v182 = vld [vmem:[%s0 + $0xad] sm:$0x1]
  %v183 = vld [vmem:[%s0 + $0xaf] sm:$0x1]
  %v184 = vld [vmem:[%s0 + $0xc1] sm:$0x1]
  %v185 = vld [vmem:[%s0 + $0xc3] sm:$0x1]
  %v186 = vld [vmem:[%s0 + $0xc5] sm:$0x1]
  %v187 = vld [vmem:[%s0 + $0xc7] sm:$0x1]
  %v188 = vld [vmem:[%s0 + $0xc9] sm:$0x1]
  %v189 = vld [vmem:[%s0 + $0xcb] sm:$0x1]
  %v190 = vld [vmem:[%s0 + $0xcd] sm:$0x1]
  %v191 = vld [vmem:[%s0 + $0xcf] sm:$0x1]
  %v192 = vld [vmem:[%s0 + $0xe1] sm:$0x1]
  %v193 = vld [vmem:[%s0 + $0xe3] sm:$0x1]
  %v194 = vld [vmem:[%s0 + $0xe5] sm:$0x1]
  %v195 = vld [vmem:[%s0 + $0xe7] sm:$0x1]
  %v196 = vld [vmem:[%s0 + $0xe9] sm:$0x1]
  %v197 = vld [vmem:[%s0 + $0xeb] sm:$0x1]
  %v198 = vld [vmem:[%s0 + $0xed] sm:$0x1]
  %v199 = vld [vmem:[%s0 + $0xef] sm:$0x1]
  %v200 = vld [vmem:[%s0 + $0x101] sm:$0x1]
  %v201 = vld [vmem:[%s0 + $0x103] sm:$0x1]
  %v202 = vld [vmem:[%s0 + $0x105] sm:$0x1]
  %v203 = vld [vmem:[%s0 + $0x107] sm:$0x1]
  %v204 = vld [vmem:[%s0 + $0x109] sm:$0x1]
  %v205 = vld [vmem:[%s0 + $0x10b] sm:$0x1]
  %v206 = vld [vmem:[%s0 + $0x10d] sm:$0x1]
  %v207 = vld [vmem:[%s0 + $0x10f] sm:$0x1]
  %v208 = vld [vmem:[%s0 + $0x121] sm:$0x1]
  %v209 = vld [vmem:[%s0 + $0x123] sm:$0x1]
  %v210 = vld [vmem:[%s0 + $0x125] sm:$0x1]
  %v211 = vld [vmem:[%s0 + $0x127] sm:$0x1]
  %v212 = vld [vmem:[%s0 + $0x129] sm:$0x1]
  %v213 = vld [vmem:[%s0 + $0x12b] sm:$0x1]
  %v214 = vld [vmem:[%s0 + $0x12d] sm:$0x1]
  %v215 = vld [vmem:[%s0 + $0x12f] sm:$0x1]
  %v216 = vld [vmem:[%s0 + $0x141] sm:$0x1]
  %v217 = vld [vmem:[%s0 + $0x143] sm:$0x1]
  %v218 = vld [vmem:[%s0 + $0x145] sm:$0x1]
  %v219 = vld [vmem:[%s0 + $0x147] sm:$0x1]
  %v220 = vld [vmem:[%s0 + $0x149] sm:$0x1]
  %v221 = vld [vmem:[%s0 + $0x14b] sm:$0x1]
  %v222 = vld [vmem:[%s0 + $0x14d] sm:$0x1]
  %v223 = vld [vmem:[%s0 + $0x14f] sm:$0x1]
  %v224 = vld [vmem:[%s0 + $0x161] sm:$0x1]
  %v225 = vld [vmem:[%s0 + $0x163] sm:$0x1]
  %v226 = vld [vmem:[%s0 + $0x165] sm:$0x1]
  %v227 = vld [vmem:[%s0 + $0x167] sm:$0x1]
  %v228 = vld [vmem:[%s0 + $0x169] sm:$0x1]
  %v229 = vld [vmem:[%s0 + $0x16b] sm:$0x1]
  %v230 = vld [vmem:[%s0 + $0x16d] sm:$0x1]
  %v231 = vld [vmem:[%s0 + $0x16f] sm:$0x1]
  %v232 = vld [vmem:[%s0 + $0x181] sm:$0x1]
  %v233 = vld [vmem:[%s0 + $0x183] sm:$0x1]
  %v234 = vld [vmem:[%s0 + $0x185] sm:$0x1]
  %v235 = vld [vmem:[%s0 + $0x187] sm:$0x1]
  %v236 = vld [vmem:[%s0 + $0x189] sm:$0x1]
  %v237 = vld [vmem:[%s0 + $0x18b] sm:$0x1]
  %v238 = vld [vmem:[%s0 + $0x18d] sm:$0x1]
  %v239 = vld [vmem:[%s0 + $0x18f] sm:$0x1]
  %v240 = vld [vmem:[%s0 + $0x1a1] sm:$0x1]
  %v241 = vld [vmem:[%s0 + $0x1a3] sm:$0x1]
  %v242 = vld [vmem:[%s0 + $0x1a5] sm:$0x1]
  %v243 = vld [vmem:[%s0 + $0x1a7] sm:$0x1]
  %v244 = vld [vmem:[%s0 + $0x1a9] sm:$0x1]
  %v245 = vld [vmem:[%s0 + $0x1ab] sm:$0x1]
  %v246 = vld [vmem:[%s0 + $0x1ad] sm:$0x1]
  %v247 = vld [vmem:[%s0 + $0x1af] sm:$0x1]
  %v248 = vld [vmem:[%s0 + $0x1c1] sm:$0x1]
  %v249 = vld [vmem:[%s0 + $0x1c3] sm:$0x1]
  %v250 = vld [vmem:[%s0 + $0x1c5] sm:$0x1]
  %v251 = vld [vmem:[%s0 + $0x1c7] sm:$0x1]
  %v252 = vld [vmem:[%s0 + $0x1c9] sm:$0x1]
  %v253 = vld [vmem:[%s0 + $0x1cb] sm:$0x1]
  %v254 = vld [vmem:[%s0 + $0x1cd] sm:$0x1]
  %v255 = vld [vmem:[%s0 + $0x1cf] sm:$0x1]
  %v256 = vld [vmem:[%s0 + $0x1e1] sm:$0x1]
  %v257 = vld [vmem:[%s0 + $0x1e3] sm:$0x1]
  %v258 = vld [vmem:[%s0 + $0x1e5] sm:$0x1]
  %v259 = vld [vmem:[%s0 + $0x1e7] sm:$0x1]
  %v260 = vld [vmem:[%s0 + $0x1e9] sm:$0x1]
  %v261 = vld [vmem:[%s0 + $0x1eb] sm:$0x1]
  %v262 = vld [vmem:[%s0 + $0x1ed] sm:$0x1]
  %v263 = vld [vmem:[%s0 + $0x1ef] sm:$0x1]
  %s264 = scalar_lea.vmem %s0, 16
  %v265 = vld [vmem:[%s264] sm:$0x1]
  %v266 = vld [vmem:[%s264 + $0x2] sm:$0x1]
  %v267 = vld [vmem:[%s264 + $0x4] sm:$0x1]
  %v268 = vld [vmem:[%s264 + $0x6] sm:$0x1]
  %v269 = vld [vmem:[%s264 + $0x8] sm:$0x1]
  %v270 = vld [vmem:[%s264 + $0xa] sm:$0x1]
  %v271 = vld [vmem:[%s264 + $0xc] sm:$0x1]
  %v272 = vld [vmem:[%s264 + $0xe] sm:$0x1]
  %v273 = vld [vmem:[%s264 + $0x20] sm:$0x1]
  %v274 = vld [vmem:[%s264 + $0x22] sm:$0x1]
  %v275 = vld [vmem:[%s264 + $0x24] sm:$0x1]
  %v276 = vld [vmem:[%s264 + $0x26] sm:$0x1]
  %v277 = vld [vmem:[%s264 + $0x28] sm:$0x1]
  %v278 = vld [vmem:[%s264 + $0x2a] sm:$0x1]
  %v279 = vld [vmem:[%s264 + $0x2c] sm:$0x1]
  %v280 = vld [vmem:[%s264 + $0x2e] sm:$0x1]
  %v281 = vld [vmem:[%s264 + $0x40] sm:$0x1]
  %v282 = vld [vmem:[%s264 + $0x42] sm:$0x1]
  %v283 = vld [vmem:[%s264 + $0x44] sm:$0x1]
  %v284 = vld [vmem:[%s264 + $0x46] sm:$0x1]
  %v285 = vld [vmem:[%s264 + $0x48] sm:$0x1]
  %v286 = vld [vmem:[%s264 + $0x4a] sm:$0x1]
  %v287 = vld [vmem:[%s264 + $0x4c] sm:$0x1]
  %v288 = vld [vmem:[%s264 + $0x4e] sm:$0x1]
  %v289 = vld [vmem:[%s264 + $0x60] sm:$0x1]
  %v290 = vld [vmem:[%s264 + $0x62] sm:$0x1]
  %v291 = vld [vmem:[%s264 + $0x64] sm:$0x1]
  %v292 = vld [vmem:[%s264 + $0x66] sm:$0x1]
  %v293 = vld [vmem:[%s264 + $0x68] sm:$0x1]
  %v294 = vld [vmem:[%s264 + $0x6a] sm:$0x1]
  %v295 = vld [vmem:[%s264 + $0x6c] sm:$0x1]
  %v296 = vld [vmem:[%s264 + $0x6e] sm:$0x1]
  %v297 = vld [vmem:[%s264 + $0x80] sm:$0x1]
  %v298 = vld [vmem:[%s264 + $0x82] sm:$0x1]
  %v299 = vld [vmem:[%s264 + $0x84] sm:$0x1]
  %v300 = vld [vmem:[%s264 + $0x86] sm:$0x1]
  %v301 = vld [vmem:[%s264 + $0x88] sm:$0x1]
  %v302 = vld [vmem:[%s264 + $0x8a] sm:$0x1]
  %v303 = vld [vmem:[%s264 + $0x8c] sm:$0x1]
  %v304 = vld [vmem:[%s264 + $0x8e] sm:$0x1]
  %v305 = vld [vmem:[%s264 + $0xa0] sm:$0x1]
  %v306 = vld [vmem:[%s264 + $0xa2] sm:$0x1]
  %v307 = vld [vmem:[%s264 + $0xa4] sm:$0x1]
  %v308 = vld [vmem:[%s264 + $0xa6] sm:$0x1]
  %v309 = vld [vmem:[%s264 + $0xa8] sm:$0x1]
  %v310 = vld [vmem:[%s264 + $0xaa] sm:$0x1]
  %v311 = vld [vmem:[%s264 + $0xac] sm:$0x1]
  %v312 = vld [vmem:[%s264 + $0xae] sm:$0x1]
  %v313 = vld [vmem:[%s264 + $0xc0] sm:$0x1]
  %v314 = vld [vmem:[%s264 + $0xc2] sm:$0x1]
  %v315 = vld [vmem:[%s264 + $0xc4] sm:$0x1]
  %v316 = vld [vmem:[%s264 + $0xc6] sm:$0x1]
  %v317 = vld [vmem:[%s264 + $0xc8] sm:$0x1]
  %v318 = vld [vmem:[%s264 + $0xca] sm:$0x1]
  %v319 = vld [vmem:[%s264 + $0xcc] sm:$0x1]
  %v320 = vld [vmem:[%s264 + $0xce] sm:$0x1]
  %v321 = vld [vmem:[%s264 + $0xe0] sm:$0x1]
  %v322 = vld [vmem:[%s264 + $0xe2] sm:$0x1]
  %v323 = vld [vmem:[%s264 + $0xe4] sm:$0x1]
  %v324 = vld [vmem:[%s264 + $0xe6] sm:$0x1]
  %v325 = vld [vmem:[%s264 + $0xe8] sm:$0x1]
  %v326 = vld [vmem:[%s264 + $0xea] sm:$0x1]
  %v327 = vld [vmem:[%s264 + $0xec] sm:$0x1]
  %v328 = vld [vmem:[%s264 + $0xee] sm:$0x1]
  %v329 = vld [vmem:[%s264 + $0x100] sm:$0x1]
  %v330 = vld [vmem:[%s264 + $0x102] sm:$0x1]
  %v331 = vld [vmem:[%s264 + $0x104] sm:$0x1]
  %v332 = vld [vmem:[%s264 + $0x106] sm:$0x1]
  %v333 = vld [vmem:[%s264 + $0x108] sm:$0x1]
  %v334 = vld [vmem:[%s264 + $0x10a] sm:$0x1]
  %v335 = vld [vmem:[%s264 + $0x10c] sm:$0x1]
  %v336 = vld [vmem:[%s264 + $0x10e] sm:$0x1]
  %v337 = vld [vmem:[%s264 + $0x120] sm:$0x1]
  %v338 = vld [vmem:[%s264 + $0x122] sm:$0x1]
  %v339 = vld [vmem:[%s264 + $0x124] sm:$0x1]
  %v340 = vld [vmem:[%s264 + $0x126] sm:$0x1]
  %v341 = vld [vmem:[%s264 + $0x128] sm:$0x1]
  %v342 = vld [vmem:[%s264 + $0x12a] sm:$0x1]
  %v343 = vld [vmem:[%s264 + $0x12c] sm:$0x1]
  %v344 = vld [vmem:[%s264 + $0x12e] sm:$0x1]
  %v345 = vld [vmem:[%s264 + $0x140] sm:$0x1]
  %v346 = vld [vmem:[%s264 + $0x142] sm:$0x1]
  %v347 = vld [vmem:[%s264 + $0x144] sm:$0x1]
  %v348 = vld [vmem:[%s264 + $0x146] sm:$0x1]
  %v349 = vld [vmem:[%s264 + $0x148] sm:$0x1]
  %v350 = vld [vmem:[%s264 + $0x14a] sm:$0x1]
  %v351 = vld [vmem:[%s264 + $0x14c] sm:$0x1]
  %v352 = vld [vmem:[%s264 + $0x14e] sm:$0x1]
  %v353 = vld [vmem:[%s264 + $0x160] sm:$0x1]
  %v354 = vld [vmem:[%s264 + $0x162] sm:$0x1]
  %v355 = vld [vmem:[%s264 + $0x164] sm:$0x1]
  %v356 = vld [vmem:[%s264 + $0x166] sm:$0x1]
  %v357 = vld [vmem:[%s264 + $0x168] sm:$0x1]
  %v358 = vld [vmem:[%s264 + $0x16a] sm:$0x1]
  %v359 = vld [vmem:[%s264 + $0x16c] sm:$0x1]
  %v360 = vld [vmem:[%s264 + $0x16e] sm:$0x1]
  %v361 = vld [vmem:[%s264 + $0x180] sm:$0x1]
  %v362 = vld [vmem:[%s264 + $0x182] sm:$0x1]
  %v363 = vld [vmem:[%s264 + $0x184] sm:$0x1]
  %v364 = vld [vmem:[%s264 + $0x186] sm:$0x1]
  %v365 = vld [vmem:[%s264 + $0x188] sm:$0x1]
  %v366 = vld [vmem:[%s264 + $0x18a] sm:$0x1]
  %v367 = vld [vmem:[%s264 + $0x18c] sm:$0x1]
  %v368 = vld [vmem:[%s264 + $0x18e] sm:$0x1]
  %v369 = vld [vmem:[%s264 + $0x1a0] sm:$0x1]
  %v370 = vld [vmem:[%s264 + $0x1a2] sm:$0x1]
  %v371 = vld [vmem:[%s264 + $0x1a4] sm:$0x1]
  %v372 = vld [vmem:[%s264 + $0x1a6] sm:$0x1]
  %v373 = vld [vmem:[%s264 + $0x1a8] sm:$0x1]
  %v374 = vld [vmem:[%s264 + $0x1aa] sm:$0x1]
  %v375 = vld [vmem:[%s264 + $0x1ac] sm:$0x1]
  %v376 = vld [vmem:[%s264 + $0x1ae] sm:$0x1]
  %v377 = vld [vmem:[%s264 + $0x1c0] sm:$0x1]
  %v378 = vld [vmem:[%s264 + $0x1c2] sm:$0x1]
  %v379 = vld [vmem:[%s264 + $0x1c4] sm:$0x1]
  %v380 = vld [vmem:[%s264 + $0x1c6] sm:$0x1]
  %v381 = vld [vmem:[%s264 + $0x1c8] sm:$0x1]
  %v382 = vld [vmem:[%s264 + $0x1ca] sm:$0x1]
  %v383 = vld [vmem:[%s264 + $0x1cc] sm:$0x1]
  %v384 = vld [vmem:[%s264 + $0x1ce] sm:$0x1]
  %v385 = vld [vmem:[%s264 + $0x1e0] sm:$0x1]
  %v386 = vld [vmem:[%s264 + $0x1e2] sm:$0x1]
  %v387 = vld [vmem:[%s264 + $0x1e4] sm:$0x1]
  %v388 = vld [vmem:[%s264 + $0x1e6] sm:$0x1]
  %v389 = vld [vmem:[%s264 + $0x1e8] sm:$0x1]
  %v390 = vld [vmem:[%s264 + $0x1ea] sm:$0x1]
  %v391 = vld [vmem:[%s264 + $0x1ec] sm:$0x1]
  %v392 = vld [vmem:[%s264 + $0x1ee] sm:$0x1]
  %v393 = vld [vmem:[%s264 + $0x1] sm:$0x1]
  %v394 = vld [vmem:[%s264 + $0x3] sm:$0x1]
  %v395 = vld [vmem:[%s264 + $0x5] sm:$0x1]
  %v396 = vld [vmem:[%s264 + $0x7] sm:$0x1]
  %v397 = vld [vmem:[%s264 + $0x9] sm:$0x1]
  %v398 = vld [vmem:[%s264 + $0xb] sm:$0x1]
  %v399 = vld [vmem:[%s264 + $0xd] sm:$0x1]
  %v400 = vld [vmem:[%s264 + $0xf] sm:$0x1]
  %v401 = vld [vmem:[%s264 + $0x21] sm:$0x1]
  %v402 = vld [vmem:[%s264 + $0x23] sm:$0x1]
  %v403 = vld [vmem:[%s264 + $0x25] sm:$0x1]
  %v404 = vld [vmem:[%s264 + $0x27] sm:$0x1]
  %v405 = vld [vmem:[%s264 + $0x29] sm:$0x1]
  %v406 = vld [vmem:[%s264 + $0x2b] sm:$0x1]
  %v407 = vld [vmem:[%s264 + $0x2d] sm:$0x1]
  %v408 = vld [vmem:[%s264 + $0x2f] sm:$0x1]
  %v409 = vld [vmem:[%s264 + $0x41] sm:$0x1]
  %v410 = vld [vmem:[%s264 + $0x43] sm:$0x1]
  %v411 = vld [vmem:[%s264 + $0x45] sm:$0x1]
  %v412 = vld [vmem:[%s264 + $0x47] sm:$0x1]
  %v413 = vld [vmem:[%s264 + $0x49] sm:$0x1]
  %v414 = vld [vmem:[%s264 + $0x4b] sm:$0x1]
  %v415 = vld [vmem:[%s264 + $0x4d] sm:$0x1]
  %v416 = vld [vmem:[%s264 + $0x4f] sm:$0x1]
  %v417 = vld [vmem:[%s264 + $0x61] sm:$0x1]
  %v418 = vld [vmem:[%s264 + $0x63] sm:$0x1]
  %v419 = vld [vmem:[%s264 + $0x65] sm:$0x1]
  %v420 = vld [vmem:[%s264 + $0x67] sm:$0x1]
  %v421 = vld [vmem:[%s264 + $0x69] sm:$0x1]
  %v422 = vld [vmem:[%s264 + $0x6b] sm:$0x1]
  %v423 = vld [vmem:[%s264 + $0x6d] sm:$0x1]
  %v424 = vld [vmem:[%s264 + $0x6f] sm:$0x1]
  %v425 = vld [vmem:[%s264 + $0x81] sm:$0x1]
  %v426 = vld [vmem:[%s264 + $0x83] sm:$0x1]
  %v427 = vld [vmem:[%s264 + $0x85] sm:$0x1]
  %v428 = vld [vmem:[%s264 + $0x87] sm:$0x1]
  %v429 = vld [vmem:[%s264 + $0x89] sm:$0x1]
  %v430 = vld [vmem:[%s264 + $0x8b] sm:$0x1]
  %v431 = vld [vmem:[%s264 + $0x8d] sm:$0x1]
  %v432 = vld [vmem:[%s264 + $0x8f] sm:$0x1]
  %v433 = vld [vmem:[%s264 + $0xa1] sm:$0x1]
  %v434 = vld [vmem:[%s264 + $0xa3] sm:$0x1]
  %v435 = vld [vmem:[%s264 + $0xa5] sm:$0x1]
  %v436 = vld [vmem:[%s264 + $0xa7] sm:$0x1]
  %v437 = vld [vmem:[%s264 + $0xa9] sm:$0x1]
  %v438 = vld [vmem:[%s264 + $0xab] sm:$0x1]
  %v439 = vld [vmem:[%s264 + $0xad] sm:$0x1]
  %v440 = vld [vmem:[%s264 + $0xaf] sm:$0x1]
  %v441 = vld [vmem:[%s264 + $0xc1] sm:$0x1]
  %v442 = vld [vmem:[%s264 + $0xc3] sm:$0x1]
  %v443 = vld [vmem:[%s264 + $0xc5] sm:$0x1]
  %v444 = vld [vmem:[%s264 + $0xc7] sm:$0x1]
  %v445 = vld [vmem:[%s264 + $0xc9] sm:$0x1]
  %v446 = vld [vmem:[%s264 + $0xcb] sm:$0x1]
  %v447 = vld [vmem:[%s264 + $0xcd] sm:$0x1]
  %v448 = vld [vmem:[%s264 + $0xcf] sm:$0x1]
  %v449 = vld [vmem:[%s264 + $0xe1] sm:$0x1]
  %v450 = vld [vmem:[%s264 + $0xe3] sm:$0x1]
  %v451 = vld [vmem:[%s264 + $0xe5] sm:$0x1]
  %v452 = vld [vmem:[%s264 + $0xe7] sm:$0x1]
  %v453 = vld [vmem:[%s264 + $0xe9] sm:$0x1]
  %v454 = vld [vmem:[%s264 + $0xeb] sm:$0x1]
  %v455 = vld [vmem:[%s264 + $0xed] sm:$0x1]
  %v456 = vld [vmem:[%s264 + $0xef] sm:$0x1]
  %v457 = vld [vmem:[%s264 + $0x101] sm:$0x1]
  %v458 = vld [vmem:[%s264 + $0x103] sm:$0x1]
  %v459 = vld [vmem:[%s264 + $0x105] sm:$0x1]
  %v460 = vld [vmem:[%s264 + $0x107] sm:$0x1]
  %v461 = vld [vmem:[%s264 + $0x109] sm:$0x1]
  %v462 = vld [vmem:[%s264 + $0x10b] sm:$0x1]
  %v463 = vld [vmem:[%s264 + $0x10d] sm:$0x1]
  %v464 = vld [vmem:[%s264 + $0x10f] sm:$0x1]
  %v465 = vld [vmem:[%s264 + $0x121] sm:$0x1]
  %v466 = vld [vmem:[%s264 + $0x123] sm:$0x1]
  %v467 = vld [vmem:[%s264 + $0x125] sm:$0x1]
  %v468 = vld [vmem:[%s264 + $0x127] sm:$0x1]
  %v469 = vld [vmem:[%s264 + $0x129] sm:$0x1]
  %v470 = vld [vmem:[%s264 + $0x12b] sm:$0x1]
  %v471 = vld [vmem:[%s264 + $0x12d] sm:$0x1]
  %v472 = vld [vmem:[%s264 + $0x12f] sm:$0x1]
  %v473 = vld [vmem:[%s264 + $0x141] sm:$0x1]
  %v474 = vld [vmem:[%s264 + $0x143] sm:$0x1]
  %v475 = vld [vmem:[%s264 + $0x145] sm:$0x1]
  %v476 = vld [vmem:[%s264 + $0x147] sm:$0x1]
  %v477 = vld [vmem:[%s264 + $0x149] sm:$0x1]
  %v478 = vld [vmem:[%s264 + $0x14b] sm:$0x1]
  %v479 = vld [vmem:[%s264 + $0x14d] sm:$0x1]
  %v480 = vld [vmem:[%s264 + $0x14f] sm:$0x1]
  %v481 = vld [vmem:[%s264 + $0x161] sm:$0x1]
  %v482 = vld [vmem:[%s264 + $0x163] sm:$0x1]
  %v483 = vld [vmem:[%s264 + $0x165] sm:$0x1]
  %v484 = vld [vmem:[%s264 + $0x167] sm:$0x1]
  %v485 = vld [vmem:[%s264 + $0x169] sm:$0x1]
  %v486 = vld [vmem:[%s264 + $0x16b] sm:$0x1]
  %v487 = vld [vmem:[%s264 + $0x16d] sm:$0x1]
  %v488 = vld [vmem:[%s264 + $0x16f] sm:$0x1]
  %v489 = vld [vmem:[%s264 + $0x181] sm:$0x1]
  %v490 = vld [vmem:[%s264 + $0x183] sm:$0x1]
  %v491 = vld [vmem:[%s264 + $0x185] sm:$0x1]
  %v492 = vld [vmem:[%s264 + $0x187] sm:$0x1]
  %v493 = vld [vmem:[%s264 + $0x189] sm:$0x1]
  %v494 = vld [vmem:[%s264 + $0x18b] sm:$0x1]
  %v495 = vld [vmem:[%s264 + $0x18d] sm:$0x1]
  %v496 = vld [vmem:[%s264 + $0x18f] sm:$0x1]
  %v497 = vld [vmem:[%s264 + $0x1a1] sm:$0x1]
  %v498 = vld [vmem:[%s264 + $0x1a3] sm:$0x1]
  %v499 = vld [vmem:[%s264 + $0x1a5] sm:$0x1]
  %v500 = vld [vmem:[%s264 + $0x1a7] sm:$0x1]
  %v501 = vld [vmem:[%s264 + $0x1a9] sm:$0x1]
  %v502 = vld [vmem:[%s264 + $0x1ab] sm:$0x1]
  %v503 = vld [vmem:[%s264 + $0x1ad] sm:$0x1]
  %v504 = vld [vmem:[%s264 + $0x1af] sm:$0x1]
  %v505 = vld [vmem:[%s264 + $0x1c1] sm:$0x1]
  %v506 = vld [vmem:[%s264 + $0x1c3] sm:$0x1]
  %v507 = vld [vmem:[%s264 + $0x1c5] sm:$0x1]
  %v508 = vld [vmem:[%s264 + $0x1c7] sm:$0x1]
  %v509 = vld [vmem:[%s264 + $0x1c9] sm:$0x1]
  %v510 = vld [vmem:[%s264 + $0x1cb] sm:$0x1]
  %v511 = vld [vmem:[%s264 + $0x1cd] sm:$0x1]
  %v512 = vld [vmem:[%s264 + $0x1cf] sm:$0x1]
  %v513 = vld [vmem:[%s264 + $0x1e1] sm:$0x1]
  %v514 = vld [vmem:[%s264 + $0x1e3] sm:$0x1]
  %v515 = vld [vmem:[%s264 + $0x1e5] sm:$0x1]
  %v516 = vld [vmem:[%s264 + $0x1e7] sm:$0x1]
  %v517 = vld [vmem:[%s264 + $0x1e9] sm:$0x1]
  %v518 = vld [vmem:[%s264 + $0x1eb] sm:$0x1]
  %v519 = vld [vmem:[%s264 + $0x1ed] sm:$0x1]
  %v520 = vld [vmem:[%s264 + $0x1ef] sm:$0x1]
  %v521 = vmax.f32 %v8, %v136
  %v522 = vmax.f32 %v9, %v137
  %v523 = vmax.f32 %v10, %v138
  %v524 = vmax.f32 %v11, %v139
  %v525 = vmax.f32 %v12, %v140
  %v526 = vmax.f32 %v13, %v141
  %v527 = vmax.f32 %v14, %v142
  %v528 = vmax.f32 %v15, %v143
  %v529 = vmax.f32 %v16, %v144
  %v530 = vmax.f32 %v17, %v145
  %v531 = vmax.f32 %v18, %v146
  %v532 = vmax.f32 %v19, %v147
  %v533 = vmax.f32 %v20, %v148
  %v534 = vmax.f32 %v21, %v149
  %v535 = vmax.f32 %v22, %v150
  %v536 = vmax.f32 %v23, %v151
  %v537 = vmax.f32 %v24, %v152
  %v538 = vmax.f32 %v25, %v153
  %v539 = vmax.f32 %v26, %v154
  %v540 = vmax.f32 %v27, %v155
  %v541 = vmax.f32 %v28, %v156
  %v542 = vmax.f32 %v29, %v157
  %v543 = vmax.f32 %v30, %v158
  %v544 = vmax.f32 %v31, %v159
  %v545 = vmax.f32 %v32, %v160
  %v546 = vmax.f32 %v33, %v161
  %v547 = vmax.f32 %v34, %v162
  %v548 = vmax.f32 %v35, %v163
  %v549 = vmax.f32 %v36, %v164
  %v550 = vmax.f32 %v37, %v165
  %v551 = vmax.f32 %v38, %v166
  %v552 = vmax.f32 %v39, %v167
  %v553 = vmax.f32 %v40, %v168
  %v554 = vmax.f32 %v41, %v169
  %v555 = vmax.f32 %v42, %v170
  %v556 = vmax.f32 %v43, %v171
  %v557 = vmax.f32 %v44, %v172
  %v558 = vmax.f32 %v45, %v173
  %v559 = vmax.f32 %v46, %v174
  %v560 = vmax.f32 %v47, %v175
  %v561 = vmax.f32 %v48, %v176
  %v562 = vmax.f32 %v49, %v177
  %v563 = vmax.f32 %v50, %v178
  %v564 = vmax.f32 %v51, %v179
  %v565 = vmax.f32 %v52, %v180
  %v566 = vmax.f32 %v53, %v181
  %v567 = vmax.f32 %v54, %v182
  %v568 = vmax.f32 %v55, %v183
  %v569 = vmax.f32 %v56, %v184
  %v570 = vmax.f32 %v57, %v185
  %v571 = vmax.f32 %v58, %v186
  %v572 = vmax.f32 %v59, %v187
  %v573 = vmax.f32 %v60, %v188
  %v574 = vmax.f32 %v61, %v189
  %v575 = vmax.f32 %v62, %v190
  %v576 = vmax.f32 %v63, %v191
  %v577 = vmax.f32 %v64, %v192
  %v578 = vmax.f32 %v65, %v193
  %v579 = vmax.f32 %v66, %v194
  %v580 = vmax.f32 %v67, %v195
  %v581 = vmax.f32 %v68, %v196
  %v582 = vmax.f32 %v69, %v197
  %v583 = vmax.f32 %v70, %v198
  %v584 = vmax.f32 %v71, %v199
  %v585 = vmax.f32 %v72, %v200
  %v586 = vmax.f32 %v73, %v201
  %v587 = vmax.f32 %v74, %v202
  %v588 = vmax.f32 %v75, %v203
  %v589 = vmax.f32 %v76, %v204
  %v590 = vmax.f32 %v77, %v205
  %v591 = vmax.f32 %v78, %v206
  %v592 = vmax.f32 %v79, %v207
  %v593 = vmax.f32 %v80, %v208
  %v594 = vmax.f32 %v81, %v209
  %v595 = vmax.f32 %v82, %v210
  %v596 = vmax.f32 %v83, %v211
  %v597 = vmax.f32 %v84, %v212
  %v598 = vmax.f32 %v85, %v213
  %v599 = vmax.f32 %v86, %v214
  %v600 = vmax.f32 %v87, %v215
  %v601 = vmax.f32 %v88, %v216
  %v602 = vmax.f32 %v89, %v217
  %v603 = vmax.f32 %v90, %v218
  %v604 = vmax.f32 %v91, %v219
  %v605 = vmax.f32 %v92, %v220
  %v606 = vmax.f32 %v93, %v221
  %v607 = vmax.f32 %v94, %v222
  %v608 = vmax.f32 %v95, %v223
  %v609 = vmax.f32 %v96, %v224
  %v610 = vmax.f32 %v97, %v225
  %v611 = vmax.f32 %v98, %v226
  %v612 = vmax.f32 %v99, %v227
  %v613 = vmax.f32 %v100, %v228
  %v614 = vmax.f32 %v101, %v229
  %v615 = vmax.f32 %v102, %v230
  %v616 = vmax.f32 %v103, %v231
  %v617 = vmax.f32 %v104, %v232
  %v618 = vmax.f32 %v105, %v233
  %v619 = vmax.f32 %v106, %v234
  %v620 = vmax.f32 %v107, %v235
  %v621 = vmax.f32 %v108, %v236
  %v622 = vmax.f32 %v109, %v237
  %v623 = vmax.f32 %v110, %v238
  %v624 = vmax.f32 %v111, %v239
  %v625 = vmax.f32 %v112, %v240
  %v626 = vmax.f32 %v113, %v241
  %v627 = vmax.f32 %v114, %v242
  %v628 = vmax.f32 %v115, %v243
  %v629 = vmax.f32 %v116, %v244
  %v630 = vmax.f32 %v117, %v245
  %v631 = vmax.f32 %v118, %v246
  %v632 = vmax.f32 %v119, %v247
  %v633 = vmax.f32 %v120, %v248
  %v634 = vmax.f32 %v121, %v249
  %v635 = vmax.f32 %v122, %v250
  %v636 = vmax.f32 %v123, %v251
  %v637 = vmax.f32 %v124, %v252
  %v638 = vmax.f32 %v125, %v253
  %v639 = vmax.f32 %v126, %v254
  %v640 = vmax.f32 %v127, %v255
  %v641 = vmax.f32 %v128, %v256
  %v642 = vmax.f32 %v129, %v257
  %v643 = vmax.f32 %v130, %v258
  %v644 = vmax.f32 %v131, %v259
  %v645 = vmax.f32 %v132, %v260
  %v646 = vmax.f32 %v133, %v261
  %v647 = vmax.f32 %v134, %v262
  %v648 = vmax.f32 %v135, %v263
  %v649 = vmax.f32 %v265, %v393
  %v650 = vmax.f32 %v266, %v394
  %v651 = vmax.f32 %v267, %v395
  %v652 = vmax.f32 %v268, %v396
  %v653 = vmax.f32 %v269, %v397
  %v654 = vmax.f32 %v270, %v398
  %v655 = vmax.f32 %v271, %v399
  %v656 = vmax.f32 %v272, %v400
  %v657 = vmax.f32 %v273, %v401
  %v658 = vmax.f32 %v274, %v402
  %v659 = vmax.f32 %v275, %v403
  %v660 = vmax.f32 %v276, %v404
  %v661 = vmax.f32 %v277, %v405
  %v662 = vmax.f32 %v278, %v406
  %v663 = vmax.f32 %v279, %v407
  %v664 = vmax.f32 %v280, %v408
  %v665 = vmax.f32 %v281, %v409
  %v666 = vmax.f32 %v282, %v410
  %v667 = vmax.f32 %v283, %v411
  %v668 = vmax.f32 %v284, %v412
  %v669 = vmax.f32 %v285, %v413
  %v670 = vmax.f32 %v286, %v414
  %v671 = vmax.f32 %v287, %v415
  %v672 = vmax.f32 %v288, %v416
  %v673 = vmax.f32 %v289, %v417
  %v674 = vmax.f32 %v290, %v418
  %v675 = vmax.f32 %v291, %v419
  %v676 = vmax.f32 %v292, %v420
  %v677 = vmax.f32 %v293, %v421
  %v678 = vmax.f32 %v294, %v422
  %v679 = vmax.f32 %v295, %v423
  %v680 = vmax.f32 %v296, %v424
  %v681 = vmax.f32 %v297, %v425
  %v682 = vmax.f32 %v298, %v426
  %v683 = vmax.f32 %v299, %v427
  %v684 = vmax.f32 %v300, %v428
  %v685 = vmax.f32 %v301, %v429
  %v686 = vmax.f32 %v302, %v430
  %v687 = vmax.f32 %v303, %v431
  %v688 = vmax.f32 %v304, %v432
  %v689 = vmax.f32 %v305, %v433
  %v690 = vmax.f32 %v306, %v434
  %v691 = vmax.f32 %v307, %v435
  %v692 = vmax.f32 %v308, %v436
  %v693 = vmax.f32 %v309, %v437
  %v694 = vmax.f32 %v310, %v438
  %v695 = vmax.f32 %v311, %v439
  %v696 = vmax.f32 %v312, %v440
  %v697 = vmax.f32 %v313, %v441
  %v698 = vmax.f32 %v314, %v442
  %v699 = vmax.f32 %v315, %v443
  %v700 = vmax.f32 %v316, %v444
  %v701 = vmax.f32 %v317, %v445
  %v702 = vmax.f32 %v318, %v446
  %v703 = vmax.f32 %v319, %v447
  %v704 = vmax.f32 %v320, %v448
  %v705 = vmax.f32 %v321, %v449
  %v706 = vmax.f32 %v322, %v450
  %v707 = vmax.f32 %v323, %v451
  %v708 = vmax.f32 %v324, %v452
  %v709 = vmax.f32 %v325, %v453
  %v710 = vmax.f32 %v326, %v454
  %v711 = vmax.f32 %v327, %v455
  %v712 = vmax.f32 %v328, %v456
  %v713 = vmax.f32 %v329, %v457
  %v714 = vmax.f32 %v330, %v458
  %v715 = vmax.f32 %v331, %v459
  %v716 = vmax.f32 %v332, %v460
  %v717 = vmax.f32 %v333, %v461
  %v718 = vmax.f32 %v334, %v462
  %v719 = vmax.f32 %v335, %v463
  %v720 = vmax.f32 %v336, %v464
  %v721 = vmax.f32 %v337, %v465
  %v722 = vmax.f32 %v338, %v466
  %v723 = vmax.f32 %v339, %v467
  %v724 = vmax.f32 %v340, %v468
  %v725 = vmax.f32 %v341, %v469
  %v726 = vmax.f32 %v342, %v470
  %v727 = vmax.f32 %v343, %v471
  %v728 = vmax.f32 %v344, %v472
  %v729 = vmax.f32 %v345, %v473
  %v730 = vmax.f32 %v346, %v474
  %v731 = vmax.f32 %v347, %v475
  %v732 = vmax.f32 %v348, %v476
  %v733 = vmax.f32 %v349, %v477
  %v734 = vmax.f32 %v350, %v478
  %v735 = vmax.f32 %v351, %v479
  %v736 = vmax.f32 %v352, %v480
  %v737 = vmax.f32 %v353, %v481
  %v738 = vmax.f32 %v354, %v482
  %v739 = vmax.f32 %v355, %v483
  %v740 = vmax.f32 %v356, %v484
  %v741 = vmax.f32 %v357, %v485
  %v742 = vmax.f32 %v358, %v486
  %v743 = vmax.f32 %v359, %v487
  %v744 = vmax.f32 %v360, %v488
  %v745 = vmax.f32 %v361, %v489
  %v746 = vmax.f32 %v362, %v490
  %v747 = vmax.f32 %v363, %v491
  %v748 = vmax.f32 %v364, %v492
  %v749 = vmax.f32 %v365, %v493
  %v750 = vmax.f32 %v366, %v494
  %v751 = vmax.f32 %v367, %v495
  %v752 = vmax.f32 %v368, %v496
  %v753 = vmax.f32 %v369, %v497
  %v754 = vmax.f32 %v370, %v498
  %v755 = vmax.f32 %v371, %v499
  %v756 = vmax.f32 %v372, %v500
  %v757 = vmax.f32 %v373, %v501
  %v758 = vmax.f32 %v374, %v502
  %v759 = vmax.f32 %v375, %v503
  %v760 = vmax.f32 %v376, %v504
  %v761 = vmax.f32 %v377, %v505
  %v762 = vmax.f32 %v378, %v506
  %v763 = vmax.f32 %v379, %v507
  %v764 = vmax.f32 %v380, %v508
  %v765 = vmax.f32 %v381, %v509
  %v766 = vmax.f32 %v382, %v510
  %v767 = vmax.f32 %v383, %v511
  %v768 = vmax.f32 %v384, %v512
  %v769 = vmax.f32 %v385, %v513
  %v770 = vmax.f32 %v386, %v514
  %v771 = vmax.f32 %v387, %v515
  %v772 = vmax.f32 %v388, %v516
  %v773 = vmax.f32 %v389, %v517
  %v774 = vmax.f32 %v390, %v518
  %v775 = vmax.f32 %v391, %v519
  %v776 = vmax.f32 %v392, %v520
  %v777 = vmax.f32 %v521, %v649
  %v778 = vmax.f32 %v522, %v650
  %v779 = vmax.f32 %v523, %v651
  %v780 = vmax.f32 %v524, %v652
  %v781 = vmax.f32 %v525, %v653
  %v782 = vmax.f32 %v526, %v654
  %v783 = vmax.f32 %v527, %v655
  %v784 = vmax.f32 %v528, %v656
  %v785 = vmax.f32 %v529, %v657
  %v786 = vmax.f32 %v530, %v658
  %v787 = vmax.f32 %v531, %v659
  %v788 = vmax.f32 %v532, %v660
  %v789 = vmax.f32 %v533, %v661
  %v790 = vmax.f32 %v534, %v662
  %v791 = vmax.f32 %v535, %v663
  %v792 = vmax.f32 %v536, %v664
  %v793 = vmax.f32 %v537, %v665
  %v794 = vmax.f32 %v538, %v666
  %v795 = vmax.f32 %v539, %v667
  %v796 = vmax.f32 %v540, %v668
  %v797 = vmax.f32 %v541, %v669
  %v798 = vmax.f32 %v542, %v670
  %v799 = vmax.f32 %v543, %v671
  %v800 = vmax.f32 %v544, %v672
  %v801 = vmax.f32 %v545, %v673
  %v802 = vmax.f32 %v546, %v674
  %v803 = vmax.f32 %v547, %v675
  %v804 = vmax.f32 %v548, %v676
  %v805 = vmax.f32 %v549, %v677
  %v806 = vmax.f32 %v550, %v678
  %v807 = vmax.f32 %v551, %v679
  %v808 = vmax.f32 %v552, %v680
  %v809 = vmax.f32 %v553, %v681
  %v810 = vmax.f32 %v554, %v682
  %v811 = vmax.f32 %v555, %v683
  %v812 = vmax.f32 %v556, %v684
  %v813 = vmax.f32 %v557, %v685
  %v814 = vmax.f32 %v558, %v686
  %v815 = vmax.f32 %v559, %v687
  %v816 = vmax.f32 %v560, %v688
  %v817 = vmax.f32 %v561, %v689
  %v818 = vmax.f32 %v562, %v690
  %v819 = vmax.f32 %v563, %v691
  %v820 = vmax.f32 %v564, %v692
  %v821 = vmax.f32 %v565, %v693
  %v822 = vmax.f32 %v566, %v694
  %v823 = vmax.f32 %v567, %v695
  %v824 = vmax.f32 %v568, %v696
  %v825 = vmax.f32 %v569, %v697
  %v826 = vmax.f32 %v570, %v698
  %v827 = vmax.f32 %v571, %v699
  %v828 = vmax.f32 %v572, %v700
  %v829 = vmax.f32 %v573, %v701
  %v830 = vmax.f32 %v574, %v702
  %v831 = vmax.f32 %v575, %v703
  %v832 = vmax.f32 %v576, %v704
  %v833 = vmax.f32 %v577, %v705
  %v834 = vmax.f32 %v578, %v706
  %v835 = vmax.f32 %v579, %v707
  %v836 = vmax.f32 %v580, %v708
  %v837 = vmax.f32 %v581, %v709
  %v838 = vmax.f32 %v582, %v710
  %v839 = vmax.f32 %v583, %v711
  %v840 = vmax.f32 %v584, %v712
  %v841 = vmax.f32 %v585, %v713
  %v842 = vmax.f32 %v586, %v714
  %v843 = vmax.f32 %v587, %v715
  %v844 = vmax.f32 %v588, %v716
  %v845 = vmax.f32 %v589, %v717
  %v846 = vmax.f32 %v590, %v718
  %v847 = vmax.f32 %v591, %v719
  %v848 = vmax.f32 %v592, %v720
  %v849 = vmax.f32 %v593, %v721
  %v850 = vmax.f32 %v594, %v722
  %v851 = vmax.f32 %v595, %v723
  %v852 = vmax.f32 %v596, %v724
  %v853 = vmax.f32 %v597, %v725
  %v854 = vmax.f32 %v598, %v726
  %v855 = vmax.f32 %v599, %v727
  %v856 = vmax.f32 %v600, %v728
  %v857 = vmax.f32 %v601, %v729
  %v858 = vmax.f32 %v602, %v730
  %v859 = vmax.f32 %v603, %v731
  %v860 = vmax.f32 %v604, %v732
  %v861 = vmax.f32 %v605, %v733
  %v862 = vmax.f32 %v606, %v734
  %v863 = vmax.f32 %v607, %v735
  %v864 = vmax.f32 %v608, %v736
  %v865 = vmax.f32 %v609, %v737
  %v866 = vmax.f32 %v610, %v738
  %v867 = vmax.f32 %v611, %v739
  %v868 = vmax.f32 %v612, %v740
  %v869 = vmax.f32 %v613, %v741
  %v870 = vmax.f32 %v614, %v742
  %v871 = vmax.f32 %v615, %v743
  %v872 = vmax.f32 %v616, %v744
  %v873 = vmax.f32 %v617, %v745
  %v874 = vmax.f32 %v618, %v746
  %v875 = vmax.f32 %v619, %v747
  %v876 = vmax.f32 %v620, %v748
  %v877 = vmax.f32 %v621, %v749
  %v878 = vmax.f32 %v622, %v750
  %v879 = vmax.f32 %v623, %v751
  %v880 = vmax.f32 %v624, %v752
  %v881 = vmax.f32 %v625, %v753
  %v882 = vmax.f32 %v626, %v754
  %v883 = vmax.f32 %v627, %v755
  %v884 = vmax.f32 %v628, %v756
  %v885 = vmax.f32 %v629, %v757
  %v886 = vmax.f32 %v630, %v758
  %v887 = vmax.f32 %v631, %v759
  %v888 = vmax.f32 %v632, %v760
  %v889 = vmax.f32 %v633, %v761
  %v890 = vmax.f32 %v634, %v762
  %v891 = vmax.f32 %v635, %v763
  %v892 = vmax.f32 %v636, %v764
  %v893 = vmax.f32 %v637, %v765
  %v894 = vmax.f32 %v638, %v766
  %v895 = vmax.f32 %v639, %v767
  %v896 = vmax.f32 %v640, %v768
  %v897 = vmax.f32 %v641, %v769
  %v898 = vmax.f32 %v642, %v770
  %v899 = vmax.f32 %v643, %v771
  %v900 = vmax.f32 %v644, %v772
  %v901 = vmax.f32 %v645, %v773
  %v902 = vmax.f32 %v646, %v774
  %v903 = vmax.f32 %v647, %v775
  %v904 = vmax.f32 %v648, %v776
  %v1033 = vrot.slane %v778, 7
  %vm1034 = vcmask 1041409
  %v1035 = vsel %vm1034, %v1033, %v777
  %v1036 = vrot.slane %v779, 6
  %vm1037 = vcmask 1042434
  %v1038 = vsel %vm1037, %v1036, %v1035
  %v1039 = vrot.slane %v780, 5
  %vm1040 = vcmask 1043459
  %v1041 = vsel %vm1040, %v1039, %v1038
  %v1042 = vrot.slane %v781, 4
  %vm1043 = vcmask 1044484
  %v1044 = vsel %vm1043, %v1042, %v1041
  %v1045 = vrot.slane %v782, 3
  %vm1046 = vcmask 1045509
  %v1047 = vsel %vm1046, %v1045, %v1044
  %v1048 = vrot.slane %v783, 2
  %vm1049 = vcmask 1046534
  %v1050 = vsel %vm1049, %v1048, %v1047
  %v1051 = vrot.slane %v784, 1
  %vm1052 = vcmask 1047559
  %v1053 = vsel %vm1052, %v1051, %v1050
  %v1054 = vrot.slane %v786, 7
  %v1055 = vsel %vm1034, %v1054, %v785
  %v1056 = vrot.slane %v787, 6
  %v1057 = vsel %vm1037, %v1056, %v1055
  %v1058 = vrot.slane %v788, 5
  %v1059 = vsel %vm1040, %v1058, %v1057
  %v1060 = vrot.slane %v789, 4
  %v1061 = vsel %vm1043, %v1060, %v1059
  %v1062 = vrot.slane %v790, 3
  %v1063 = vsel %vm1046, %v1062, %v1061
  %v1064 = vrot.slane %v791, 2
  %v1065 = vsel %vm1049, %v1064, %v1063
  %v1066 = vrot.slane %v792, 1
  %v1067 = vsel %vm1052, %v1066, %v1065
  %v1068 = vrot.slane %v794, 7
  %v1069 = vsel %vm1034, %v1068, %v793
  %v1070 = vrot.slane %v795, 6
  %v1071 = vsel %vm1037, %v1070, %v1069
  %v1072 = vrot.slane %v796, 5
  %v1073 = vsel %vm1040, %v1072, %v1071
  %v1074 = vrot.slane %v797, 4
  %v1075 = vsel %vm1043, %v1074, %v1073
  %v1076 = vrot.slane %v798, 3
  %v1077 = vsel %vm1046, %v1076, %v1075
  %v1078 = vrot.slane %v799, 2
  %v1079 = vsel %vm1049, %v1078, %v1077
  %v1080 = vrot.slane %v800, 1
  %v1081 = vsel %vm1052, %v1080, %v1079
  %v1082 = vrot.slane %v802, 7
  %v1083 = vsel %vm1034, %v1082, %v801
  %v1084 = vrot.slane %v803, 6
  %v1085 = vsel %vm1037, %v1084, %v1083
  %v1086 = vrot.slane %v804, 5
  %v1087 = vsel %vm1040, %v1086, %v1085
  %v1088 = vrot.slane %v805, 4
  %v1089 = vsel %vm1043, %v1088, %v1087
  %v1090 = vrot.slane %v806, 3
  %v1091 = vsel %vm1046, %v1090, %v1089
  %v1092 = vrot.slane %v807, 2
  %v1093 = vsel %vm1049, %v1092, %v1091
  %v1094 = vrot.slane %v808, 1
  %v1095 = vsel %vm1052, %v1094, %v1093
  %v1096 = vrot.slane %v810, 7
  %v1097 = vsel %vm1034, %v1096, %v809
  %v1098 = vrot.slane %v811, 6
  %v1099 = vsel %vm1037, %v1098, %v1097
  %v1100 = vrot.slane %v812, 5
  %v1101 = vsel %vm1040, %v1100, %v1099
  %v1102 = vrot.slane %v813, 4
  %v1103 = vsel %vm1043, %v1102, %v1101
  %v1104 = vrot.slane %v814, 3
  %v1105 = vsel %vm1046, %v1104, %v1103
  %v1106 = vrot.slane %v815, 2
  %v1107 = vsel %vm1049, %v1106, %v1105
  %v1108 = vrot.slane %v816, 1
  %v1109 = vsel %vm1052, %v1108, %v1107
  %v1110 = vrot.slane %v818, 7
  %v1111 = vsel %vm1034, %v1110, %v817
  %v1112 = vrot.slane %v819, 6
  %v1113 = vsel %vm1037, %v1112, %v1111
  %v1114 = vrot.slane %v820, 5
  %v1115 = vsel %vm1040, %v1114, %v1113
  %v1116 = vrot.slane %v821, 4
  %v1117 = vsel %vm1043, %v1116, %v1115
  %v1118 = vrot.slane %v822, 3
  %v1119 = vsel %vm1046, %v1118, %v1117
  %v1120 = vrot.slane %v823, 2
  %v1121 = vsel %vm1049, %v1120, %v1119
  %v1122 = vrot.slane %v824, 1
  %v1123 = vsel %vm1052, %v1122, %v1121
  %v1124 = vrot.slane %v826, 7
  %v1125 = vsel %vm1034, %v1124, %v825
  %v1126 = vrot.slane %v827, 6
  %v1127 = vsel %vm1037, %v1126, %v1125
  %v1128 = vrot.slane %v828, 5
  %v1129 = vsel %vm1040, %v1128, %v1127
  %v1130 = vrot.slane %v829, 4
  %v1131 = vsel %vm1043, %v1130, %v1129
  %v1132 = vrot.slane %v830, 3
  %v1133 = vsel %vm1046, %v1132, %v1131
  %v1134 = vrot.slane %v831, 2
  %v1135 = vsel %vm1049, %v1134, %v1133
  %v1136 = vrot.slane %v832, 1
  %v1137 = vsel %vm1052, %v1136, %v1135
  %v1138 = vrot.slane %v834, 7
  %v1139 = vsel %vm1034, %v1138, %v833
  %v1140 = vrot.slane %v835, 6
  %v1141 = vsel %vm1037, %v1140, %v1139
  %v1142 = vrot.slane %v836, 5
  %v1143 = vsel %vm1040, %v1142, %v1141
  %v1144 = vrot.slane %v837, 4
  %v1145 = vsel %vm1043, %v1144, %v1143
  %v1146 = vrot.slane %v838, 3
  %v1147 = vsel %vm1046, %v1146, %v1145
  %v1148 = vrot.slane %v839, 2
  %v1149 = vsel %vm1049, %v1148, %v1147
  %v1150 = vrot.slane %v840, 1
  %v1151 = vsel %vm1052, %v1150, %v1149
  %v1152 = vrot.slane %v842, 7
  %v1153 = vsel %vm1034, %v1152, %v841
  %v1154 = vrot.slane %v843, 6
  %v1155 = vsel %vm1037, %v1154, %v1153
  %v1156 = vrot.slane %v844, 5
  %v1157 = vsel %vm1040, %v1156, %v1155
  %v1158 = vrot.slane %v845, 4
  %v1159 = vsel %vm1043, %v1158, %v1157
  %v1160 = vrot.slane %v846, 3
  %v1161 = vsel %vm1046, %v1160, %v1159
  %v1162 = vrot.slane %v847, 2
  %v1163 = vsel %vm1049, %v1162, %v1161
  %v1164 = vrot.slane %v848, 1
  %v1165 = vsel %vm1052, %v1164, %v1163
  %v1166 = vrot.slane %v850, 7
  %v1167 = vsel %vm1034, %v1166, %v849
  %v1168 = vrot.slane %v851, 6
  %v1169 = vsel %vm1037, %v1168, %v1167
  %v1170 = vrot.slane %v852, 5
  %v1171 = vsel %vm1040, %v1170, %v1169
  %v1172 = vrot.slane %v853, 4
  %v1173 = vsel %vm1043, %v1172, %v1171
  %v1174 = vrot.slane %v854, 3
  %v1175 = vsel %vm1046, %v1174, %v1173
  %v1176 = vrot.slane %v855, 2
  %v1177 = vsel %vm1049, %v1176, %v1175
  %v1178 = vrot.slane %v856, 1
  %v1179 = vsel %vm1052, %v1178, %v1177
  %v1180 = vrot.slane %v858, 7
  %v1181 = vsel %vm1034, %v1180, %v857
  %v1182 = vrot.slane %v859, 6
  %v1183 = vsel %vm1037, %v1182, %v1181
  %v1184 = vrot.slane %v860, 5
  %v1185 = vsel %vm1040, %v1184, %v1183
  %v1186 = vrot.slane %v861, 4
  %v1187 = vsel %vm1043, %v1186, %v1185
  %v1188 = vrot.slane %v862, 3
  %v1189 = vsel %vm1046, %v1188, %v1187
  %v1190 = vrot.slane %v863, 2
  %v1191 = vsel %vm1049, %v1190, %v1189
  %v1192 = vrot.slane %v864, 1
  %v1193 = vsel %vm1052, %v1192, %v1191
  %v1194 = vrot.slane %v866, 7
  %v1195 = vsel %vm1034, %v1194, %v865
  %v1196 = vrot.slane %v867, 6
  %v1197 = vsel %vm1037, %v1196, %v1195
  %v1198 = vrot.slane %v868, 5
  %v1199 = vsel %vm1040, %v1198, %v1197
  %v1200 = vrot.slane %v869, 4
  %v1201 = vsel %vm1043, %v1200, %v1199
  %v1202 = vrot.slane %v870, 3
  %v1203 = vsel %vm1046, %v1202, %v1201
  %v1204 = vrot.slane %v871, 2
  %v1205 = vsel %vm1049, %v1204, %v1203
  %v1206 = vrot.slane %v872, 1
  %v1207 = vsel %vm1052, %v1206, %v1205
  %v1208 = vrot.slane %v874, 7
  %v1209 = vsel %vm1034, %v1208, %v873
  %v1210 = vrot.slane %v875, 6
  %v1211 = vsel %vm1037, %v1210, %v1209
  %v1212 = vrot.slane %v876, 5
  %v1213 = vsel %vm1040, %v1212, %v1211
  %v1214 = vrot.slane %v877, 4
  %v1215 = vsel %vm1043, %v1214, %v1213
  %v1216 = vrot.slane %v878, 3
  %v1217 = vsel %vm1046, %v1216, %v1215
  %v1218 = vrot.slane %v879, 2
  %v1219 = vsel %vm1049, %v1218, %v1217
  %v1220 = vrot.slane %v880, 1
  %v1221 = vsel %vm1052, %v1220, %v1219
  %v1222 = vrot.slane %v882, 7
  %v1223 = vsel %vm1034, %v1222, %v881
  %v1224 = vrot.slane %v883, 6
  %v1225 = vsel %vm1037, %v1224, %v1223
  %v1226 = vrot.slane %v884, 5
  %v1227 = vsel %vm1040, %v1226, %v1225
  %v1228 = vrot.slane %v885, 4
  %v1229 = vsel %vm1043, %v1228, %v1227
  %v1230 = vrot.slane %v886, 3
  %v1231 = vsel %vm1046, %v1230, %v1229
  %v1232 = vrot.slane %v887, 2
  %v1233 = vsel %vm1049, %v1232, %v1231
  %v1234 = vrot.slane %v888, 1
  %v1235 = vsel %vm1052, %v1234, %v1233
  %v1236 = vrot.slane %v890, 7
  %v1237 = vsel %vm1034, %v1236, %v889
  %v1238 = vrot.slane %v891, 6
  %v1239 = vsel %vm1037, %v1238, %v1237
  %v1240 = vrot.slane %v892, 5
  %v1241 = vsel %vm1040, %v1240, %v1239
  %v1242 = vrot.slane %v893, 4
  %v1243 = vsel %vm1043, %v1242, %v1241
  %v1244 = vrot.slane %v894, 3
  %v1245 = vsel %vm1046, %v1244, %v1243
  %v1246 = vrot.slane %v895, 2
  %v1247 = vsel %vm1049, %v1246, %v1245
  %v1248 = vrot.slane %v896, 1
  %v1249 = vsel %vm1052, %v1248, %v1247
  %v1250 = vrot.slane %v898, 7
  %v1251 = vsel %vm1034, %v1250, %v897
  %v1252 = vrot.slane %v899, 6
  %v1253 = vsel %vm1037, %v1252, %v1251
  %v1254 = vrot.slane %v900, 5
  %v1255 = vsel %vm1040, %v1254, %v1253
  %v1256 = vrot.slane %v901, 4
  %v1257 = vsel %vm1043, %v1256, %v1255
  %v1258 = vrot.slane %v902, 3
  %v1259 = vsel %vm1046, %v1258, %v1257
  %v1260 = vrot.slane %v903, 2
  %v1261 = vsel %vm1049, %v1260, %v1259
  %v1262 = vrot.slane %v904, 1
  %v1263 = vsel %vm1052, %v1262, %v1261
  %vm1280 = vcmask 31744
  %1281 = vst.msk [vmem:[%s1] sm:$0xff] %vm1280, %v1053
  %1282 = vst.msk [vmem:[%s1 + $0x8] sm:$0xff] %vm1280, %v1067
  %1283 = vst.msk [vmem:[%s1 + $0x10] sm:$0xff] %vm1280, %v1081
  %1284 = vst.msk [vmem:[%s1 + $0x18] sm:$0xff] %vm1280, %v1095
  %1285 = vst.msk [vmem:[%s1 + $0x20] sm:$0xff] %vm1280, %v1109
  %1286 = vst.msk [vmem:[%s1 + $0x28] sm:$0xff] %vm1280, %v1123
  %1287 = vst.msk [vmem:[%s1 + $0x30] sm:$0xff] %vm1280, %v1137
  %1288 = vst.msk [vmem:[%s1 + $0x38] sm:$0xff] %vm1280, %v1151
  %1289 = vst.msk [vmem:[%s1 + $0x40] sm:$0xff] %vm1280, %v1165
  %1290 = vst.msk [vmem:[%s1 + $0x48] sm:$0xff] %vm1280, %v1179
  %1291 = vst.msk [vmem:[%s1 + $0x50] sm:$0xff] %vm1280, %v1193
  %1292 = vst.msk [vmem:[%s1 + $0x58] sm:$0xff] %vm1280, %v1207
  %1293 = vst.msk [vmem:[%s1 + $0x60] sm:$0xff] %vm1280, %v1221
  %1294 = vst.msk [vmem:[%s1 + $0x68] sm:$0xff] %vm1280, %v1235
  %1295 = vst.msk [vmem:[%s1 + $0x70] sm:$0xff] %vm1280, %v1249
  %1296 = vst.msk [vmem:[%s1 + $0x78] sm:$0xff] %vm1280, %v1263
  // Predicated region
  $region6: #{downscale.4} parent=0 // pred_check
    _
  $region7: #{downscale.4} parent=0 // pred_check_branch
    %1298 = sbr.rel (0) target = $region9
  $region8: #{downscale.4} parent=0 // pred_region
    _
  $region9: #{downscale.4} parent=0 // pred_fallthru
    _
  // Predicated region
  $region10: #{downscale.4} parent=0 // pred_check
    _
  $region11: #{downscale.4} parent=0 // pred_check_branch
    %1300 = sbr.rel (0) target = $region13
  $region12: #{downscale.4} parent=0 // pred_region
    _
  $region13: #{downscale.4} parent=0 // pred_fallthru
    _

</llo_original>
